<compile_context>
chip_gen: v6e
topology: v6e:2x2x1
jax: 0.10.0
libtpu: 0.0.40
codegen_flags: <defaults>
</compile_context>

<pallas_src>
import functools
import itertools

import jax
import jax.numpy as jnp
from jax.experimental import pallas as pl
from jax.experimental.pallas import tpu as pltpu

VOCAB_SIZE = 24
DIM_EMBEDDING = 100
FILTER_NUM = 64
FILTER_SIZES = (1, 2, 4, 8, 16)

VOCAB_PAD = 32                    # vocab 24 padded (sublane multiple, matmul K)
F_PAD = 128                       # filter_num 64 padded to one lane tile
OUT_PAD = 128                     # output_dim padded to one lane tile
B_BLK = 8                         # batch tile (sublane multiple)
N_TAP = sum(FILTER_SIZES)         # 31
TAP_OFF = tuple(itertools.accumulate((0,) + FILTER_SIZES[:-1]))  # (0,1,3,7,15)


def textcnn_kernel(seq_len, tok_ref, tbl_ref, lw_ref, lb_ref, out_ref):
    """tok_ref: (B_blk*L_pad, 1) int32   tbl_ref: (32, 31*128) bf16
       lw_ref : (5*128, 128) bf16        lb_ref : (1, 128) f32
       out_ref: (B_blk, 128) f32
    """
    b_blk = out_ref.shape[0]
    r = tok_ref.shape[0]
    l_pad = r // b_blk

    # Fused embedding + all-conv-taps matmul: a one-hot over the padded vocab
    # selects precomputed rows  tbl[v] = concat_taps(E[v] @ W_tap (+bias, tap0)).
    tok = tok_ref[...]                                                  # (R, 1)
    vocab_iota = jax.lax.broadcasted_iota(jnp.int32, (r, VOCAB_PAD), 1)
    onehot = (tok == vocab_iota).astype(jnp.bfloat16)                   # (R, 32)
    s = jnp.dot(onehot, tbl_ref[...],
                preferred_element_type=jnp.float32)                     # (R, 31*128)

    # Position index, hoisted out of the per-filter loop.
    pos = jax.lax.broadcasted_iota(jnp.int32, (b_blk, l_pad, F_PAD), 1)

    feats = []
    for i, fsz in enumerate(FILTER_SIZES):
        off = TAP_OFF[i]
        # conv[b, t] = bias + sum_j emb[tok[b, t+j]] @ W_j ; tap j needs row
        # t + j, aligned with XLU sublane rotations (wrapped rows are only
        # ever read at invalid t, which get masked below).
        acc = s[:, off * F_PAD:(off + 1) * F_PAD]                       # j = 0 (carries bias)
        for j in range(1, fsz):
            c0 = (off + j) * F_PAD
            acc = acc + pltpu.roll(s[:, c0:c0 + F_PAD], r - j, axis=0)  # row t <- row t + j
        act = jnp.maximum(acc, 0.0)                                     # ReLU
        act = act.reshape(b_blk, l_pad, F_PAD)                          # l_pad % 8 == 0
        # mask t >= L - fsz + 1 (incl. L padding); 0 is exact since ReLU >= 0
        act = jnp.where(pos < (seq_len - fsz + 1), act, 0.0)
        feats.append(jnp.max(act, axis=1))                              # (B_blk, 128)

    # single lane-dense final linear: (B_blk, 5*128) @ (5*128, 128)
    feat = jnp.concatenate(feats, axis=-1).astype(jnp.bfloat16)
    out = jnp.dot(feat, lw_ref[...], preferred_element_type=jnp.float32)
    out_ref[...] = out + lb_ref[...]


@functools.partial(jax.jit, static_argnums=(2,))
def textcnn_forward(tokens, params, output_dim):
    emb_table, conv_ws, conv_bs, lin_w, lin_b = params
    B, L = tokens.shape
    assert L >= max(FILTER_SIZES), "sequence shorter than largest filter"
    l_pad = -(-L // 8) * 8
    b_pad = -(-B // B_BLK) * B_BLK

    # Tokens padded (pad token 0 is masked in-kernel) and flattened batch-major.
    tok = jnp.zeros((b_pad, l_pad), jnp.int32).at[:B, :L].set(tokens.astype(jnp.int32))
    tok = tok.reshape(b_pad * l_pad, 1)

    # Fold embedding + conv weights + conv bias into one lookup table:
    # tbl[v, (TAP_OFF[i]+j)*128 : ...+64] = E[v] @ W_i[:, j, :]  (+ bias_i at j==0).
    emb_pad = jnp.zeros((VOCAB_PAD, DIM_EMBEDDING), jnp.float32).at[:VOCAB_SIZE].set(emb_table)
    tbl = jnp.zeros((VOCAB_PAD, N_TAP * F_PAD), jnp.float32)
    for i, fsz in enumerate(FILTER_SIZES):
        w = conv_ws[i].reshape(FILTER_NUM, fsz, DIM_EMBEDDING)          # (F, fsz, D)
        taps = jnp.einsum('vd,fjd->vjf', emb_pad, w)                    # (32, fsz, 64)
        taps = taps.at[:, 0, :].add(conv_bs[i])
        for j in range(fsz):
            c0 = (TAP_OFF[i] + j) * F_PAD
            tbl = tbl.at[:, c0:c0 + FILTER_NUM].set(taps[:, j, :])
    tbl = tbl.astype(jnp.bfloat16)

    # Final linear padded to a lane-dense (5*128, 128) operand.
    lw = jnp.zeros((len(FILTER_SIZES) * F_PAD, OUT_PAD), jnp.float32)
    for i in range(len(FILTER_SIZES)):
        lw = lw.at[i * F_PAD:i * F_PAD + FILTER_NUM, :output_dim].set(
            lin_w[:, i * FILTER_NUM:(i + 1) * FILTER_NUM].T)
    lw = lw.astype(jnp.bfloat16)
    lb = jnp.zeros((1, OUT_PAD), jnp.float32).at[0, :output_dim].set(lin_b)

    # TODO(synk): for very long sequences, add an L-tiled grid axis with a
    # running max to bound the (R, 31*128) f32 intermediate in VMEM.
    kernel = functools.partial(textcnn_kernel, L)
    out = pl.pallas_call(
        kernel,
        out_shape=jax.ShapeDtypeStruct((b_pad, OUT_PAD), jnp.float32),
        grid=(b_pad // B_BLK,),
        in_specs=[
            pl.BlockSpec((B_BLK * l_pad, 1), lambda i: (i, 0)),
            pl.BlockSpec((VOCAB_PAD, N_TAP * F_PAD), lambda i: (0, 0)),
            pl.BlockSpec((len(FILTER_SIZES) * F_PAD, OUT_PAD), lambda i: (0, 0)),
            pl.BlockSpec((1, OUT_PAD), lambda i: (0, 0)),
        ],
        out_specs=pl.BlockSpec((B_BLK, OUT_PAD), lambda i: (i, 0)),
        compiler_params=pltpu.CompilerParams(
            dimension_semantics=("parallel",),
            vmem_limit_bytes=32 * 1024 * 1024,
        ),
    )(tok, tbl, lw, lb)
    return out[:B, :output_dim]


def textcnn_ref(tokens, params, output_dim):
    """Pure-JAX (f32) reference matching the PyTorch forward exactly."""
    emb_table, conv_ws, conv_bs, lin_w, lin_b = params
    x = emb_table[tokens][:, None, :, :]                               # (B, 1, L, D) NCHW
    feats = []
    for w, b in zip(conv_ws, conv_bs):
        out = jax.lax.conv_general_dilated(
            x, w, window_strides=(1, 1), padding="VALID",
            dimension_numbers=("NCHW", "OIHW", "NCHW"))
        out = out + b[None, :, None, None]
        out = jax.nn.relu(out)
        feats.append(jnp.max(out, axis=(2, 3)))                        # (B, F)
    feat = jnp.concatenate(feats, axis=1)                              # (B, 5*F)
    return feat @ lin_w.T + lin_b


def init_params(key, output_dim):
    n = len(FILTER_SIZES)
    keys = jax.random.split(key, 2 * n + 3)
    emb_table = jax.random.normal(keys[0], (VOCAB_SIZE, DIM_EMBEDDING), jnp.float32) * 0.1
    conv_ws = [
        jax.random.normal(keys[1 + i], (FILTER_NUM, 1, fsz, DIM_EMBEDDING), jnp.float32) * 0.05
        for i, fsz in enumerate(FILTER_SIZES)
    ]
    conv_bs = [
        jax.random.normal(keys[1 + n + i], (FILTER_NUM,), jnp.float32) * 0.05
        for i in range(n)
    ]
    lin_w = jax.random.normal(keys[1 + 2 * n], (output_dim, FILTER_NUM * n), jnp.float32) * 0.05
    lin_b = jax.random.normal(keys[2 + 2 * n], (output_dim,), jnp.float32) * 0.05
    return emb_table, conv_ws, conv_bs, lin_w, lin_b


if __name__ == "__main__":
    output_dim = 8
    B, L = 2, 16  # L must be >= max filter size (16)

    key = jax.random.PRNGKey(0)
    pkey, tkey = jax.random.split(key)
    params = init_params(pkey, output_dim)
    tokens = jax.random.randint(tkey, (B, L), 0, VOCAB_SIZE, dtype=jnp.int32)

    out = textcnn_forward(tokens, params, output_dim)
    out = jax.block_until_ready(out)

    ref = jax.block_until_ready(textcnn_ref(tokens, params, output_dim))
    assert out.shape == (B, output_dim)
    assert jnp.allclose(out, ref, atol=2e-2, rtol=2e-2), (out, ref)

    print("KERNEL_OK")
</pallas_src>

<mosaic_0001>
module attributes {stable_mosaic.version = 11 : i64} {
  func.func @textcnn_kernel(%arg0: i32, %arg1: memref<128x1xi32, #tpu.memory_space<vmem>>, %arg2: memref<32x3968xbf16, #tpu.memory_space<vmem>>, %arg3: memref<640x128xbf16, #tpu.memory_space<vmem>>, %arg4: memref<1x128xf32, #tpu.memory_space<vmem>>, %arg5: memref<8x128xf32, #tpu.memory_space<vmem>>) attributes {dimension_semantics = [#tpu.dimension_semantics<parallel>], iteration_bounds = array<i64: 1>, scalar_prefetch = 0 : i64, scratch_operands = 0 : i64, tpu.core_type = #tpu.core_type<tc>, window_params = [{transform_indices = @transform_0, window_bounds = array<i64: 128, 1>}, {pipeline_mode = #tpu.pipeline_mode<synchronous>, transform_indices = @transform_1, window_bounds = array<i64: 32, 3968>}, {pipeline_mode = #tpu.pipeline_mode<synchronous>, transform_indices = @transform_2, window_bounds = array<i64: 640, 128>}, {pipeline_mode = #tpu.pipeline_mode<synchronous>, transform_indices = @transform_3, window_bounds = array<i64: 1, 128>}, {transform_indices = @transform_4, window_bounds = array<i64: 8, 128>}]} {
    %c0 = arith.constant 0 : index
    %c0_0 = arith.constant 0 : index
    %0 = vector.load %arg1[%c0, %c0_0] : memref<128x1xi32, #tpu.memory_space<vmem>>, vector<128x1xi32>
    %1 = tpu.iota {dimensions = array<i32: 1>} : vector<128x32xi32>
    %2 = vector.broadcast %0 : vector<128x1xi32> to vector<128x32xi32>
    %3 = arith.cmpi eq, %2, %1 : vector<128x32xi32>
    %4 = arith.extui %3 : vector<128x32xi1> to vector<128x32xi32>
    %5 = arith.sitofp %4 : vector<128x32xi32> to vector<128x32xf32>
    %6 = arith.truncf %5 : vector<128x32xf32> to vector<128x32xbf16>
    %c0_1 = arith.constant 0 : index
    %c0_2 = arith.constant 0 : index
    %7 = vector.load %arg2[%c0_1, %c0_2] : memref<32x3968xbf16, #tpu.memory_space<vmem>>, vector<32x3968xbf16>
    %cst = arith.constant dense<0.000000e+00> : vector<128x3968xf32>
    %8 = tpu.matmul %6, %7, %cst {dimension_numbers = #tpu.dot_dimension_numbers<[1], [0], [0], [1], [0, 0, 1, 1], [], []>} : vector<128x32xbf16>, vector<32x3968xbf16>, vector<128x3968xf32> -> vector<128x3968xf32>
    %9 = tpu.iota {dimensions = array<i32: 1>} : vector<8x16x128xi32>
    %10 = vector.extract_strided_slice %8 {offsets = [0, 0], sizes = [128, 128], strides = [1, 1]} : vector<128x3968xf32> to vector<128x128xf32>
    %cst_3 = arith.constant 0.000000e+00 : f32
    %11 = vector.broadcast %cst_3 : f32 to vector<128x128xf32>
    %12 = arith.maximumf %10, %11 : vector<128x128xf32>
    %13 = vector.shape_cast %12 : vector<128x128xf32> to vector<8x16x128xf32>
    %c16_i32 = arith.constant 16 : i32
    %14 = vector.broadcast %c16_i32 : i32 to vector<8x16x128xi32>
    %15 = arith.cmpi slt, %9, %14 : vector<8x16x128xi32>
    %cst_4 = arith.constant 0.000000e+00 : f32
    %16 = vector.broadcast %cst_4 : f32 to vector<8x16x128xf32>
    %17 = arith.select %15, %13, %16 : vector<8x16x128xi1>, vector<8x16x128xf32>
    %cst_5 = arith.constant dense<0xFF800000> : vector<8x128xf32>
    %18 = vector.multi_reduction <maximumf>, %17, %cst_5 [1] : vector<8x16x128xf32> to vector<8x128xf32>
    %19 = vector.extract_strided_slice %8 {offsets = [0, 128], sizes = [128, 128], strides = [1, 1]} : vector<128x3968xf32> to vector<128x128xf32>
    %20 = vector.extract_strided_slice %8 {offsets = [0, 256], sizes = [128, 128], strides = [1, 1]} : vector<128x3968xf32> to vector<128x128xf32>
    %c127_i32 = arith.constant 127 : i32
    %21 = tpu.dynamic_rotate %20 by %c127_i32 dim 0 : vector<128x128xf32>, i32 -> vector<128x128xf32>
    %22 = arith.addf %19, %21 : vector<128x128xf32>
    %cst_6 = arith.constant 0.000000e+00 : f32
    %23 = vector.broadcast %cst_6 : f32 to vector<128x128xf32>
    %24 = arith.maximumf %22, %23 : vector<128x128xf32>
    %25 = vector.shape_cast %24 : vector<128x128xf32> to vector<8x16x128xf32>
    %c15_i32 = arith.constant 15 : i32
    %26 = vector.broadcast %c15_i32 : i32 to vector<8x16x128xi32>
    %27 = arith.cmpi slt, %9, %26 : vector<8x16x128xi32>
    %cst_7 = arith.constant 0.000000e+00 : f32
    %28 = vector.broadcast %cst_7 : f32 to vector<8x16x128xf32>
    %29 = arith.select %27, %25, %28 : vector<8x16x128xi1>, vector<8x16x128xf32>
    %cst_8 = arith.constant dense<0xFF800000> : vector<8x128xf32>
    %30 = vector.multi_reduction <maximumf>, %29, %cst_8 [1] : vector<8x16x128xf32> to vector<8x128xf32>
    %31 = vector.extract_strided_slice %8 {offsets = [0, 384], sizes = [128, 128], strides = [1, 1]} : vector<128x3968xf32> to vector<128x128xf32>
    %32 = vector.extract_strided_slice %8 {offsets = [0, 512], sizes = [128, 128], strides = [1, 1]} : vector<128x3968xf32> to vector<128x128xf32>
    %c127_i32_9 = arith.constant 127 : i32
    %33 = tpu.dynamic_rotate %32 by %c127_i32_9 dim 0 : vector<128x128xf32>, i32 -> vector<128x128xf32>
    %34 = arith.addf %31, %33 : vector<128x128xf32>
    %35 = vector.extract_strided_slice %8 {offsets = [0, 640], sizes = [128, 128], strides = [1, 1]} : vector<128x3968xf32> to vector<128x128xf32>
    %c126_i32 = arith.constant 126 : i32
    %36 = tpu.dynamic_rotate %35 by %c126_i32 dim 0 : vector<128x128xf32>, i32 -> vector<128x128xf32>
    %37 = arith.addf %34, %36 : vector<128x128xf32>
    %38 = vector.extract_strided_slice %8 {offsets = [0, 768], sizes = [128, 128], strides = [1, 1]} : vector<128x3968xf32> to vector<128x128xf32>
    %c125_i32 = arith.constant 125 : i32
    %39 = tpu.dynamic_rotate %38 by %c125_i32 dim 0 : vector<128x128xf32>, i32 -> vector<128x128xf32>
    %40 = arith.addf %37, %39 : vector<128x128xf32>
    %cst_10 = arith.constant 0.000000e+00 : f32
    %41 = vector.broadcast %cst_10 : f32 to vector<128x128xf32>
    %42 = arith.maximumf %40, %41 : vector<128x128xf32>
    %43 = vector.shape_cast %42 : vector<128x128xf32> to vector<8x16x128xf32>
    %c13_i32 = arith.constant 13 : i32
    %44 = vector.broadcast %c13_i32 : i32 to vector<8x16x128xi32>
    %45 = arith.cmpi slt, %9, %44 : vector<8x16x128xi32>
    %cst_11 = arith.constant 0.000000e+00 : f32
    %46 = vector.broadcast %cst_11 : f32 to vector<8x16x128xf32>
    %47 = arith.select %45, %43, %46 : vector<8x16x128xi1>, vector<8x16x128xf32>
    %cst_12 = arith.constant dense<0xFF800000> : vector<8x128xf32>
    %48 = vector.multi_reduction <maximumf>, %47, %cst_12 [1] : vector<8x16x128xf32> to vector<8x128xf32>
    %49 = vector.extract_strided_slice %8 {offsets = [0, 896], sizes = [128, 128], strides = [1, 1]} : vector<128x3968xf32> to vector<128x128xf32>
    %50 = vector.extract_strided_slice %8 {offsets = [0, 1024], sizes = [128, 128], strides = [1, 1]} : vector<128x3968xf32> to vector<128x128xf32>
    %c127_i32_13 = arith.constant 127 : i32
    %51 = tpu.dynamic_rotate %50 by %c127_i32_13 dim 0 : vector<128x128xf32>, i32 -> vector<128x128xf32>
    %52 = arith.addf %49, %51 : vector<128x128xf32>
    %53 = vector.extract_strided_slice %8 {offsets = [0, 1152], sizes = [128, 128], strides = [1, 1]} : vector<128x3968xf32> to vector<128x128xf32>
    %c126_i32_14 = arith.constant 126 : i32
    %54 = tpu.dynamic_rotate %53 by %c126_i32_14 dim 0 : vector<128x128xf32>, i32 -> vector<128x128xf32>
    %55 = arith.addf %52, %54 : vector<128x128xf32>
    %56 = vector.extract_strided_slice %8 {offsets = [0, 1280], sizes = [128, 128], strides = [1, 1]} : vector<128x3968xf32> to vector<128x128xf32>
    %c125_i32_15 = arith.constant 125 : i32
    %57 = tpu.dynamic_rotate %56 by %c125_i32_15 dim 0 : vector<128x128xf32>, i32 -> vector<128x128xf32>
    %58 = arith.addf %55, %57 : vector<128x128xf32>
    %59 = vector.extract_strided_slice %8 {offsets = [0, 1408], sizes = [128, 128], strides = [1, 1]} : vector<128x3968xf32> to vector<128x128xf32>
    %c124_i32 = arith.constant 124 : i32
    %60 = tpu.dynamic_rotate %59 by %c124_i32 dim 0 : vector<128x128xf32>, i32 -> vector<128x128xf32>
    %61 = arith.addf %58, %60 : vector<128x128xf32>
    %62 = vector.extract_strided_slice %8 {offsets = [0, 1536], sizes = [128, 128], strides = [1, 1]} : vector<128x3968xf32> to vector<128x128xf32>
    %c123_i32 = arith.constant 123 : i32
    %63 = tpu.dynamic_rotate %62 by %c123_i32 dim 0 : vector<128x128xf32>, i32 -> vector<128x128xf32>
    %64 = arith.addf %61, %63 : vector<128x128xf32>
    %65 = vector.extract_strided_slice %8 {offsets = [0, 1664], sizes = [128, 128], strides = [1, 1]} : vector<128x3968xf32> to vector<128x128xf32>
    %c122_i32 = arith.constant 122 : i32
    %66 = tpu.dynamic_rotate %65 by %c122_i32 dim 0 : vector<128x128xf32>, i32 -> vector<128x128xf32>
    %67 = arith.addf %64, %66 : vector<128x128xf32>
    %68 = vector.extract_strided_slice %8 {offsets = [0, 1792], sizes = [128, 128], strides = [1, 1]} : vector<128x3968xf32> to vector<128x128xf32>
    %c121_i32 = arith.constant 121 : i32
    %69 = tpu.dynamic_rotate %68 by %c121_i32 dim 0 : vector<128x128xf32>, i32 -> vector<128x128xf32>
    %70 = arith.addf %67, %69 : vector<128x128xf32>
    %cst_16 = arith.constant 0.000000e+00 : f32
    %71 = vector.broadcast %cst_16 : f32 to vector<128x128xf32>
    %72 = arith.maximumf %70, %71 : vector<128x128xf32>
    %73 = vector.shape_cast %72 : vector<128x128xf32> to vector<8x16x128xf32>
    %c9_i32 = arith.constant 9 : i32
    %74 = vector.broadcast %c9_i32 : i32 to vector<8x16x128xi32>
    %75 = arith.cmpi slt, %9, %74 : vector<8x16x128xi32>
    %cst_17 = arith.constant 0.000000e+00 : f32
    %76 = vector.broadcast %cst_17 : f32 to vector<8x16x128xf32>
    %77 = arith.select %75, %73, %76 : vector<8x16x128xi1>, vector<8x16x128xf32>
    %cst_18 = arith.constant dense<0xFF800000> : vector<8x128xf32>
    %78 = vector.multi_reduction <maximumf>, %77, %cst_18 [1] : vector<8x16x128xf32> to vector<8x128xf32>
    %79 = vector.extract_strided_slice %8 {offsets = [0, 1920], sizes = [128, 128], strides = [1, 1]} : vector<128x3968xf32> to vector<128x128xf32>
    %80 = vector.extract_strided_slice %8 {offsets = [0, 2048], sizes = [128, 128], strides = [1, 1]} : vector<128x3968xf32> to vector<128x128xf32>
    %c127_i32_19 = arith.constant 127 : i32
    %81 = tpu.dynamic_rotate %80 by %c127_i32_19 dim 0 : vector<128x128xf32>, i32 -> vector<128x128xf32>
    %82 = arith.addf %79, %81 : vector<128x128xf32>
    %83 = vector.extract_strided_slice %8 {offsets = [0, 2176], sizes = [128, 128], strides = [1, 1]} : vector<128x3968xf32> to vector<128x128xf32>
    %c126_i32_20 = arith.constant 126 : i32
    %84 = tpu.dynamic_rotate %83 by %c126_i32_20 dim 0 : vector<128x128xf32>, i32 -> vector<128x128xf32>
    %85 = arith.addf %82, %84 : vector<128x128xf32>
    %86 = vector.extract_strided_slice %8 {offsets = [0, 2304], sizes = [128, 128], strides = [1, 1]} : vector<128x3968xf32> to vector<128x128xf32>
    %c125_i32_21 = arith.constant 125 : i32
    %87 = tpu.dynamic_rotate %86 by %c125_i32_21 dim 0 : vector<128x128xf32>, i32 -> vector<128x128xf32>
    %88 = arith.addf %85, %87 : vector<128x128xf32>
    %89 = vector.extract_strided_slice %8 {offsets = [0, 2432], sizes = [128, 128], strides = [1, 1]} : vector<128x3968xf32> to vector<128x128xf32>
    %c124_i32_22 = arith.constant 124 : i32
    %90 = tpu.dynamic_rotate %89 by %c124_i32_22 dim 0 : vector<128x128xf32>, i32 -> vector<128x128xf32>
    %91 = arith.addf %88, %90 : vector<128x128xf32>
    %92 = vector.extract_strided_slice %8 {offsets = [0, 2560], sizes = [128, 128], strides = [1, 1]} : vector<128x3968xf32> to vector<128x128xf32>
    %c123_i32_23 = arith.constant 123 : i32
    %93 = tpu.dynamic_rotate %92 by %c123_i32_23 dim 0 : vector<128x128xf32>, i32 -> vector<128x128xf32>
    %94 = arith.addf %91, %93 : vector<128x128xf32>
    %95 = vector.extract_strided_slice %8 {offsets = [0, 2688], sizes = [128, 128], strides = [1, 1]} : vector<128x3968xf32> to vector<128x128xf32>
    %c122_i32_24 = arith.constant 122 : i32
    %96 = tpu.dynamic_rotate %95 by %c122_i32_24 dim 0 : vector<128x128xf32>, i32 -> vector<128x128xf32>
    %97 = arith.addf %94, %96 : vector<128x128xf32>
    %98 = vector.extract_strided_slice %8 {offsets = [0, 2816], sizes = [128, 128], strides = [1, 1]} : vector<128x3968xf32> to vector<128x128xf32>
    %c121_i32_25 = arith.constant 121 : i32
    %99 = tpu.dynamic_rotate %98 by %c121_i32_25 dim 0 : vector<128x128xf32>, i32 -> vector<128x128xf32>
    %100 = arith.addf %97, %99 : vector<128x128xf32>
    %101 = vector.extract_strided_slice %8 {offsets = [0, 2944], sizes = [128, 128], strides = [1, 1]} : vector<128x3968xf32> to vector<128x128xf32>
    %c120_i32 = arith.constant 120 : i32
    %102 = tpu.dynamic_rotate %101 by %c120_i32 dim 0 : vector<128x128xf32>, i32 -> vector<128x128xf32>
    %103 = arith.addf %100, %102 : vector<128x128xf32>
    %104 = vector.extract_strided_slice %8 {offsets = [0, 3072], sizes = [128, 128], strides = [1, 1]} : vector<128x3968xf32> to vector<128x128xf32>
    %c119_i32 = arith.constant 119 : i32
    %105 = tpu.dynamic_rotate %104 by %c119_i32 dim 0 : vector<128x128xf32>, i32 -> vector<128x128xf32>
    %106 = arith.addf %103, %105 : vector<128x128xf32>
    %107 = vector.extract_strided_slice %8 {offsets = [0, 3200], sizes = [128, 128], strides = [1, 1]} : vector<128x3968xf32> to vector<128x128xf32>
    %c118_i32 = arith.constant 118 : i32
    %108 = tpu.dynamic_rotate %107 by %c118_i32 dim 0 : vector<128x128xf32>, i32 -> vector<128x128xf32>
    %109 = arith.addf %106, %108 : vector<128x128xf32>
    %110 = vector.extract_strided_slice %8 {offsets = [0, 3328], sizes = [128, 128], strides = [1, 1]} : vector<128x3968xf32> to vector<128x128xf32>
    %c117_i32 = arith.constant 117 : i32
    %111 = tpu.dynamic_rotate %110 by %c117_i32 dim 0 : vector<128x128xf32>, i32 -> vector<128x128xf32>
    %112 = arith.addf %109, %111 : vector<128x128xf32>
    %113 = vector.extract_strided_slice %8 {offsets = [0, 3456], sizes = [128, 128], strides = [1, 1]} : vector<128x3968xf32> to vector<128x128xf32>
    %c116_i32 = arith.constant 116 : i32
    %114 = tpu.dynamic_rotate %113 by %c116_i32 dim 0 : vector<128x128xf32>, i32 -> vector<128x128xf32>
    %115 = arith.addf %112, %114 : vector<128x128xf32>
    %116 = vector.extract_strided_slice %8 {offsets = [0, 3584], sizes = [128, 128], strides = [1, 1]} : vector<128x3968xf32> to vector<128x128xf32>
    %c115_i32 = arith.constant 115 : i32
    %117 = tpu.dynamic_rotate %116 by %c115_i32 dim 0 : vector<128x128xf32>, i32 -> vector<128x128xf32>
    %118 = arith.addf %115, %117 : vector<128x128xf32>
    %119 = vector.extract_strided_slice %8 {offsets = [0, 3712], sizes = [128, 128], strides = [1, 1]} : vector<128x3968xf32> to vector<128x128xf32>
    %c114_i32 = arith.constant 114 : i32
    %120 = tpu.dynamic_rotate %119 by %c114_i32 dim 0 : vector<128x128xf32>, i32 -> vector<128x128xf32>
    %121 = arith.addf %118, %120 : vector<128x128xf32>
    %122 = vector.extract_strided_slice %8 {offsets = [0, 3840], sizes = [128, 128], strides = [1, 1]} : vector<128x3968xf32> to vector<128x128xf32>
    %c113_i32 = arith.constant 113 : i32
    %123 = tpu.dynamic_rotate %122 by %c113_i32 dim 0 : vector<128x128xf32>, i32 -> vector<128x128xf32>
    %124 = arith.addf %121, %123 : vector<128x128xf32>
    %cst_26 = arith.constant 0.000000e+00 : f32
    %125 = vector.broadcast %cst_26 : f32 to vector<128x128xf32>
    %126 = arith.maximumf %124, %125 : vector<128x128xf32>
    %127 = vector.shape_cast %126 : vector<128x128xf32> to vector<8x16x128xf32>
    %c1_i32 = arith.constant 1 : i32
    %128 = vector.broadcast %c1_i32 : i32 to vector<8x16x128xi32>
    %129 = arith.cmpi slt, %9, %128 : vector<8x16x128xi32>
    %cst_27 = arith.constant 0.000000e+00 : f32
    %130 = vector.broadcast %cst_27 : f32 to vector<8x16x128xf32>
    %131 = arith.select %129, %127, %130 : vector<8x16x128xi1>, vector<8x16x128xf32>
    %cst_28 = arith.constant dense<0xFF800000> : vector<8x128xf32>
    %132 = vector.multi_reduction <maximumf>, %131, %cst_28 [1] : vector<8x16x128xf32> to vector<8x128xf32>
    %133 = tpu.concatenate %18, %30, %48, %78, %132 in 1 : vector<8x128xf32>, vector<8x128xf32>, vector<8x128xf32>, vector<8x128xf32>, vector<8x128xf32> -> vector<8x640xf32>
    %134 = arith.truncf %133 : vector<8x640xf32> to vector<8x640xbf16>
    %c0_29 = arith.constant 0 : index
    %c0_30 = arith.constant 0 : index
    %135 = vector.load %arg3[%c0_29, %c0_30] : memref<640x128xbf16, #tpu.memory_space<vmem>>, vector<640x128xbf16>
    %cst_31 = arith.constant dense<0.000000e+00> : vector<8x128xf32>
    %136 = tpu.matmul %134, %135, %cst_31 {dimension_numbers = #tpu.dot_dimension_numbers<[1], [0], [0], [1], [0, 0, 1, 1], [], []>} : vector<8x640xbf16>, vector<640x128xbf16>, vector<8x128xf32> -> vector<8x128xf32>
    %c0_32 = arith.constant 0 : index
    %c0_33 = arith.constant 0 : index
    %137 = vector.load %arg4[%c0_32, %c0_33] : memref<1x128xf32, #tpu.memory_space<vmem>>, vector<1x128xf32>
    %138 = vector.broadcast %137 : vector<1x128xf32> to vector<8x128xf32>
    %139 = arith.addf %136, %138 : vector<8x128xf32>
    %c0_34 = arith.constant 0 : index
    %c0_35 = arith.constant 0 : index
    %140 = vector.load %arg5[%c0_34, %c0_35] : memref<8x128xf32, #tpu.memory_space<vmem>>, vector<8x128xf32>
    tpu.vector_store %arg5[%c0_34, %c0_35], %139 {strides = array<i32>} : memref<8x128xf32, #tpu.memory_space<vmem>>, vector<8x128xf32>,
    return
  }
  func.func @transform_0(%arg0: i32) -> (i32, i32) {
    %c0_i32 = arith.constant 0 : i32
    %c0_i32_0 = arith.constant 0 : i32
    return %arg0, %c0_i32 : i32, i32
  }
  func.func @transform_1(%arg0: i32) -> (i32, i32) {
    %c0_i32 = arith.constant 0 : i32
    %c0_i32_0 = arith.constant 0 : i32
    %c0_i32_1 = arith.constant 0 : i32
    return %c0_i32, %c0_i32_0 : i32, i32
  }
  func.func @transform_2(%arg0: i32) -> (i32, i32) {
    %c0_i32 = arith.constant 0 : i32
    %c0_i32_0 = arith.constant 0 : i32
    %c0_i32_1 = arith.constant 0 : i32
    return %c0_i32, %c0_i32_0 : i32, i32
  }
  func.func @transform_3(%arg0: i32) -> (i32, i32) {
    %c0_i32 = arith.constant 0 : i32
    %c0_i32_0 = arith.constant 0 : i32
    %c0_i32_1 = arith.constant 0 : i32
    return %c0_i32, %c0_i32_0 : i32, i32
  }
  func.func @transform_4(%arg0: i32) -> (i32, i32) {
    %c0_i32 = arith.constant 0 : i32
    %c0_i32_0 = arith.constant 0 : i32
    return %arg0, %c0_i32 : i32, i32
  }
}

</mosaic_0001>

<llo_original>
// kernel: textcnn_forward.1
$region0: #{textcnn_forward.1}
  #allocation0 [shape = 'u32[]', space=smem, size = 0x4, offset = 0x4, fixed_abs, tag = 'smem constant byte address 0x4 - core index']
  #allocation1 [shape = 'u32[144,128]{1,0:T(1,128)}', space=vmem, size = 0x12000, scoped, tag = 'internal scratch']
  %s0 = inlined_call_operand.vmem [shape: s32[128,1], index: 0, kind: input, shape index: {}]
  %s1 = inlined_call_operand.vmem [shape: bf16[32,3968], index: 1, kind: input, shape index: {}]
  %s2 = inlined_call_operand.vmem [shape: bf16[640,128], index: 2, kind: input, shape index: {}]
  %s3 = inlined_call_operand.vmem [shape: f32[1,128], index: 3, kind: input, shape index: {}]
  %s4 = inlined_call_operand.vmem [shape: f32[8,128], index: 4, kind: output, shape index: {}]
  %s5 = sld [smem:[#allocation0]]
  $region26: #{textcnn_forward.1} parent=0
    _
  %s7 = ssub.s32 1, %s5
  %s8 = scalar_select 0, %s7, %s5
  // Predicated region
  $region2: #{textcnn_forward.1} parent=0 // pred_check
    _
  $region3: #{textcnn_forward.1} parent=0 // pred_check_branch
    %10 = sbr.rel (0) target = $region5
  $region4: #{textcnn_forward.1} parent=0 // pred_region
    _
  $region5: #{textcnn_forward.1} parent=0 // pred_fallthru
    _
  // Predicated region
  $region6: #{textcnn_forward.1} parent=0 // pred_check
    _
  $region7: #{textcnn_forward.1} parent=0 // pred_check_branch
    %12 = sbr.rel (0) target = $region9
  $region8: #{textcnn_forward.1} parent=0 // pred_region
    _
  $region9: #{textcnn_forward.1} parent=0 // pred_fallthru
    _
  // Predicated region
  $region10: #{textcnn_forward.1} parent=0 // pred_check
    _
  $region11: #{textcnn_forward.1} parent=0 // pred_check_branch
    %14 = sbr.rel (0) target = $region13
  $region12: #{textcnn_forward.1} parent=0 // pred_region
    _
  $region13: #{textcnn_forward.1} parent=0 // pred_fallthru
    _
  // Predicated region
  $region14: #{textcnn_forward.1} parent=0 // pred_check
    _
  $region15: #{textcnn_forward.1} parent=0 // pred_check_branch
    %16 = sbr.rel (0) target = $region17
  $region16: #{textcnn_forward.1} parent=0 // pred_region
    _
  $region17: #{textcnn_forward.1} parent=0 // pred_fallthru
    _
  %v18 = vld [vmem:[%s0] sm:$0xff]
  %v19 = vld [vmem:[%s0 + $0x8] sm:$0xff]
  %v20 = vld [vmem:[%s0 + $0x10] sm:$0xff]
  %v21 = vld [vmem:[%s0 + $0x18] sm:$0xff]
  %v22 = vld [vmem:[%s0 + $0x20] sm:$0xff]
  %v23 = vld [vmem:[%s0 + $0x28] sm:$0xff]
  %v24 = vld [vmem:[%s0 + $0x30] sm:$0xff]
  %v25 = vld [vmem:[%s0 + $0x38] sm:$0xff]
  %v26 = vld [vmem:[%s0 + $0x40] sm:$0xff]
  %v27 = vld [vmem:[%s0 + $0x48] sm:$0xff]
  %v28 = vld [vmem:[%s0 + $0x50] sm:$0xff]
  %v29 = vld [vmem:[%s0 + $0x58] sm:$0xff]
  %v30 = vld [vmem:[%s0 + $0x60] sm:$0xff]
  %v31 = vld [vmem:[%s0 + $0x68] sm:$0xff]
  %v32 = vld [vmem:[%s0 + $0x70] sm:$0xff]
  %v33 = vld [vmem:[%s0 + $0x78] sm:$0xff]
  %v34 = vlaneseq
  %v35 = vand.u32 %v34, 127
  %36 = vset.pattern.permute.xlu0 0
  %37 = vperm.xlu0 %36, %v18
  %v38 = vpop.permute.xlu0 %37
  %39 = vset.pattern.permute.xlu0 0
  %40 = vperm.xlu0 %39, %v19
  %v41 = vpop.permute.xlu0 %40
  %42 = vset.pattern.permute.xlu0 0
  %43 = vperm.xlu0 %42, %v20
  %v44 = vpop.permute.xlu0 %43
  %45 = vset.pattern.permute.xlu0 0
  %46 = vperm.xlu0 %45, %v21
  %v47 = vpop.permute.xlu0 %46
  %48 = vset.pattern.permute.xlu0 0
  %49 = vperm.xlu0 %48, %v22
  %v50 = vpop.permute.xlu0 %49
  %51 = vset.pattern.permute.xlu0 0
  %52 = vperm.xlu0 %51, %v23
  %v53 = vpop.permute.xlu0 %52
  %54 = vset.pattern.permute.xlu0 0
  %55 = vperm.xlu0 %54, %v24
  %v56 = vpop.permute.xlu0 %55
  %57 = vset.pattern.permute.xlu0 0
  %58 = vperm.xlu0 %57, %v25
  %v59 = vpop.permute.xlu0 %58
  %60 = vset.pattern.permute.xlu0 0
  %61 = vperm.xlu0 %60, %v26
  %v62 = vpop.permute.xlu0 %61
  %63 = vset.pattern.permute.xlu0 0
  %64 = vperm.xlu0 %63, %v27
  %v65 = vpop.permute.xlu0 %64
  %66 = vset.pattern.permute.xlu0 0
  %67 = vperm.xlu0 %66, %v28
  %v68 = vpop.permute.xlu0 %67
  %69 = vset.pattern.permute.xlu0 0
  %70 = vperm.xlu0 %69, %v29
  %v71 = vpop.permute.xlu0 %70
  %72 = vset.pattern.permute.xlu0 0
  %73 = vperm.xlu0 %72, %v30
  %v74 = vpop.permute.xlu0 %73
  %75 = vset.pattern.permute.xlu0 0
  %76 = vperm.xlu0 %75, %v31
  %v77 = vpop.permute.xlu0 %76
  %78 = vset.pattern.permute.xlu0 0
  %79 = vperm.xlu0 %78, %v32
  %v80 = vpop.permute.xlu0 %79
  %81 = vset.pattern.permute.xlu0 0
  %82 = vperm.xlu0 %81, %v33
  %v83 = vpop.permute.xlu0 %82
  %vm84 = vcmp.eq.s32.totalorder %v38, %v35
  %vm85 = vcmp.eq.s32.totalorder %v41, %v35
  %vm86 = vcmp.eq.s32.totalorder %v44, %v35
  %vm87 = vcmp.eq.s32.totalorder %v47, %v35
  %vm88 = vcmp.eq.s32.totalorder %v50, %v35
  %vm89 = vcmp.eq.s32.totalorder %v53, %v35
  %vm90 = vcmp.eq.s32.totalorder %v56, %v35
  %vm91 = vcmp.eq.s32.totalorder %v59, %v35
  %vm92 = vcmp.eq.s32.totalorder %v62, %v35
  %vm93 = vcmp.eq.s32.totalorder %v65, %v35
  %vm94 = vcmp.eq.s32.totalorder %v68, %v35
  %vm95 = vcmp.eq.s32.totalorder %v71, %v35
  %vm96 = vcmp.eq.s32.totalorder %v74, %v35
  %vm97 = vcmp.eq.s32.totalorder %v77, %v35
  %vm98 = vcmp.eq.s32.totalorder %v80, %v35
  %vm99 = vcmp.eq.s32.totalorder %v83, %v35
  %v100 = vsel %vm84, 1, 0
  %v101 = vsel %vm85, 1, 0
  %v102 = vsel %vm86, 1, 0
  %v103 = vsel %vm87, 1, 0
  %v104 = vsel %vm88, 1, 0
  %v105 = vsel %vm89, 1, 0
  %v106 = vsel %vm90, 1, 0
  %v107 = vsel %vm91, 1, 0
  %v108 = vsel %vm92, 1, 0
  %v109 = vsel %vm93, 1, 0
  %v110 = vsel %vm94, 1, 0
  %v111 = vsel %vm95, 1, 0
  %v112 = vsel %vm96, 1, 0
  %v113 = vsel %vm97, 1, 0
  %v114 = vsel %vm98, 1, 0
  %v115 = vsel %vm99, 1, 0
  %v116 = vcvt.s32.f32 %v100
  %v117 = vcvt.s32.f32 %v101
  %v118 = vcvt.s32.f32 %v102
  %v119 = vcvt.s32.f32 %v103
  %v120 = vcvt.s32.f32 %v104
  %v121 = vcvt.s32.f32 %v105
  %v122 = vcvt.s32.f32 %v106
  %v123 = vcvt.s32.f32 %v107
  %v124 = vcvt.s32.f32 %v108
  %v125 = vcvt.s32.f32 %v109
  %v126 = vcvt.s32.f32 %v110
  %v127 = vcvt.s32.f32 %v111
  %v128 = vcvt.s32.f32 %v112
  %v129 = vcvt.s32.f32 %v113
  %v130 = vcvt.s32.f32 %v114
  %v131 = vcvt.s32.f32 %v115
  %v132 = vpack.c.bf16 %v117, %v116
  %v133 = vpack.c.bf16 %v119, %v118
  %v134 = vpack.c.bf16 %v121, %v120
  %v135 = vpack.c.bf16 %v123, %v122
  %v136 = vpack.c.bf16 %v125, %v124
  %v137 = vpack.c.bf16 %v127, %v126
  %v138 = vpack.c.bf16 %v129, %v128
  %v139 = vpack.c.bf16 %v131, %v130
  %v140 = vld [vmem:[%s1] sm:$0xff]
  %v141 = vld [vmem:[%s1 + $0x8] sm:$0xff]
  %v142 = vld [vmem:[%s1 + $0x10] sm:$0xff]
  %v143 = vld [vmem:[%s1 + $0x18] sm:$0xff]
  %v144 = vld [vmem:[%s1 + $0x20] sm:$0xff]
  %v145 = vld [vmem:[%s1 + $0x28] sm:$0xff]
  %v146 = vld [vmem:[%s1 + $0x30] sm:$0xff]
  %v147 = vld [vmem:[%s1 + $0x38] sm:$0xff]
  %v148 = vld [vmem:[%s1 + $0x40] sm:$0xff]
  %v149 = vld [vmem:[%s1 + $0x48] sm:$0xff]
  %v150 = vld [vmem:[%s1 + $0x50] sm:$0xff]
  %v151 = vld [vmem:[%s1 + $0x58] sm:$0xff]
  %v152 = vld [vmem:[%s1 + $0x60] sm:$0xff]
  %v153 = vld [vmem:[%s1 + $0x68] sm:$0xff]
  %v154 = vld [vmem:[%s1 + $0x70] sm:$0xff]
  %v155 = vld [vmem:[%s1 + $0x78] sm:$0xf]
  %v156 = vld [vmem:[%s1 + $0x7c] sm:$0xff]
  %v157 = vld [vmem:[%s1 + $0x84] sm:$0xff]
  %v158 = vld [vmem:[%s1 + $0x8c] sm:$0xff]
  %v159 = vld [vmem:[%s1 + $0x94] sm:$0xff]
  %v160 = vld [vmem:[%s1 + $0x9c] sm:$0xff]
  %v161 = vld [vmem:[%s1 + $0xa4] sm:$0xff]
  %v162 = vld [vmem:[%s1 + $0xac] sm:$0xff]
  %v163 = vld [vmem:[%s1 + $0xb4] sm:$0xff]
  %v164 = vld [vmem:[%s1 + $0xbc] sm:$0xff]
  %v165 = vld [vmem:[%s1 + $0xc4] sm:$0xff]
  %v166 = vld [vmem:[%s1 + $0xcc] sm:$0xff]
  %v167 = vld [vmem:[%s1 + $0xd4] sm:$0xff]
  %v168 = vld [vmem:[%s1 + $0xdc] sm:$0xff]
  %v169 = vld [vmem:[%s1 + $0xe4] sm:$0xff]
  %v170 = vld [vmem:[%s1 + $0xec] sm:$0xff]
  %v171 = vld [vmem:[%s1 + $0xf4] sm:$0xf]
  %v172 = vld [vmem:[%s1 + $0xf8] sm:$0xff]
  %v173 = vld [vmem:[%s1 + $0x100] sm:$0xff]
  %v174 = vld [vmem:[%s1 + $0x108] sm:$0xff]
  %v175 = vld [vmem:[%s1 + $0x110] sm:$0xff]
  %v176 = vld [vmem:[%s1 + $0x118] sm:$0xff]
  %v177 = vld [vmem:[%s1 + $0x120] sm:$0xff]
  %v178 = vld [vmem:[%s1 + $0x128] sm:$0xff]
  %v179 = vld [vmem:[%s1 + $0x130] sm:$0xff]
  %v180 = vld [vmem:[%s1 + $0x138] sm:$0xff]
  %v181 = vld [vmem:[%s1 + $0x140] sm:$0xff]
  %v182 = vld [vmem:[%s1 + $0x148] sm:$0xff]
  %v183 = vld [vmem:[%s1 + $0x150] sm:$0xff]
  %v184 = vld [vmem:[%s1 + $0x158] sm:$0xff]
  %v185 = vld [vmem:[%s1 + $0x160] sm:$0xff]
  %v186 = vld [vmem:[%s1 + $0x168] sm:$0xff]
  %v187 = vld [vmem:[%s1 + $0x170] sm:$0xf]
  %v188 = vld [vmem:[%s1 + $0x174] sm:$0xff]
  %v189 = vld [vmem:[%s1 + $0x17c] sm:$0xff]
  %v190 = vld [vmem:[%s1 + $0x184] sm:$0xff]
  %v191 = vld [vmem:[%s1 + $0x18c] sm:$0xff]
  %v192 = vld [vmem:[%s1 + $0x194] sm:$0xff]
  %v193 = vld [vmem:[%s1 + $0x19c] sm:$0xff]
  %v194 = vld [vmem:[%s1 + $0x1a4] sm:$0xff]
  %v195 = vld [vmem:[%s1 + $0x1ac] sm:$0xff]
  %v196 = vld [vmem:[%s1 + $0x1b4] sm:$0xff]
  %v197 = vld [vmem:[%s1 + $0x1bc] sm:$0xff]
  %v198 = vld [vmem:[%s1 + $0x1c4] sm:$0xff]
  %v199 = vld [vmem:[%s1 + $0x1cc] sm:$0xff]
  %v200 = vld [vmem:[%s1 + $0x1d4] sm:$0xff]
  %v201 = vld [vmem:[%s1 + $0x1dc] sm:$0xff]
  %v202 = vld [vmem:[%s1 + $0x1e4] sm:$0xff]
  %v203 = vld [vmem:[%s1 + $0x1ec] sm:$0xf]
  %v268 = vunpack.c.l.b16 %v140
  %v269 = vunpack.c.h.b16 %v140
  %v270 = vunpack.c.l.b16 %v141
  %v271 = vunpack.c.h.b16 %v141
  %v272 = vunpack.c.l.b16 %v142
  %v273 = vunpack.c.h.b16 %v142
  %v274 = vunpack.c.l.b16 %v143
  %v275 = vunpack.c.h.b16 %v143
  %v276 = vunpack.c.l.b16 %v144
  %v277 = vunpack.c.h.b16 %v144
  %v278 = vunpack.c.l.b16 %v145
  %v279 = vunpack.c.h.b16 %v145
  %v280 = vunpack.c.l.b16 %v146
  %v281 = vunpack.c.h.b16 %v146
  %v282 = vunpack.c.l.b16 %v147
  %v283 = vunpack.c.h.b16 %v147
  %v284 = vunpack.c.l.b16 %v148
  %v285 = vunpack.c.h.b16 %v148
  %v286 = vunpack.c.l.b16 %v149
  %v287 = vunpack.c.h.b16 %v149
  %v288 = vunpack.c.l.b16 %v150
  %v289 = vunpack.c.h.b16 %v150
  %v290 = vunpack.c.l.b16 %v151
  %v291 = vunpack.c.h.b16 %v151
  %v292 = vunpack.c.l.b16 %v152
  %v293 = vunpack.c.h.b16 %v152
  %v294 = vunpack.c.l.b16 %v153
  %v295 = vunpack.c.h.b16 %v153
  %v296 = vunpack.c.l.b16 %v154
  %v297 = vunpack.c.h.b16 %v154
  %v298 = vunpack.c.l.b16 %v155
  %v299 = vunpack.c.l.b16 %v156
  %v300 = vunpack.c.h.b16 %v156
  %v301 = vunpack.c.l.b16 %v157
  %v302 = vunpack.c.h.b16 %v157
  %v303 = vunpack.c.l.b16 %v158
  %v304 = vunpack.c.h.b16 %v158
  %v305 = vunpack.c.l.b16 %v159
  %v306 = vunpack.c.h.b16 %v159
  %v307 = vunpack.c.l.b16 %v160
  %v308 = vunpack.c.h.b16 %v160
  %v309 = vunpack.c.l.b16 %v161
  %v310 = vunpack.c.h.b16 %v161
  %v311 = vunpack.c.l.b16 %v162
  %v312 = vunpack.c.h.b16 %v162
  %v313 = vunpack.c.l.b16 %v163
  %v314 = vunpack.c.h.b16 %v163
  %v315 = vunpack.c.l.b16 %v164
  %v316 = vunpack.c.h.b16 %v164
  %v317 = vunpack.c.l.b16 %v165
  %v318 = vunpack.c.h.b16 %v165
  %v319 = vunpack.c.l.b16 %v166
  %v320 = vunpack.c.h.b16 %v166
  %v321 = vunpack.c.l.b16 %v167
  %v322 = vunpack.c.h.b16 %v167
  %v323 = vunpack.c.l.b16 %v168
  %v324 = vunpack.c.h.b16 %v168
  %v325 = vunpack.c.l.b16 %v169
  %v326 = vunpack.c.h.b16 %v169
  %v327 = vunpack.c.l.b16 %v170
  %v328 = vunpack.c.h.b16 %v170
  %v329 = vunpack.c.l.b16 %v171
  %v330 = vunpack.c.l.b16 %v172
  %v331 = vunpack.c.h.b16 %v172
  %v332 = vunpack.c.l.b16 %v173
  %v333 = vunpack.c.h.b16 %v173
  %v334 = vunpack.c.l.b16 %v174
  %v335 = vunpack.c.h.b16 %v174
  %v336 = vunpack.c.l.b16 %v175
  %v337 = vunpack.c.h.b16 %v175
  %v338 = vunpack.c.l.b16 %v176
  %v339 = vunpack.c.h.b16 %v176
  %v340 = vunpack.c.l.b16 %v177
  %v341 = vunpack.c.h.b16 %v177
  %v342 = vunpack.c.l.b16 %v178
  %v343 = vunpack.c.h.b16 %v178
  %v344 = vunpack.c.l.b16 %v179
  %v345 = vunpack.c.h.b16 %v179
  %v346 = vunpack.c.l.b16 %v180
  %v347 = vunpack.c.h.b16 %v180
  %v348 = vunpack.c.l.b16 %v181
  %v349 = vunpack.c.h.b16 %v181
  %v350 = vunpack.c.l.b16 %v182
  %v351 = vunpack.c.h.b16 %v182
  %v352 = vunpack.c.l.b16 %v183
  %v353 = vunpack.c.h.b16 %v183
  %v354 = vunpack.c.l.b16 %v184
  %v355 = vunpack.c.h.b16 %v184
  %v356 = vunpack.c.l.b16 %v185
  %v357 = vunpack.c.h.b16 %v185
  %v358 = vunpack.c.l.b16 %v186
  %v359 = vunpack.c.h.b16 %v186
  %v360 = vunpack.c.l.b16 %v187
  %v361 = vunpack.c.l.b16 %v188
  %v362 = vunpack.c.h.b16 %v188
  %v363 = vunpack.c.l.b16 %v189
  %v364 = vunpack.c.h.b16 %v189
  %v365 = vunpack.c.l.b16 %v190
  %v366 = vunpack.c.h.b16 %v190
  %v367 = vunpack.c.l.b16 %v191
  %v368 = vunpack.c.h.b16 %v191
  %v369 = vunpack.c.l.b16 %v192
  %v370 = vunpack.c.h.b16 %v192
  %v371 = vunpack.c.l.b16 %v193
  %v372 = vunpack.c.h.b16 %v193
  %v373 = vunpack.c.l.b16 %v194
  %v374 = vunpack.c.h.b16 %v194
  %v375 = vunpack.c.l.b16 %v195
  %v376 = vunpack.c.h.b16 %v195
  %v377 = vunpack.c.l.b16 %v196
  %v378 = vunpack.c.h.b16 %v196
  %v379 = vunpack.c.l.b16 %v197
  %v380 = vunpack.c.h.b16 %v197
  %v381 = vunpack.c.l.b16 %v198
  %v382 = vunpack.c.h.b16 %v198
  %v383 = vunpack.c.l.b16 %v199
  %v384 = vunpack.c.h.b16 %v199
  %v385 = vunpack.c.l.b16 %v200
  %v386 = vunpack.c.h.b16 %v200
  %v387 = vunpack.c.l.b16 %v201
  %v388 = vunpack.c.h.b16 %v201
  %v389 = vunpack.c.l.b16 %v202
  %v390 = vunpack.c.h.b16 %v202
  %v391 = vunpack.c.l.b16 %v203
  %v392 = vpack.c.b16 %v299, %v268
  %v393 = vpack.c.b16 %v300, %v269
  %v394 = vpack.c.b16 %v301, %v270
  %v395 = vpack.c.b16 %v302, %v271
  %v396 = vpack.c.b16 %v303, %v272
  %v397 = vpack.c.b16 %v304, %v273
  %v398 = vpack.c.b16 %v305, %v274
  %v399 = vpack.c.b16 %v306, %v275
  %v400 = vpack.c.b16 %v307, %v276
  %v401 = vpack.c.b16 %v308, %v277
  %v402 = vpack.c.b16 %v309, %v278
  %v403 = vpack.c.b16 %v310, %v279
  %v404 = vpack.c.b16 %v311, %v280
  %v405 = vpack.c.b16 %v312, %v281
  %v406 = vpack.c.b16 %v313, %v282
  %v407 = vpack.c.b16 %v314, %v283
  %v408 = vpack.c.b16 %v315, %v284
  %v409 = vpack.c.b16 %v316, %v285
  %v410 = vpack.c.b16 %v317, %v286
  %v411 = vpack.c.b16 %v318, %v287
  %v412 = vpack.c.b16 %v319, %v288
  %v413 = vpack.c.b16 %v320, %v289
  %v414 = vpack.c.b16 %v321, %v290
  %v415 = vpack.c.b16 %v322, %v291
  %v416 = vpack.c.b16 %v323, %v292
  %v417 = vpack.c.b16 %v324, %v293
  %v418 = vpack.c.b16 %v325, %v294
  %v419 = vpack.c.b16 %v326, %v295
  %v420 = vpack.c.b16 %v327, %v296
  %v421 = vpack.c.b16 %v328, %v297
  %v422 = vpack.c.b16 %v329, %v298
  %v423 = vpack.c.b16 %v361, %v330
  %v424 = vpack.c.b16 %v362, %v331
  %v425 = vpack.c.b16 %v363, %v332
  %v426 = vpack.c.b16 %v364, %v333
  %v427 = vpack.c.b16 %v365, %v334
  %v428 = vpack.c.b16 %v366, %v335
  %v429 = vpack.c.b16 %v367, %v336
  %v430 = vpack.c.b16 %v368, %v337
  %v431 = vpack.c.b16 %v369, %v338
  %v432 = vpack.c.b16 %v370, %v339
  %v433 = vpack.c.b16 %v371, %v340
  %v434 = vpack.c.b16 %v372, %v341
  %v435 = vpack.c.b16 %v373, %v342
  %v436 = vpack.c.b16 %v374, %v343
  %v437 = vpack.c.b16 %v375, %v344
  %v438 = vpack.c.b16 %v376, %v345
  %v439 = vpack.c.b16 %v377, %v346
  %v440 = vpack.c.b16 %v378, %v347
  %v441 = vpack.c.b16 %v379, %v348
  %v442 = vpack.c.b16 %v380, %v349
  %v443 = vpack.c.b16 %v381, %v350
  %v444 = vpack.c.b16 %v382, %v351
  %v445 = vpack.c.b16 %v383, %v352
  %v446 = vpack.c.b16 %v384, %v353
  %v447 = vpack.c.b16 %v385, %v354
  %v448 = vpack.c.b16 %v386, %v355
  %v449 = vpack.c.b16 %v387, %v356
  %v450 = vpack.c.b16 %v388, %v357
  %v451 = vpack.c.b16 %v389, %v358
  %v452 = vpack.c.b16 %v390, %v359
  %v453 = vpack.c.b16 %v391, %v360
  %vm516 = vcmask 261120
  %v518 = vsel %vm516, %v132, 0
  %v521 = vsel %vm516, %v133, 0
  %v524 = vsel %vm516, %v134, 0
  %v527 = vsel %vm516, %v135, 0
  %v530 = vsel %vm516, %v136, 0
  %v533 = vsel %vm516, %v137, 0
  %v536 = vsel %vm516, %v138, 0
  %v539 = vsel %vm516, %v139, 0
  %541 = vmatprep.subr.bf16.mxu0 0
  %542 = vmatpush1.bf16.msra.mxu0 0
  %543 = vmatprep.subr.bf16.mxu0 0
  %544 = vmatpush1.bf16.msra.mxu0 0
  %545 = vmatprep.subr.bf16.mxu0 0
  %546 = vmatpush1.bf16.msra.mxu0 0
  %547 = vmatprep.subr.bf16.mxu0 0
  %548 = vmatpush1.bf16.msra.mxu0 0
  %549 = vmatprep.subr.bf16.mxu0 0
  %550 = vmatpush1.bf16.msra.mxu0 0
  %551 = vmatprep.subr.bf16.mxu0 0
  %552 = vmatpush1.bf16.msra.mxu0 0
  %553 = vmatprep.subr.bf16.mxu0 %v424
  %554 = vmatpush1.bf16.msra.mxu0 %v423
  %555 = vmatprep.subr.bf16.mxu0 %v393
  %556 = vmatpush1.bf16.msra.mxu0 %v392
  %557 = vmatprep.subr.bf16.mxu0 0
  %558 = vmatpush2.bf16.msra.mxu0 0
  %559 = vmatprep.subr.bf16.mxu0 0
  %560 = vmatpush2.bf16.msra.mxu0 0
  %561 = vmatprep.subr.bf16.mxu0 0
  %562 = vmatpush2.bf16.msra.mxu0 0
  %563 = vmatprep.subr.bf16.mxu0 0
  %564 = vmatpush2.bf16.msra.mxu0 0
  %565 = vmatprep.subr.bf16.mxu0 0
  %566 = vmatpush2.bf16.msra.mxu0 0
  %567 = vmatprep.subr.bf16.mxu0 0
  %568 = vmatpush2.bf16.msra.mxu0 0
  %569 = vmatprep.subr.bf16.mxu0 0
  %570 = vmatpush2.bf16.msra.mxu0 0
  %571 = vmatprep.subr.bf16.mxu0 0
  %572 = vmatpush2.bf16.msra.mxu0 0
  %573 = vmatprep.mubr.bf16.mxu0 0
  %574 = vmatmul.mubr.bf16.gmra.mxu0 %v518
  %v575 = vpop.f32.mrf.mxu0
  %v576 = vadd.f32 0.0, %v575
  %v577 = vpop.f32.mrf.mxu0
  %v578 = vadd.f32 0.0, %v577
  %v579 = vpop.f32.mrf.mxu0
  %v580 = vadd.f32 0.0, %v579
  %v581 = vpop.f32.mrf.mxu0
  %v582 = vadd.f32 0.0, %v581
  %583 = vmatprep.mubr.bf16.mxu0 0
  %584 = vmatmul.mubr.bf16.gmra.mxu0 %v521
  %v585 = vpop.f32.mrf.mxu0
  %v586 = vadd.f32 0.0, %v585
  %v587 = vpop.f32.mrf.mxu0
  %v588 = vadd.f32 0.0, %v587
  %v589 = vpop.f32.mrf.mxu0
  %v590 = vadd.f32 0.0, %v589
  %v591 = vpop.f32.mrf.mxu0
  %v592 = vadd.f32 0.0, %v591
  %593 = vmatprep.mubr.bf16.mxu0 0
  %594 = vmatmul.mubr.bf16.gmra.mxu0 %v524
  %v595 = vpop.f32.mrf.mxu0
  %v596 = vadd.f32 0.0, %v595
  %v597 = vpop.f32.mrf.mxu0
  %v598 = vadd.f32 0.0, %v597
  %v599 = vpop.f32.mrf.mxu0
  %v600 = vadd.f32 0.0, %v599
  %v601 = vpop.f32.mrf.mxu0
  %v602 = vadd.f32 0.0, %v601
  %603 = vmatprep.mubr.bf16.mxu0 0
  %604 = vmatmul.mubr.bf16.gmra.mxu0 %v527
  %v605 = vpop.f32.mrf.mxu0
  %v606 = vadd.f32 0.0, %v605
  %v607 = vpop.f32.mrf.mxu0
  %v608 = vadd.f32 0.0, %v607
  %v609 = vpop.f32.mrf.mxu0
  %v610 = vadd.f32 0.0, %v609
  %v611 = vpop.f32.mrf.mxu0
  %v612 = vadd.f32 0.0, %v611
  %613 = vmatprep.mubr.bf16.mxu0 0
  %614 = vmatmul.mubr.bf16.gmra.mxu0 %v530
  %v615 = vpop.f32.mrf.mxu0
  %v616 = vadd.f32 0.0, %v615
  %v617 = vpop.f32.mrf.mxu0
  %v618 = vadd.f32 0.0, %v617
  %v619 = vpop.f32.mrf.mxu0
  %v620 = vadd.f32 0.0, %v619
  %v621 = vpop.f32.mrf.mxu0
  %v622 = vadd.f32 0.0, %v621
  %623 = vmatprep.mubr.bf16.mxu0 0
  %624 = vmatmul.mubr.bf16.gmra.mxu0 %v533
  %v625 = vpop.f32.mrf.mxu0
  %v626 = vadd.f32 0.0, %v625
  %v627 = vpop.f32.mrf.mxu0
  %v628 = vadd.f32 0.0, %v627
  %v629 = vpop.f32.mrf.mxu0
  %v630 = vadd.f32 0.0, %v629
  %v631 = vpop.f32.mrf.mxu0
  %v632 = vadd.f32 0.0, %v631
  %633 = vmatprep.mubr.bf16.mxu0 0
  %634 = vmatmul.mubr.bf16.gmra.mxu0 %v536
  %v635 = vpop.f32.mrf.mxu0
  %v636 = vadd.f32 0.0, %v635
  %v637 = vpop.f32.mrf.mxu0
  %v638 = vadd.f32 0.0, %v637
  %v639 = vpop.f32.mrf.mxu0
  %v640 = vadd.f32 0.0, %v639
  %v641 = vpop.f32.mrf.mxu0
  %v642 = vadd.f32 0.0, %v641
  %643 = vmatprep.mubr.bf16.mxu0 0
  %644 = vmatmul.mubr.bf16.gmra.mxu0 %v539
  %v645 = vpop.f32.mrf.mxu0
  %v646 = vadd.f32 0.0, %v645
  %v647 = vpop.f32.mrf.mxu0
  %v648 = vadd.f32 0.0, %v647
  %v649 = vpop.f32.mrf.mxu0
  %v650 = vadd.f32 0.0, %v649
  %v651 = vpop.f32.mrf.mxu0
  %v652 = vadd.f32 0.0, %v651
  %653 = vdwg.mxu0
  %654 = vmatprep.subr.bf16.mxu0 0
  %655 = vmatpush1.bf16.msra.mxu0 0
  %656 = vmatprep.subr.bf16.mxu0 0
  %657 = vmatpush1.bf16.msra.mxu0 0
  %658 = vmatprep.subr.bf16.mxu0 0
  %659 = vmatpush1.bf16.msra.mxu0 0
  %660 = vmatprep.subr.bf16.mxu0 0
  %661 = vmatpush1.bf16.msra.mxu0 0
  %662 = vmatprep.subr.bf16.mxu0 0
  %663 = vmatpush1.bf16.msra.mxu0 0
  %664 = vmatprep.subr.bf16.mxu0 0
  %665 = vmatpush1.bf16.msra.mxu0 0
  %666 = vmatprep.subr.bf16.mxu0 %v426
  %667 = vmatpush1.bf16.msra.mxu0 %v425
  %668 = vmatprep.subr.bf16.mxu0 %v395
  %669 = vmatpush1.bf16.msra.mxu0 %v394
  %670 = vmatprep.subr.bf16.mxu0 0
  %671 = vmatpush2.bf16.msra.mxu0 0
  %672 = vmatprep.subr.bf16.mxu0 0
  %673 = vmatpush2.bf16.msra.mxu0 0
  %674 = vmatprep.subr.bf16.mxu0 0
  %675 = vmatpush2.bf16.msra.mxu0 0
  %676 = vmatprep.subr.bf16.mxu0 0
  %677 = vmatpush2.bf16.msra.mxu0 0
  %678 = vmatprep.subr.bf16.mxu0 0
  %679 = vmatpush2.bf16.msra.mxu0 0
  %680 = vmatprep.subr.bf16.mxu0 0
  %681 = vmatpush2.bf16.msra.mxu0 0
  %682 = vmatprep.subr.bf16.mxu0 0
  %683 = vmatpush2.bf16.msra.mxu0 0
  %684 = vmatprep.subr.bf16.mxu0 0
  %685 = vmatpush2.bf16.msra.mxu0 0
  %686 = vmatprep.mubr.bf16.mxu0 0
  %687 = vmatmul.mubr.bf16.gmra.mxu0 %v518
  %v688 = vpop.f32.mrf.mxu0
  %v689 = vadd.f32 0.0, %v688
  %v690 = vpop.f32.mrf.mxu0
  %v691 = vadd.f32 0.0, %v690
  %v692 = vpop.f32.mrf.mxu0
  %v693 = vadd.f32 0.0, %v692
  %v694 = vpop.f32.mrf.mxu0
  %v695 = vadd.f32 0.0, %v694
  %696 = vmatprep.mubr.bf16.mxu0 0
  %697 = vmatmul.mubr.bf16.gmra.mxu0 %v521
  %v698 = vpop.f32.mrf.mxu0
  %v699 = vadd.f32 0.0, %v698
  %v700 = vpop.f32.mrf.mxu0
  %v701 = vadd.f32 0.0, %v700
  %v702 = vpop.f32.mrf.mxu0
  %v703 = vadd.f32 0.0, %v702
  %v704 = vpop.f32.mrf.mxu0
  %v705 = vadd.f32 0.0, %v704
  %706 = vmatprep.mubr.bf16.mxu0 0
  %707 = vmatmul.mubr.bf16.gmra.mxu0 %v524
  %v708 = vpop.f32.mrf.mxu0
  %v709 = vadd.f32 0.0, %v708
  %v710 = vpop.f32.mrf.mxu0
  %v711 = vadd.f32 0.0, %v710
  %v712 = vpop.f32.mrf.mxu0
  %v713 = vadd.f32 0.0, %v712
  %v714 = vpop.f32.mrf.mxu0
  %v715 = vadd.f32 0.0, %v714
  %716 = vmatprep.mubr.bf16.mxu0 0
  %717 = vmatmul.mubr.bf16.gmra.mxu0 %v527
  %v718 = vpop.f32.mrf.mxu0
  %v719 = vadd.f32 0.0, %v718
  %v720 = vpop.f32.mrf.mxu0
  %v721 = vadd.f32 0.0, %v720
  %v722 = vpop.f32.mrf.mxu0
  %v723 = vadd.f32 0.0, %v722
  %v724 = vpop.f32.mrf.mxu0
  %v725 = vadd.f32 0.0, %v724
  %726 = vmatprep.mubr.bf16.mxu0 0
  %727 = vmatmul.mubr.bf16.gmra.mxu0 %v530
  %v728 = vpop.f32.mrf.mxu0
  %v729 = vadd.f32 0.0, %v728
  %v730 = vpop.f32.mrf.mxu0
  %v731 = vadd.f32 0.0, %v730
  %v732 = vpop.f32.mrf.mxu0
  %v733 = vadd.f32 0.0, %v732
  %v734 = vpop.f32.mrf.mxu0
  %v735 = vadd.f32 0.0, %v734
  %736 = vmatprep.mubr.bf16.mxu0 0
  %737 = vmatmul.mubr.bf16.gmra.mxu0 %v533
  %v738 = vpop.f32.mrf.mxu0
  %v739 = vadd.f32 0.0, %v738
  %v740 = vpop.f32.mrf.mxu0
  %v741 = vadd.f32 0.0, %v740
  %v742 = vpop.f32.mrf.mxu0
  %v743 = vadd.f32 0.0, %v742
  %v744 = vpop.f32.mrf.mxu0
  %v745 = vadd.f32 0.0, %v744
  %746 = vmatprep.mubr.bf16.mxu0 0
  %747 = vmatmul.mubr.bf16.gmra.mxu0 %v536
  %v748 = vpop.f32.mrf.mxu0
  %v749 = vadd.f32 0.0, %v748
  %v750 = vpop.f32.mrf.mxu0
  %v751 = vadd.f32 0.0, %v750
  %v752 = vpop.f32.mrf.mxu0
  %v753 = vadd.f32 0.0, %v752
  %v754 = vpop.f32.mrf.mxu0
  %v755 = vadd.f32 0.0, %v754
  %756 = vmatprep.mubr.bf16.mxu0 0
  %757 = vmatmul.mubr.bf16.gmra.mxu0 %v539
  %v758 = vpop.f32.mrf.mxu0
  %v759 = vadd.f32 0.0, %v758
  %v760 = vpop.f32.mrf.mxu0
  %v761 = vadd.f32 0.0, %v760
  %v762 = vpop.f32.mrf.mxu0
  %v763 = vadd.f32 0.0, %v762
  %v764 = vpop.f32.mrf.mxu0
  %v765 = vadd.f32 0.0, %v764
  %766 = vdwg.mxu0
  %767 = vmatprep.subr.bf16.mxu0 0
  %768 = vmatpush1.bf16.msra.mxu0 0
  %769 = vmatprep.subr.bf16.mxu0 0
  %770 = vmatpush1.bf16.msra.mxu0 0
  %771 = vmatprep.subr.bf16.mxu0 0
  %772 = vmatpush1.bf16.msra.mxu0 0
  %773 = vmatprep.subr.bf16.mxu0 0
  %774 = vmatpush1.bf16.msra.mxu0 0
  %775 = vmatprep.subr.bf16.mxu0 0
  %776 = vmatpush1.bf16.msra.mxu0 0
  %777 = vmatprep.subr.bf16.mxu0 0
  %778 = vmatpush1.bf16.msra.mxu0 0
  %779 = vmatprep.subr.bf16.mxu0 %v428
  %780 = vmatpush1.bf16.msra.mxu0 %v427
  %781 = vmatprep.subr.bf16.mxu0 %v397
  %782 = vmatpush1.bf16.msra.mxu0 %v396
  %783 = vmatprep.subr.bf16.mxu0 0
  %784 = vmatpush2.bf16.msra.mxu0 0
  %785 = vmatprep.subr.bf16.mxu0 0
  %786 = vmatpush2.bf16.msra.mxu0 0
  %787 = vmatprep.subr.bf16.mxu0 0
  %788 = vmatpush2.bf16.msra.mxu0 0
  %789 = vmatprep.subr.bf16.mxu0 0
  %790 = vmatpush2.bf16.msra.mxu0 0
  %791 = vmatprep.subr.bf16.mxu0 0
  %792 = vmatpush2.bf16.msra.mxu0 0
  %793 = vmatprep.subr.bf16.mxu0 0
  %794 = vmatpush2.bf16.msra.mxu0 0
  %795 = vmatprep.subr.bf16.mxu0 0
  %796 = vmatpush2.bf16.msra.mxu0 0
  %797 = vmatprep.subr.bf16.mxu0 0
  %798 = vmatpush2.bf16.msra.mxu0 0
  %799 = vmatprep.mubr.bf16.mxu0 0
  %800 = vmatmul.mubr.bf16.gmra.mxu0 %v518
  %v801 = vpop.f32.mrf.mxu0
  %v802 = vadd.f32 0.0, %v801
  %v803 = vpop.f32.mrf.mxu0
  %v804 = vadd.f32 0.0, %v803
  %v805 = vpop.f32.mrf.mxu0
  %v806 = vadd.f32 0.0, %v805
  %v807 = vpop.f32.mrf.mxu0
  %v808 = vadd.f32 0.0, %v807
  %809 = vmatprep.mubr.bf16.mxu0 0
  %810 = vmatmul.mubr.bf16.gmra.mxu0 %v521
  %v811 = vpop.f32.mrf.mxu0
  %v812 = vadd.f32 0.0, %v811
  %v813 = vpop.f32.mrf.mxu0
  %v814 = vadd.f32 0.0, %v813
  %v815 = vpop.f32.mrf.mxu0
  %v816 = vadd.f32 0.0, %v815
  %v817 = vpop.f32.mrf.mxu0
  %v818 = vadd.f32 0.0, %v817
  %819 = vmatprep.mubr.bf16.mxu0 0
  %820 = vmatmul.mubr.bf16.gmra.mxu0 %v524
  %v821 = vpop.f32.mrf.mxu0
  %v822 = vadd.f32 0.0, %v821
  %v823 = vpop.f32.mrf.mxu0
  %v824 = vadd.f32 0.0, %v823
  %v825 = vpop.f32.mrf.mxu0
  %v826 = vadd.f32 0.0, %v825
  %v827 = vpop.f32.mrf.mxu0
  %v828 = vadd.f32 0.0, %v827
  %829 = vmatprep.mubr.bf16.mxu0 0
  %830 = vmatmul.mubr.bf16.gmra.mxu0 %v527
  %v831 = vpop.f32.mrf.mxu0
  %v832 = vadd.f32 0.0, %v831
  %v833 = vpop.f32.mrf.mxu0
  %v834 = vadd.f32 0.0, %v833
  %v835 = vpop.f32.mrf.mxu0
  %v836 = vadd.f32 0.0, %v835
  %v837 = vpop.f32.mrf.mxu0
  %v838 = vadd.f32 0.0, %v837
  %839 = vmatprep.mubr.bf16.mxu0 0
  %840 = vmatmul.mubr.bf16.gmra.mxu0 %v530
  %v841 = vpop.f32.mrf.mxu0
  %v842 = vadd.f32 0.0, %v841
  %v843 = vpop.f32.mrf.mxu0
  %v844 = vadd.f32 0.0, %v843
  %v845 = vpop.f32.mrf.mxu0
  %v846 = vadd.f32 0.0, %v845
  %v847 = vpop.f32.mrf.mxu0
  %v848 = vadd.f32 0.0, %v847
  %849 = vmatprep.mubr.bf16.mxu0 0
  %850 = vmatmul.mubr.bf16.gmra.mxu0 %v533
  %v851 = vpop.f32.mrf.mxu0
  %v852 = vadd.f32 0.0, %v851
  %v853 = vpop.f32.mrf.mxu0
  %v854 = vadd.f32 0.0, %v853
  %v855 = vpop.f32.mrf.mxu0
  %v856 = vadd.f32 0.0, %v855
  %v857 = vpop.f32.mrf.mxu0
  %v858 = vadd.f32 0.0, %v857
  %859 = vmatprep.mubr.bf16.mxu0 0
  %860 = vmatmul.mubr.bf16.gmra.mxu0 %v536
  %v861 = vpop.f32.mrf.mxu0
  %v862 = vadd.f32 0.0, %v861
  %v863 = vpop.f32.mrf.mxu0
  %v864 = vadd.f32 0.0, %v863
  %v865 = vpop.f32.mrf.mxu0
  %v866 = vadd.f32 0.0, %v865
  %v867 = vpop.f32.mrf.mxu0
  %v868 = vadd.f32 0.0, %v867
  %869 = vmatprep.mubr.bf16.mxu0 0
  %870 = vmatmul.mubr.bf16.gmra.mxu0 %v539
  %v871 = vpop.f32.mrf.mxu0
  %v872 = vadd.f32 0.0, %v871
  %v873 = vpop.f32.mrf.mxu0
  %v874 = vadd.f32 0.0, %v873
  %v875 = vpop.f32.mrf.mxu0
  %v876 = vadd.f32 0.0, %v875
  %v877 = vpop.f32.mrf.mxu0
  %v878 = vadd.f32 0.0, %v877
  %879 = vdwg.mxu0
  %880 = vmatprep.subr.bf16.mxu0 0
  %881 = vmatpush1.bf16.msra.mxu0 0
  %882 = vmatprep.subr.bf16.mxu0 0
  %883 = vmatpush1.bf16.msra.mxu0 0
  %884 = vmatprep.subr.bf16.mxu0 0
  %885 = vmatpush1.bf16.msra.mxu0 0
  %886 = vmatprep.subr.bf16.mxu0 0
  %887 = vmatpush1.bf16.msra.mxu0 0
  %888 = vmatprep.subr.bf16.mxu0 0
  %889 = vmatpush1.bf16.msra.mxu0 0
  %890 = vmatprep.subr.bf16.mxu0 0
  %891 = vmatpush1.bf16.msra.mxu0 0
  %892 = vmatprep.subr.bf16.mxu0 %v430
  %893 = vmatpush1.bf16.msra.mxu0 %v429
  %894 = vmatprep.subr.bf16.mxu0 %v399
  %895 = vmatpush1.bf16.msra.mxu0 %v398
  %896 = vmatprep.subr.bf16.mxu0 0
  %897 = vmatpush2.bf16.msra.mxu0 0
  %898 = vmatprep.subr.bf16.mxu0 0
  %899 = vmatpush2.bf16.msra.mxu0 0
  %900 = vmatprep.subr.bf16.mxu0 0
  %901 = vmatpush2.bf16.msra.mxu0 0
  %902 = vmatprep.subr.bf16.mxu0 0
  %903 = vmatpush2.bf16.msra.mxu0 0
  %904 = vmatprep.subr.bf16.mxu0 0
  %905 = vmatpush2.bf16.msra.mxu0 0
  %906 = vmatprep.subr.bf16.mxu0 0
  %907 = vmatpush2.bf16.msra.mxu0 0
  %908 = vmatprep.subr.bf16.mxu0 0
  %909 = vmatpush2.bf16.msra.mxu0 0
  %910 = vmatprep.subr.bf16.mxu0 0
  %911 = vmatpush2.bf16.msra.mxu0 0
  %912 = vmatprep.mubr.bf16.mxu0 0
  %913 = vmatmul.mubr.bf16.gmra.mxu0 %v518
  %v914 = vpop.f32.mrf.mxu0
  %v915 = vadd.f32 0.0, %v914
  %v916 = vpop.f32.mrf.mxu0
  %v917 = vadd.f32 0.0, %v916
  %v918 = vpop.f32.mrf.mxu0
  %v919 = vadd.f32 0.0, %v918
  %v920 = vpop.f32.mrf.mxu0
  %v921 = vadd.f32 0.0, %v920
  %922 = vmatprep.mubr.bf16.mxu0 0
  %923 = vmatmul.mubr.bf16.gmra.mxu0 %v521
  %v924 = vpop.f32.mrf.mxu0
  %v925 = vadd.f32 0.0, %v924
  %v926 = vpop.f32.mrf.mxu0
  %v927 = vadd.f32 0.0, %v926
  %v928 = vpop.f32.mrf.mxu0
  %v929 = vadd.f32 0.0, %v928
  %v930 = vpop.f32.mrf.mxu0
  %v931 = vadd.f32 0.0, %v930
  %932 = vmatprep.mubr.bf16.mxu0 0
  %933 = vmatmul.mubr.bf16.gmra.mxu0 %v524
  %v934 = vpop.f32.mrf.mxu0
  %v935 = vadd.f32 0.0, %v934
  %v936 = vpop.f32.mrf.mxu0
  %v937 = vadd.f32 0.0, %v936
  %v938 = vpop.f32.mrf.mxu0
  %v939 = vadd.f32 0.0, %v938
  %v940 = vpop.f32.mrf.mxu0
  %v941 = vadd.f32 0.0, %v940
  %942 = vmatprep.mubr.bf16.mxu0 0
  %943 = vmatmul.mubr.bf16.gmra.mxu0 %v527
  %v944 = vpop.f32.mrf.mxu0
  %v945 = vadd.f32 0.0, %v944
  %v946 = vpop.f32.mrf.mxu0
  %v947 = vadd.f32 0.0, %v946
  %v948 = vpop.f32.mrf.mxu0
  %v949 = vadd.f32 0.0, %v948
  %v950 = vpop.f32.mrf.mxu0
  %v951 = vadd.f32 0.0, %v950
  %952 = vmatprep.mubr.bf16.mxu0 0
  %953 = vmatmul.mubr.bf16.gmra.mxu0 %v530
  %v954 = vpop.f32.mrf.mxu0
  %v955 = vadd.f32 0.0, %v954
  %v956 = vpop.f32.mrf.mxu0
  %v957 = vadd.f32 0.0, %v956
  %v958 = vpop.f32.mrf.mxu0
  %v959 = vadd.f32 0.0, %v958
  %v960 = vpop.f32.mrf.mxu0
  %v961 = vadd.f32 0.0, %v960
  %962 = vmatprep.mubr.bf16.mxu0 0
  %963 = vmatmul.mubr.bf16.gmra.mxu0 %v533
  %v964 = vpop.f32.mrf.mxu0
  %v965 = vadd.f32 0.0, %v964
  %v966 = vpop.f32.mrf.mxu0
  %v967 = vadd.f32 0.0, %v966
  %v968 = vpop.f32.mrf.mxu0
  %v969 = vadd.f32 0.0, %v968
  %v970 = vpop.f32.mrf.mxu0
  %v971 = vadd.f32 0.0, %v970
  %972 = vmatprep.mubr.bf16.mxu0 0
  %973 = vmatmul.mubr.bf16.gmra.mxu0 %v536
  %v974 = vpop.f32.mrf.mxu0
  %v975 = vadd.f32 0.0, %v974
  %v976 = vpop.f32.mrf.mxu0
  %v977 = vadd.f32 0.0, %v976
  %v978 = vpop.f32.mrf.mxu0
  %v979 = vadd.f32 0.0, %v978
  %v980 = vpop.f32.mrf.mxu0
  %v981 = vadd.f32 0.0, %v980
  %982 = vmatprep.mubr.bf16.mxu0 0
  %983 = vmatmul.mubr.bf16.gmra.mxu0 %v539
  %v984 = vpop.f32.mrf.mxu0
  %v985 = vadd.f32 0.0, %v984
  %v986 = vpop.f32.mrf.mxu0
  %v987 = vadd.f32 0.0, %v986
  %v988 = vpop.f32.mrf.mxu0
  %v989 = vadd.f32 0.0, %v988
  %v990 = vpop.f32.mrf.mxu0
  %v991 = vadd.f32 0.0, %v990
  %992 = vdwg.mxu0
  %993 = vmatprep.subr.bf16.mxu0 0
  %994 = vmatpush1.bf16.msra.mxu0 0
  %995 = vmatprep.subr.bf16.mxu0 0
  %996 = vmatpush1.bf16.msra.mxu0 0
  %997 = vmatprep.subr.bf16.mxu0 0
  %998 = vmatpush1.bf16.msra.mxu0 0
  %999 = vmatprep.subr.bf16.mxu0 0
  %1000 = vmatpush1.bf16.msra.mxu0 0
  %1001 = vmatprep.subr.bf16.mxu0 0
  %1002 = vmatpush1.bf16.msra.mxu0 0
  %1003 = vmatprep.subr.bf16.mxu0 0
  %1004 = vmatpush1.bf16.msra.mxu0 0
  %1005 = vmatprep.subr.bf16.mxu0 %v432
  %1006 = vmatpush1.bf16.msra.mxu0 %v431
  %1007 = vmatprep.subr.bf16.mxu0 %v401
  %1008 = vmatpush1.bf16.msra.mxu0 %v400
  %1009 = vmatprep.subr.bf16.mxu0 0
  %1010 = vmatpush2.bf16.msra.mxu0 0
  %1011 = vmatprep.subr.bf16.mxu0 0
  %1012 = vmatpush2.bf16.msra.mxu0 0
  %1013 = vmatprep.subr.bf16.mxu0 0
  %1014 = vmatpush2.bf16.msra.mxu0 0
  %1015 = vmatprep.subr.bf16.mxu0 0
  %1016 = vmatpush2.bf16.msra.mxu0 0
  %1017 = vmatprep.subr.bf16.mxu0 0
  %1018 = vmatpush2.bf16.msra.mxu0 0
  %1019 = vmatprep.subr.bf16.mxu0 0
  %1020 = vmatpush2.bf16.msra.mxu0 0
  %1021 = vmatprep.subr.bf16.mxu0 0
  %1022 = vmatpush2.bf16.msra.mxu0 0
  %1023 = vmatprep.subr.bf16.mxu0 0
  %1024 = vmatpush2.bf16.msra.mxu0 0
  %1025 = vmatprep.mubr.bf16.mxu0 0
  %1026 = vmatmul.mubr.bf16.gmra.mxu0 %v518
  %v1027 = vpop.f32.mrf.mxu0
  %v1028 = vadd.f32 0.0, %v1027
  %v1029 = vpop.f32.mrf.mxu0
  %v1030 = vadd.f32 0.0, %v1029
  %v1031 = vpop.f32.mrf.mxu0
  %v1032 = vadd.f32 0.0, %v1031
  %v1033 = vpop.f32.mrf.mxu0
  %v1034 = vadd.f32 0.0, %v1033
  %1035 = vmatprep.mubr.bf16.mxu0 0
  %1036 = vmatmul.mubr.bf16.gmra.mxu0 %v521
  %v1037 = vpop.f32.mrf.mxu0
  %v1038 = vadd.f32 0.0, %v1037
  %v1039 = vpop.f32.mrf.mxu0
  %v1040 = vadd.f32 0.0, %v1039
  %v1041 = vpop.f32.mrf.mxu0
  %v1042 = vadd.f32 0.0, %v1041
  %v1043 = vpop.f32.mrf.mxu0
  %v1044 = vadd.f32 0.0, %v1043
  %1045 = vmatprep.mubr.bf16.mxu0 0
  %1046 = vmatmul.mubr.bf16.gmra.mxu0 %v524
  %v1047 = vpop.f32.mrf.mxu0
  %v1048 = vadd.f32 0.0, %v1047
  %v1049 = vpop.f32.mrf.mxu0
  %v1050 = vadd.f32 0.0, %v1049
  %v1051 = vpop.f32.mrf.mxu0
  %v1052 = vadd.f32 0.0, %v1051
  %v1053 = vpop.f32.mrf.mxu0
  %v1054 = vadd.f32 0.0, %v1053
  %1055 = vmatprep.mubr.bf16.mxu0 0
  %1056 = vmatmul.mubr.bf16.gmra.mxu0 %v527
  %v1057 = vpop.f32.mrf.mxu0
  %v1058 = vadd.f32 0.0, %v1057
  %v1059 = vpop.f32.mrf.mxu0
  %v1060 = vadd.f32 0.0, %v1059
  %v1061 = vpop.f32.mrf.mxu0
  %v1062 = vadd.f32 0.0, %v1061
  %v1063 = vpop.f32.mrf.mxu0
  %v1064 = vadd.f32 0.0, %v1063
  %1065 = vmatprep.mubr.bf16.mxu0 0
  %1066 = vmatmul.mubr.bf16.gmra.mxu0 %v530
  %v1067 = vpop.f32.mrf.mxu0
  %v1068 = vadd.f32 0.0, %v1067
  %v1069 = vpop.f32.mrf.mxu0
  %v1070 = vadd.f32 0.0, %v1069
  %v1071 = vpop.f32.mrf.mxu0
  %v1072 = vadd.f32 0.0, %v1071
  %v1073 = vpop.f32.mrf.mxu0
  %v1074 = vadd.f32 0.0, %v1073
  %1075 = vmatprep.mubr.bf16.mxu0 0
  %1076 = vmatmul.mubr.bf16.gmra.mxu0 %v533
  %v1077 = vpop.f32.mrf.mxu0
  %v1078 = vadd.f32 0.0, %v1077
  %v1079 = vpop.f32.mrf.mxu0
  %v1080 = vadd.f32 0.0, %v1079
  %v1081 = vpop.f32.mrf.mxu0
  %v1082 = vadd.f32 0.0, %v1081
  %v1083 = vpop.f32.mrf.mxu0
  %v1084 = vadd.f32 0.0, %v1083
  %1085 = vmatprep.mubr.bf16.mxu0 0
  %1086 = vmatmul.mubr.bf16.gmra.mxu0 %v536
  %v1087 = vpop.f32.mrf.mxu0
  %v1088 = vadd.f32 0.0, %v1087
  %v1089 = vpop.f32.mrf.mxu0
  %v1090 = vadd.f32 0.0, %v1089
  %v1091 = vpop.f32.mrf.mxu0
  %v1092 = vadd.f32 0.0, %v1091
  %v1093 = vpop.f32.mrf.mxu0
  %v1094 = vadd.f32 0.0, %v1093
  %1095 = vmatprep.mubr.bf16.mxu0 0
  %1096 = vmatmul.mubr.bf16.gmra.mxu0 %v539
  %v1097 = vpop.f32.mrf.mxu0
  %v1098 = vadd.f32 0.0, %v1097
  %v1099 = vpop.f32.mrf.mxu0
  %v1100 = vadd.f32 0.0, %v1099
  %v1101 = vpop.f32.mrf.mxu0
  %v1102 = vadd.f32 0.0, %v1101
  %v1103 = vpop.f32.mrf.mxu0
  %v1104 = vadd.f32 0.0, %v1103
  %1105 = vdwg.mxu0
  %1106 = vmatprep.subr.bf16.mxu0 0
  %1107 = vmatpush1.bf16.msra.mxu0 0
  %1108 = vmatprep.subr.bf16.mxu0 0
  %1109 = vmatpush1.bf16.msra.mxu0 0
  %1110 = vmatprep.subr.bf16.mxu0 0
  %1111 = vmatpush1.bf16.msra.mxu0 0
  %1112 = vmatprep.subr.bf16.mxu0 0
  %1113 = vmatpush1.bf16.msra.mxu0 0
  %1114 = vmatprep.subr.bf16.mxu0 0
  %1115 = vmatpush1.bf16.msra.mxu0 0
  %1116 = vmatprep.subr.bf16.mxu0 0
  %1117 = vmatpush1.bf16.msra.mxu0 0
  %1118 = vmatprep.subr.bf16.mxu0 %v434
  %1119 = vmatpush1.bf16.msra.mxu0 %v433
  %1120 = vmatprep.subr.bf16.mxu0 %v403
  %1121 = vmatpush1.bf16.msra.mxu0 %v402
  %1122 = vmatprep.subr.bf16.mxu0 0
  %1123 = vmatpush2.bf16.msra.mxu0 0
  %1124 = vmatprep.subr.bf16.mxu0 0
  %1125 = vmatpush2.bf16.msra.mxu0 0
  %1126 = vmatprep.subr.bf16.mxu0 0
  %1127 = vmatpush2.bf16.msra.mxu0 0
  %1128 = vmatprep.subr.bf16.mxu0 0
  %1129 = vmatpush2.bf16.msra.mxu0 0
  %1130 = vmatprep.subr.bf16.mxu0 0
  %1131 = vmatpush2.bf16.msra.mxu0 0
  %1132 = vmatprep.subr.bf16.mxu0 0
  %1133 = vmatpush2.bf16.msra.mxu0 0
  %1134 = vmatprep.subr.bf16.mxu0 0
  %1135 = vmatpush2.bf16.msra.mxu0 0
  %1136 = vmatprep.subr.bf16.mxu0 0
  %1137 = vmatpush2.bf16.msra.mxu0 0
  %1138 = vmatprep.mubr.bf16.mxu0 0
  %1139 = vmatmul.mubr.bf16.gmra.mxu0 %v518
  %v1140 = vpop.f32.mrf.mxu0
  %v1141 = vadd.f32 0.0, %v1140
  %v1142 = vpop.f32.mrf.mxu0
  %v1143 = vadd.f32 0.0, %v1142
  %v1144 = vpop.f32.mrf.mxu0
  %v1145 = vadd.f32 0.0, %v1144
  %v1146 = vpop.f32.mrf.mxu0
  %v1147 = vadd.f32 0.0, %v1146
  %1148 = vmatprep.mubr.bf16.mxu0 0
  %1149 = vmatmul.mubr.bf16.gmra.mxu0 %v521
  %v1150 = vpop.f32.mrf.mxu0
  %v1151 = vadd.f32 0.0, %v1150
  %v1152 = vpop.f32.mrf.mxu0
  %v1153 = vadd.f32 0.0, %v1152
  %v1154 = vpop.f32.mrf.mxu0
  %v1155 = vadd.f32 0.0, %v1154
  %v1156 = vpop.f32.mrf.mxu0
  %v1157 = vadd.f32 0.0, %v1156
  %1158 = vmatprep.mubr.bf16.mxu0 0
  %1159 = vmatmul.mubr.bf16.gmra.mxu0 %v524
  %v1160 = vpop.f32.mrf.mxu0
  %v1161 = vadd.f32 0.0, %v1160
  %v1162 = vpop.f32.mrf.mxu0
  %v1163 = vadd.f32 0.0, %v1162
  %v1164 = vpop.f32.mrf.mxu0
  %v1165 = vadd.f32 0.0, %v1164
  %v1166 = vpop.f32.mrf.mxu0
  %v1167 = vadd.f32 0.0, %v1166
  %1168 = vmatprep.mubr.bf16.mxu0 0
  %1169 = vmatmul.mubr.bf16.gmra.mxu0 %v527
  %v1170 = vpop.f32.mrf.mxu0
  %v1171 = vadd.f32 0.0, %v1170
  %v1172 = vpop.f32.mrf.mxu0
  %v1173 = vadd.f32 0.0, %v1172
  %v1174 = vpop.f32.mrf.mxu0
  %v1175 = vadd.f32 0.0, %v1174
  %v1176 = vpop.f32.mrf.mxu0
  %v1177 = vadd.f32 0.0, %v1176
  %1178 = vmatprep.mubr.bf16.mxu0 0
  %1179 = vmatmul.mubr.bf16.gmra.mxu0 %v530
  %v1180 = vpop.f32.mrf.mxu0
  %v1181 = vadd.f32 0.0, %v1180
  %v1182 = vpop.f32.mrf.mxu0
  %v1183 = vadd.f32 0.0, %v1182
  %v1184 = vpop.f32.mrf.mxu0
  %v1185 = vadd.f32 0.0, %v1184
  %v1186 = vpop.f32.mrf.mxu0
  %v1187 = vadd.f32 0.0, %v1186
  %1188 = vmatprep.mubr.bf16.mxu0 0
  %1189 = vmatmul.mubr.bf16.gmra.mxu0 %v533
  %v1190 = vpop.f32.mrf.mxu0
  %v1191 = vadd.f32 0.0, %v1190
  %v1192 = vpop.f32.mrf.mxu0
  %v1193 = vadd.f32 0.0, %v1192
  %v1194 = vpop.f32.mrf.mxu0
  %v1195 = vadd.f32 0.0, %v1194
  %v1196 = vpop.f32.mrf.mxu0
  %v1197 = vadd.f32 0.0, %v1196
  %1198 = vmatprep.mubr.bf16.mxu0 0
  %1199 = vmatmul.mubr.bf16.gmra.mxu0 %v536
  %v1200 = vpop.f32.mrf.mxu0
  %v1201 = vadd.f32 0.0, %v1200
  %v1202 = vpop.f32.mrf.mxu0
  %v1203 = vadd.f32 0.0, %v1202
  %v1204 = vpop.f32.mrf.mxu0
  %v1205 = vadd.f32 0.0, %v1204
  %v1206 = vpop.f32.mrf.mxu0
  %v1207 = vadd.f32 0.0, %v1206
  %1208 = vmatprep.mubr.bf16.mxu0 0
  %1209 = vmatmul.mubr.bf16.gmra.mxu0 %v539
  %v1210 = vpop.f32.mrf.mxu0
  %v1211 = vadd.f32 0.0, %v1210
  %v1212 = vpop.f32.mrf.mxu0
  %v1213 = vadd.f32 0.0, %v1212
  %v1214 = vpop.f32.mrf.mxu0
  %v1215 = vadd.f32 0.0, %v1214
  %v1216 = vpop.f32.mrf.mxu0
  %v1217 = vadd.f32 0.0, %v1216
  %1218 = vdwg.mxu0
  %1219 = vmatprep.subr.bf16.mxu0 0
  %1220 = vmatpush1.bf16.msra.mxu0 0
  %1221 = vmatprep.subr.bf16.mxu0 0
  %1222 = vmatpush1.bf16.msra.mxu0 0
  %1223 = vmatprep.subr.bf16.mxu0 0
  %1224 = vmatpush1.bf16.msra.mxu0 0
  %1225 = vmatprep.subr.bf16.mxu0 0
  %1226 = vmatpush1.bf16.msra.mxu0 0
  %1227 = vmatprep.subr.bf16.mxu0 0
  %1228 = vmatpush1.bf16.msra.mxu0 0
  %1229 = vmatprep.subr.bf16.mxu0 0
  %1230 = vmatpush1.bf16.msra.mxu0 0
  %1231 = vmatprep.subr.bf16.mxu0 %v436
  %1232 = vmatpush1.bf16.msra.mxu0 %v435
  %1233 = vmatprep.subr.bf16.mxu0 %v405
  %1234 = vmatpush1.bf16.msra.mxu0 %v404
  %1235 = vmatprep.subr.bf16.mxu0 0
  %1236 = vmatpush2.bf16.msra.mxu0 0
  %1237 = vmatprep.subr.bf16.mxu0 0
  %1238 = vmatpush2.bf16.msra.mxu0 0
  %1239 = vmatprep.subr.bf16.mxu0 0
  %1240 = vmatpush2.bf16.msra.mxu0 0
  %1241 = vmatprep.subr.bf16.mxu0 0
  %1242 = vmatpush2.bf16.msra.mxu0 0
  %1243 = vmatprep.subr.bf16.mxu0 0
  %1244 = vmatpush2.bf16.msra.mxu0 0
  %1245 = vmatprep.subr.bf16.mxu0 0
  %1246 = vmatpush2.bf16.msra.mxu0 0
  %1247 = vmatprep.subr.bf16.mxu0 0
  %1248 = vmatpush2.bf16.msra.mxu0 0
  %1249 = vmatprep.subr.bf16.mxu0 0
  %1250 = vmatpush2.bf16.msra.mxu0 0
  %1251 = vmatprep.mubr.bf16.mxu0 0
  %1252 = vmatmul.mubr.bf16.gmra.mxu0 %v518
  %v1253 = vpop.f32.mrf.mxu0
  %v1254 = vadd.f32 0.0, %v1253
  %v1255 = vpop.f32.mrf.mxu0
  %v1256 = vadd.f32 0.0, %v1255
  %v1257 = vpop.f32.mrf.mxu0
  %v1258 = vadd.f32 0.0, %v1257
  %v1259 = vpop.f32.mrf.mxu0
  %v1260 = vadd.f32 0.0, %v1259
  %1261 = vmatprep.mubr.bf16.mxu0 0
  %1262 = vmatmul.mubr.bf16.gmra.mxu0 %v521
  %v1263 = vpop.f32.mrf.mxu0
  %v1264 = vadd.f32 0.0, %v1263
  %v1265 = vpop.f32.mrf.mxu0
  %v1266 = vadd.f32 0.0, %v1265
  %v1267 = vpop.f32.mrf.mxu0
  %v1268 = vadd.f32 0.0, %v1267
  %v1269 = vpop.f32.mrf.mxu0
  %v1270 = vadd.f32 0.0, %v1269
  %1271 = vmatprep.mubr.bf16.mxu0 0
  %1272 = vmatmul.mubr.bf16.gmra.mxu0 %v524
  %v1273 = vpop.f32.mrf.mxu0
  %v1274 = vadd.f32 0.0, %v1273
  %v1275 = vpop.f32.mrf.mxu0
  %v1276 = vadd.f32 0.0, %v1275
  %v1277 = vpop.f32.mrf.mxu0
  %v1278 = vadd.f32 0.0, %v1277
  %v1279 = vpop.f32.mrf.mxu0
  %v1280 = vadd.f32 0.0, %v1279
  %1281 = vmatprep.mubr.bf16.mxu0 0
  %1282 = vmatmul.mubr.bf16.gmra.mxu0 %v527
  %v1283 = vpop.f32.mrf.mxu0
  %v1284 = vadd.f32 0.0, %v1283
  %v1285 = vpop.f32.mrf.mxu0
  %v1286 = vadd.f32 0.0, %v1285
  %v1287 = vpop.f32.mrf.mxu0
  %v1288 = vadd.f32 0.0, %v1287
  %v1289 = vpop.f32.mrf.mxu0
  %v1290 = vadd.f32 0.0, %v1289
  %1291 = vmatprep.mubr.bf16.mxu0 0
  %1292 = vmatmul.mubr.bf16.gmra.mxu0 %v530
  %v1293 = vpop.f32.mrf.mxu0
  %v1294 = vadd.f32 0.0, %v1293
  %v1295 = vpop.f32.mrf.mxu0
  %v1296 = vadd.f32 0.0, %v1295
  %v1297 = vpop.f32.mrf.mxu0
  %v1298 = vadd.f32 0.0, %v1297
  %v1299 = vpop.f32.mrf.mxu0
  %v1300 = vadd.f32 0.0, %v1299
  %1301 = vmatprep.mubr.bf16.mxu0 0
  %1302 = vmatmul.mubr.bf16.gmra.mxu0 %v533
  %v1303 = vpop.f32.mrf.mxu0
  %v1304 = vadd.f32 0.0, %v1303
  %v1305 = vpop.f32.mrf.mxu0
  %v1306 = vadd.f32 0.0, %v1305
  %v1307 = vpop.f32.mrf.mxu0
  %v1308 = vadd.f32 0.0, %v1307
  %v1309 = vpop.f32.mrf.mxu0
  %v1310 = vadd.f32 0.0, %v1309
  %1311 = vmatprep.mubr.bf16.mxu0 0
  %1312 = vmatmul.mubr.bf16.gmra.mxu0 %v536
  %v1313 = vpop.f32.mrf.mxu0
  %v1314 = vadd.f32 0.0, %v1313
  %v1315 = vpop.f32.mrf.mxu0
  %v1316 = vadd.f32 0.0, %v1315
  %v1317 = vpop.f32.mrf.mxu0
  %v1318 = vadd.f32 0.0, %v1317
  %v1319 = vpop.f32.mrf.mxu0
  %v1320 = vadd.f32 0.0, %v1319
  %1321 = vmatprep.mubr.bf16.mxu0 0
  %1322 = vmatmul.mubr.bf16.gmra.mxu0 %v539
  %v1323 = vpop.f32.mrf.mxu0
  %v1324 = vadd.f32 0.0, %v1323
  %v1325 = vpop.f32.mrf.mxu0
  %v1326 = vadd.f32 0.0, %v1325
  %v1327 = vpop.f32.mrf.mxu0
  %v1328 = vadd.f32 0.0, %v1327
  %v1329 = vpop.f32.mrf.mxu0
  %v1330 = vadd.f32 0.0, %v1329
  %1331 = vdwg.mxu0
  %1332 = vmatprep.subr.bf16.mxu0 0
  %1333 = vmatpush1.bf16.msra.mxu0 0
  %1334 = vmatprep.subr.bf16.mxu0 0
  %1335 = vmatpush1.bf16.msra.mxu0 0
  %1336 = vmatprep.subr.bf16.mxu0 0
  %1337 = vmatpush1.bf16.msra.mxu0 0
  %1338 = vmatprep.subr.bf16.mxu0 0
  %1339 = vmatpush1.bf16.msra.mxu0 0
  %1340 = vmatprep.subr.bf16.mxu0 0
  %1341 = vmatpush1.bf16.msra.mxu0 0
  %1342 = vmatprep.subr.bf16.mxu0 0
  %1343 = vmatpush1.bf16.msra.mxu0 0
  %1344 = vmatprep.subr.bf16.mxu0 %v438
  %1345 = vmatpush1.bf16.msra.mxu0 %v437
  %1346 = vmatprep.subr.bf16.mxu0 %v407
  %1347 = vmatpush1.bf16.msra.mxu0 %v406
  %1348 = vmatprep.subr.bf16.mxu0 0
  %1349 = vmatpush2.bf16.msra.mxu0 0
  %1350 = vmatprep.subr.bf16.mxu0 0
  %1351 = vmatpush2.bf16.msra.mxu0 0
  %1352 = vmatprep.subr.bf16.mxu0 0
  %1353 = vmatpush2.bf16.msra.mxu0 0
  %1354 = vmatprep.subr.bf16.mxu0 0
  %1355 = vmatpush2.bf16.msra.mxu0 0
  %1356 = vmatprep.subr.bf16.mxu0 0
  %1357 = vmatpush2.bf16.msra.mxu0 0
  %1358 = vmatprep.subr.bf16.mxu0 0
  %1359 = vmatpush2.bf16.msra.mxu0 0
  %1360 = vmatprep.subr.bf16.mxu0 0
  %1361 = vmatpush2.bf16.msra.mxu0 0
  %1362 = vmatprep.subr.bf16.mxu0 0
  %1363 = vmatpush2.bf16.msra.mxu0 0
  %1364 = vmatprep.mubr.bf16.mxu0 0
  %1365 = vmatmul.mubr.bf16.gmra.mxu0 %v518
  %v1366 = vpop.f32.mrf.mxu0
  %v1367 = vadd.f32 0.0, %v1366
  %v1368 = vpop.f32.mrf.mxu0
  %v1369 = vadd.f32 0.0, %v1368
  %v1370 = vpop.f32.mrf.mxu0
  %v1371 = vadd.f32 0.0, %v1370
  %v1372 = vpop.f32.mrf.mxu0
  %v1373 = vadd.f32 0.0, %v1372
  %1374 = vmatprep.mubr.bf16.mxu0 0
  %1375 = vmatmul.mubr.bf16.gmra.mxu0 %v521
  %v1376 = vpop.f32.mrf.mxu0
  %v1377 = vadd.f32 0.0, %v1376
  %v1378 = vpop.f32.mrf.mxu0
  %v1379 = vadd.f32 0.0, %v1378
  %v1380 = vpop.f32.mrf.mxu0
  %v1381 = vadd.f32 0.0, %v1380
  %v1382 = vpop.f32.mrf.mxu0
  %v1383 = vadd.f32 0.0, %v1382
  %1384 = vmatprep.mubr.bf16.mxu0 0
  %1385 = vmatmul.mubr.bf16.gmra.mxu0 %v524
  %v1386 = vpop.f32.mrf.mxu0
  %v1387 = vadd.f32 0.0, %v1386
  %v1388 = vpop.f32.mrf.mxu0
  %v1389 = vadd.f32 0.0, %v1388
  %v1390 = vpop.f32.mrf.mxu0
  %v1391 = vadd.f32 0.0, %v1390
  %v1392 = vpop.f32.mrf.mxu0
  %v1393 = vadd.f32 0.0, %v1392
  %1394 = vmatprep.mubr.bf16.mxu0 0
  %1395 = vmatmul.mubr.bf16.gmra.mxu0 %v527
  %v1396 = vpop.f32.mrf.mxu0
  %v1397 = vadd.f32 0.0, %v1396
  %v1398 = vpop.f32.mrf.mxu0
  %v1399 = vadd.f32 0.0, %v1398
  %v1400 = vpop.f32.mrf.mxu0
  %v1401 = vadd.f32 0.0, %v1400
  %v1402 = vpop.f32.mrf.mxu0
  %v1403 = vadd.f32 0.0, %v1402
  %1404 = vmatprep.mubr.bf16.mxu0 0
  %1405 = vmatmul.mubr.bf16.gmra.mxu0 %v530
  %v1406 = vpop.f32.mrf.mxu0
  %v1407 = vadd.f32 0.0, %v1406
  %v1408 = vpop.f32.mrf.mxu0
  %v1409 = vadd.f32 0.0, %v1408
  %v1410 = vpop.f32.mrf.mxu0
  %v1411 = vadd.f32 0.0, %v1410
  %v1412 = vpop.f32.mrf.mxu0
  %v1413 = vadd.f32 0.0, %v1412
  %1414 = vmatprep.mubr.bf16.mxu0 0
  %1415 = vmatmul.mubr.bf16.gmra.mxu0 %v533
  %v1416 = vpop.f32.mrf.mxu0
  %v1417 = vadd.f32 0.0, %v1416
  %v1418 = vpop.f32.mrf.mxu0
  %v1419 = vadd.f32 0.0, %v1418
  %v1420 = vpop.f32.mrf.mxu0
  %v1421 = vadd.f32 0.0, %v1420
  %v1422 = vpop.f32.mrf.mxu0
  %v1423 = vadd.f32 0.0, %v1422
  %1424 = vmatprep.mubr.bf16.mxu0 0
  %1425 = vmatmul.mubr.bf16.gmra.mxu0 %v536
  %v1426 = vpop.f32.mrf.mxu0
  %v1427 = vadd.f32 0.0, %v1426
  %v1428 = vpop.f32.mrf.mxu0
  %v1429 = vadd.f32 0.0, %v1428
  %v1430 = vpop.f32.mrf.mxu0
  %v1431 = vadd.f32 0.0, %v1430
  %v1432 = vpop.f32.mrf.mxu0
  %v1433 = vadd.f32 0.0, %v1432
  %1434 = vmatprep.mubr.bf16.mxu0 0
  %1435 = vmatmul.mubr.bf16.gmra.mxu0 %v539
  %v1436 = vpop.f32.mrf.mxu0
  %v1437 = vadd.f32 0.0, %v1436
  %v1438 = vpop.f32.mrf.mxu0
  %v1439 = vadd.f32 0.0, %v1438
  %v1440 = vpop.f32.mrf.mxu0
  %v1441 = vadd.f32 0.0, %v1440
  %v1442 = vpop.f32.mrf.mxu0
  %v1443 = vadd.f32 0.0, %v1442
  %1444 = vdwg.mxu0
  %1445 = vmatprep.subr.bf16.mxu0 0
  %1446 = vmatpush1.bf16.msra.mxu0 0
  %1447 = vmatprep.subr.bf16.mxu0 0
  %1448 = vmatpush1.bf16.msra.mxu0 0
  %1449 = vmatprep.subr.bf16.mxu0 0
  %1450 = vmatpush1.bf16.msra.mxu0 0
  %1451 = vmatprep.subr.bf16.mxu0 0
  %1452 = vmatpush1.bf16.msra.mxu0 0
  %1453 = vmatprep.subr.bf16.mxu0 0
  %1454 = vmatpush1.bf16.msra.mxu0 0
  %1455 = vmatprep.subr.bf16.mxu0 0
  %1456 = vmatpush1.bf16.msra.mxu0 0
  %1457 = vmatprep.subr.bf16.mxu0 %v440
  %1458 = vmatpush1.bf16.msra.mxu0 %v439
  %1459 = vmatprep.subr.bf16.mxu0 %v409
  %1460 = vmatpush1.bf16.msra.mxu0 %v408
  %1461 = vmatprep.subr.bf16.mxu0 0
  %1462 = vmatpush2.bf16.msra.mxu0 0
  %1463 = vmatprep.subr.bf16.mxu0 0
  %1464 = vmatpush2.bf16.msra.mxu0 0
  %1465 = vmatprep.subr.bf16.mxu0 0
  %1466 = vmatpush2.bf16.msra.mxu0 0
  %1467 = vmatprep.subr.bf16.mxu0 0
  %1468 = vmatpush2.bf16.msra.mxu0 0
  %1469 = vmatprep.subr.bf16.mxu0 0
  %1470 = vmatpush2.bf16.msra.mxu0 0
  %1471 = vmatprep.subr.bf16.mxu0 0
  %1472 = vmatpush2.bf16.msra.mxu0 0
  %1473 = vmatprep.subr.bf16.mxu0 0
  %1474 = vmatpush2.bf16.msra.mxu0 0
  %1475 = vmatprep.subr.bf16.mxu0 0
  %1476 = vmatpush2.bf16.msra.mxu0 0
  %1477 = vmatprep.mubr.bf16.mxu0 0
  %1478 = vmatmul.mubr.bf16.gmra.mxu0 %v518
  %v1479 = vpop.f32.mrf.mxu0
  %v1480 = vadd.f32 0.0, %v1479
  %v1481 = vpop.f32.mrf.mxu0
  %v1482 = vadd.f32 0.0, %v1481
  %v1483 = vpop.f32.mrf.mxu0
  %v1484 = vadd.f32 0.0, %v1483
  %v1485 = vpop.f32.mrf.mxu0
  %v1486 = vadd.f32 0.0, %v1485
  %1487 = vmatprep.mubr.bf16.mxu0 0
  %1488 = vmatmul.mubr.bf16.gmra.mxu0 %v521
  %v1489 = vpop.f32.mrf.mxu0
  %v1490 = vadd.f32 0.0, %v1489
  %v1491 = vpop.f32.mrf.mxu0
  %v1492 = vadd.f32 0.0, %v1491
  %v1493 = vpop.f32.mrf.mxu0
  %v1494 = vadd.f32 0.0, %v1493
  %v1495 = vpop.f32.mrf.mxu0
  %v1496 = vadd.f32 0.0, %v1495
  %1497 = vmatprep.mubr.bf16.mxu0 0
  %1498 = vmatmul.mubr.bf16.gmra.mxu0 %v524
  %v1499 = vpop.f32.mrf.mxu0
  %v1500 = vadd.f32 0.0, %v1499
  %v1501 = vpop.f32.mrf.mxu0
  %v1502 = vadd.f32 0.0, %v1501
  %v1503 = vpop.f32.mrf.mxu0
  %v1504 = vadd.f32 0.0, %v1503
  %v1505 = vpop.f32.mrf.mxu0
  %v1506 = vadd.f32 0.0, %v1505
  %1507 = vmatprep.mubr.bf16.mxu0 0
  %1508 = vmatmul.mubr.bf16.gmra.mxu0 %v527
  %v1509 = vpop.f32.mrf.mxu0
  %v1510 = vadd.f32 0.0, %v1509
  %v1511 = vpop.f32.mrf.mxu0
  %v1512 = vadd.f32 0.0, %v1511
  %v1513 = vpop.f32.mrf.mxu0
  %v1514 = vadd.f32 0.0, %v1513
  %v1515 = vpop.f32.mrf.mxu0
  %v1516 = vadd.f32 0.0, %v1515
  %1517 = vmatprep.mubr.bf16.mxu0 0
  %1518 = vmatmul.mubr.bf16.gmra.mxu0 %v530
  %v1519 = vpop.f32.mrf.mxu0
  %v1520 = vadd.f32 0.0, %v1519
  %v1521 = vpop.f32.mrf.mxu0
  %v1522 = vadd.f32 0.0, %v1521
  %v1523 = vpop.f32.mrf.mxu0
  %v1524 = vadd.f32 0.0, %v1523
  %v1525 = vpop.f32.mrf.mxu0
  %v1526 = vadd.f32 0.0, %v1525
  %1527 = vmatprep.mubr.bf16.mxu0 0
  %1528 = vmatmul.mubr.bf16.gmra.mxu0 %v533
  %v1529 = vpop.f32.mrf.mxu0
  %v1530 = vadd.f32 0.0, %v1529
  %v1531 = vpop.f32.mrf.mxu0
  %v1532 = vadd.f32 0.0, %v1531
  %v1533 = vpop.f32.mrf.mxu0
  %v1534 = vadd.f32 0.0, %v1533
  %v1535 = vpop.f32.mrf.mxu0
  %v1536 = vadd.f32 0.0, %v1535
  %1537 = vmatprep.mubr.bf16.mxu0 0
  %1538 = vmatmul.mubr.bf16.gmra.mxu0 %v536
  %v1539 = vpop.f32.mrf.mxu0
  %v1540 = vadd.f32 0.0, %v1539
  %v1541 = vpop.f32.mrf.mxu0
  %v1542 = vadd.f32 0.0, %v1541
  %v1543 = vpop.f32.mrf.mxu0
  %v1544 = vadd.f32 0.0, %v1543
  %v1545 = vpop.f32.mrf.mxu0
  %v1546 = vadd.f32 0.0, %v1545
  %1547 = vmatprep.mubr.bf16.mxu0 0
  %1548 = vmatmul.mubr.bf16.gmra.mxu0 %v539
  %v1549 = vpop.f32.mrf.mxu0
  %v1550 = vadd.f32 0.0, %v1549
  %v1551 = vpop.f32.mrf.mxu0
  %v1552 = vadd.f32 0.0, %v1551
  %v1553 = vpop.f32.mrf.mxu0
  %v1554 = vadd.f32 0.0, %v1553
  %v1555 = vpop.f32.mrf.mxu0
  %v1556 = vadd.f32 0.0, %v1555
  %1557 = vdwg.mxu0
  %1558 = vmatprep.subr.bf16.mxu0 0
  %1559 = vmatpush1.bf16.msra.mxu0 0
  %1560 = vmatprep.subr.bf16.mxu0 0
  %1561 = vmatpush1.bf16.msra.mxu0 0
  %1562 = vmatprep.subr.bf16.mxu0 0
  %1563 = vmatpush1.bf16.msra.mxu0 0
  %1564 = vmatprep.subr.bf16.mxu0 0
  %1565 = vmatpush1.bf16.msra.mxu0 0
  %1566 = vmatprep.subr.bf16.mxu0 0
  %1567 = vmatpush1.bf16.msra.mxu0 0
  %1568 = vmatprep.subr.bf16.mxu0 0
  %1569 = vmatpush1.bf16.msra.mxu0 0
  %1570 = vmatprep.subr.bf16.mxu0 %v442
  %1571 = vmatpush1.bf16.msra.mxu0 %v441
  %1572 = vmatprep.subr.bf16.mxu0 %v411
  %1573 = vmatpush1.bf16.msra.mxu0 %v410
  %1574 = vmatprep.subr.bf16.mxu0 0
  %1575 = vmatpush2.bf16.msra.mxu0 0
  %1576 = vmatprep.subr.bf16.mxu0 0
  %1577 = vmatpush2.bf16.msra.mxu0 0
  %1578 = vmatprep.subr.bf16.mxu0 0
  %1579 = vmatpush2.bf16.msra.mxu0 0
  %1580 = vmatprep.subr.bf16.mxu0 0
  %1581 = vmatpush2.bf16.msra.mxu0 0
  %1582 = vmatprep.subr.bf16.mxu0 0
  %1583 = vmatpush2.bf16.msra.mxu0 0
  %1584 = vmatprep.subr.bf16.mxu0 0
  %1585 = vmatpush2.bf16.msra.mxu0 0
  %1586 = vmatprep.subr.bf16.mxu0 0
  %1587 = vmatpush2.bf16.msra.mxu0 0
  %1588 = vmatprep.subr.bf16.mxu0 0
  %1589 = vmatpush2.bf16.msra.mxu0 0
  %1590 = vmatprep.mubr.bf16.mxu0 0
  %1591 = vmatmul.mubr.bf16.gmra.mxu0 %v518
  %v1592 = vpop.f32.mrf.mxu0
  %v1593 = vadd.f32 0.0, %v1592
  %v1594 = vpop.f32.mrf.mxu0
  %v1595 = vadd.f32 0.0, %v1594
  %v1596 = vpop.f32.mrf.mxu0
  %v1597 = vadd.f32 0.0, %v1596
  %v1598 = vpop.f32.mrf.mxu0
  %v1599 = vadd.f32 0.0, %v1598
  %1600 = vmatprep.mubr.bf16.mxu0 0
  %1601 = vmatmul.mubr.bf16.gmra.mxu0 %v521
  %v1602 = vpop.f32.mrf.mxu0
  %v1603 = vadd.f32 0.0, %v1602
  %v1604 = vpop.f32.mrf.mxu0
  %v1605 = vadd.f32 0.0, %v1604
  %v1606 = vpop.f32.mrf.mxu0
  %v1607 = vadd.f32 0.0, %v1606
  %v1608 = vpop.f32.mrf.mxu0
  %v1609 = vadd.f32 0.0, %v1608
  %1610 = vmatprep.mubr.bf16.mxu0 0
  %1611 = vmatmul.mubr.bf16.gmra.mxu0 %v524
  %v1612 = vpop.f32.mrf.mxu0
  %v1613 = vadd.f32 0.0, %v1612
  %v1614 = vpop.f32.mrf.mxu0
  %v1615 = vadd.f32 0.0, %v1614
  %v1616 = vpop.f32.mrf.mxu0
  %v1617 = vadd.f32 0.0, %v1616
  %v1618 = vpop.f32.mrf.mxu0
  %v1619 = vadd.f32 0.0, %v1618
  %1620 = vmatprep.mubr.bf16.mxu0 0
  %1621 = vmatmul.mubr.bf16.gmra.mxu0 %v527
  %v1622 = vpop.f32.mrf.mxu0
  %v1623 = vadd.f32 0.0, %v1622
  %v1624 = vpop.f32.mrf.mxu0
  %v1625 = vadd.f32 0.0, %v1624
  %v1626 = vpop.f32.mrf.mxu0
  %v1627 = vadd.f32 0.0, %v1626
  %v1628 = vpop.f32.mrf.mxu0
  %v1629 = vadd.f32 0.0, %v1628
  %1630 = vmatprep.mubr.bf16.mxu0 0
  %1631 = vmatmul.mubr.bf16.gmra.mxu0 %v530
  %v1632 = vpop.f32.mrf.mxu0
  %v1633 = vadd.f32 0.0, %v1632
  %v1634 = vpop.f32.mrf.mxu0
  %v1635 = vadd.f32 0.0, %v1634
  %v1636 = vpop.f32.mrf.mxu0
  %v1637 = vadd.f32 0.0, %v1636
  %v1638 = vpop.f32.mrf.mxu0
  %v1639 = vadd.f32 0.0, %v1638
  %1640 = vmatprep.mubr.bf16.mxu0 0
  %1641 = vmatmul.mubr.bf16.gmra.mxu0 %v533
  %v1642 = vpop.f32.mrf.mxu0
  %v1643 = vadd.f32 0.0, %v1642
  %v1644 = vpop.f32.mrf.mxu0
  %v1645 = vadd.f32 0.0, %v1644
  %v1646 = vpop.f32.mrf.mxu0
  %v1647 = vadd.f32 0.0, %v1646
  %v1648 = vpop.f32.mrf.mxu0
  %v1649 = vadd.f32 0.0, %v1648
  %1650 = vmatprep.mubr.bf16.mxu0 0
  %1651 = vmatmul.mubr.bf16.gmra.mxu0 %v536
  %v1652 = vpop.f32.mrf.mxu0
  %v1653 = vadd.f32 0.0, %v1652
  %v1654 = vpop.f32.mrf.mxu0
  %v1655 = vadd.f32 0.0, %v1654
  %v1656 = vpop.f32.mrf.mxu0
  %v1657 = vadd.f32 0.0, %v1656
  %v1658 = vpop.f32.mrf.mxu0
  %v1659 = vadd.f32 0.0, %v1658
  %1660 = vmatprep.mubr.bf16.mxu0 0
  %1661 = vmatmul.mubr.bf16.gmra.mxu0 %v539
  %v1662 = vpop.f32.mrf.mxu0
  %v1663 = vadd.f32 0.0, %v1662
  %v1664 = vpop.f32.mrf.mxu0
  %v1665 = vadd.f32 0.0, %v1664
  %v1666 = vpop.f32.mrf.mxu0
  %v1667 = vadd.f32 0.0, %v1666
  %v1668 = vpop.f32.mrf.mxu0
  %v1669 = vadd.f32 0.0, %v1668
  %1670 = vdwg.mxu0
  %1671 = vmatprep.subr.bf16.mxu0 0
  %1672 = vmatpush1.bf16.msra.mxu0 0
  %1673 = vmatprep.subr.bf16.mxu0 0
  %1674 = vmatpush1.bf16.msra.mxu0 0
  %1675 = vmatprep.subr.bf16.mxu0 0
  %1676 = vmatpush1.bf16.msra.mxu0 0
  %1677 = vmatprep.subr.bf16.mxu0 0
  %1678 = vmatpush1.bf16.msra.mxu0 0
  %1679 = vmatprep.subr.bf16.mxu0 0
  %1680 = vmatpush1.bf16.msra.mxu0 0
  %1681 = vmatprep.subr.bf16.mxu0 0
  %1682 = vmatpush1.bf16.msra.mxu0 0
  %1683 = vmatprep.subr.bf16.mxu0 %v444
  %1684 = vmatpush1.bf16.msra.mxu0 %v443
  %1685 = vmatprep.subr.bf16.mxu0 %v413
  %1686 = vmatpush1.bf16.msra.mxu0 %v412
  %1687 = vmatprep.subr.bf16.mxu0 0
  %1688 = vmatpush2.bf16.msra.mxu0 0
  %1689 = vmatprep.subr.bf16.mxu0 0
  %1690 = vmatpush2.bf16.msra.mxu0 0
  %1691 = vmatprep.subr.bf16.mxu0 0
  %1692 = vmatpush2.bf16.msra.mxu0 0
  %1693 = vmatprep.subr.bf16.mxu0 0
  %1694 = vmatpush2.bf16.msra.mxu0 0
  %1695 = vmatprep.subr.bf16.mxu0 0
  %1696 = vmatpush2.bf16.msra.mxu0 0
  %1697 = vmatprep.subr.bf16.mxu0 0
  %1698 = vmatpush2.bf16.msra.mxu0 0
  %1699 = vmatprep.subr.bf16.mxu0 0
  %1700 = vmatpush2.bf16.msra.mxu0 0
  %1701 = vmatprep.subr.bf16.mxu0 0
  %1702 = vmatpush2.bf16.msra.mxu0 0
  %1703 = vmatprep.mubr.bf16.mxu0 0
  %1704 = vmatmul.mubr.bf16.gmra.mxu0 %v518
  %v1705 = vpop.f32.mrf.mxu0
  %v1706 = vadd.f32 0.0, %v1705
  %v1707 = vpop.f32.mrf.mxu0
  %v1708 = vadd.f32 0.0, %v1707
  %v1709 = vpop.f32.mrf.mxu0
  %v1710 = vadd.f32 0.0, %v1709
  %v1711 = vpop.f32.mrf.mxu0
  %v1712 = vadd.f32 0.0, %v1711
  %1713 = vmatprep.mubr.bf16.mxu0 0
  %1714 = vmatmul.mubr.bf16.gmra.mxu0 %v521
  %v1715 = vpop.f32.mrf.mxu0
  %v1716 = vadd.f32 0.0, %v1715
  %v1717 = vpop.f32.mrf.mxu0
  %v1718 = vadd.f32 0.0, %v1717
  %v1719 = vpop.f32.mrf.mxu0
  %v1720 = vadd.f32 0.0, %v1719
  %v1721 = vpop.f32.mrf.mxu0
  %v1722 = vadd.f32 0.0, %v1721
  %1723 = vmatprep.mubr.bf16.mxu0 0
  %1724 = vmatmul.mubr.bf16.gmra.mxu0 %v524
  %v1725 = vpop.f32.mrf.mxu0
  %v1726 = vadd.f32 0.0, %v1725
  %v1727 = vpop.f32.mrf.mxu0
  %v1728 = vadd.f32 0.0, %v1727
  %v1729 = vpop.f32.mrf.mxu0
  %v1730 = vadd.f32 0.0, %v1729
  %v1731 = vpop.f32.mrf.mxu0
  %v1732 = vadd.f32 0.0, %v1731
  %1733 = vmatprep.mubr.bf16.mxu0 0
  %1734 = vmatmul.mubr.bf16.gmra.mxu0 %v527
  %v1735 = vpop.f32.mrf.mxu0
  %v1736 = vadd.f32 0.0, %v1735
  %v1737 = vpop.f32.mrf.mxu0
  %v1738 = vadd.f32 0.0, %v1737
  %v1739 = vpop.f32.mrf.mxu0
  %v1740 = vadd.f32 0.0, %v1739
  %v1741 = vpop.f32.mrf.mxu0
  %v1742 = vadd.f32 0.0, %v1741
  %1743 = vmatprep.mubr.bf16.mxu0 0
  %1744 = vmatmul.mubr.bf16.gmra.mxu0 %v530
  %v1745 = vpop.f32.mrf.mxu0
  %v1746 = vadd.f32 0.0, %v1745
  %v1747 = vpop.f32.mrf.mxu0
  %v1748 = vadd.f32 0.0, %v1747
  %v1749 = vpop.f32.mrf.mxu0
  %v1750 = vadd.f32 0.0, %v1749
  %v1751 = vpop.f32.mrf.mxu0
  %v1752 = vadd.f32 0.0, %v1751
  %1753 = vmatprep.mubr.bf16.mxu0 0
  %1754 = vmatmul.mubr.bf16.gmra.mxu0 %v533
  %v1755 = vpop.f32.mrf.mxu0
  %v1756 = vadd.f32 0.0, %v1755
  %v1757 = vpop.f32.mrf.mxu0
  %v1758 = vadd.f32 0.0, %v1757
  %v1759 = vpop.f32.mrf.mxu0
  %v1760 = vadd.f32 0.0, %v1759
  %v1761 = vpop.f32.mrf.mxu0
  %v1762 = vadd.f32 0.0, %v1761
  %1763 = vmatprep.mubr.bf16.mxu0 0
  %1764 = vmatmul.mubr.bf16.gmra.mxu0 %v536
  %v1765 = vpop.f32.mrf.mxu0
  %v1766 = vadd.f32 0.0, %v1765
  %v1767 = vpop.f32.mrf.mxu0
  %v1768 = vadd.f32 0.0, %v1767
  %v1769 = vpop.f32.mrf.mxu0
  %v1770 = vadd.f32 0.0, %v1769
  %v1771 = vpop.f32.mrf.mxu0
  %v1772 = vadd.f32 0.0, %v1771
  %1773 = vmatprep.mubr.bf16.mxu0 0
  %1774 = vmatmul.mubr.bf16.gmra.mxu0 %v539
  %v1775 = vpop.f32.mrf.mxu0
  %v1776 = vadd.f32 0.0, %v1775
  %v1777 = vpop.f32.mrf.mxu0
  %v1778 = vadd.f32 0.0, %v1777
  %v1779 = vpop.f32.mrf.mxu0
  %v1780 = vadd.f32 0.0, %v1779
  %v1781 = vpop.f32.mrf.mxu0
  %v1782 = vadd.f32 0.0, %v1781
  %1783 = vdwg.mxu0
  %1784 = vmatprep.subr.bf16.mxu0 0
  %1785 = vmatpush1.bf16.msra.mxu0 0
  %1786 = vmatprep.subr.bf16.mxu0 0
  %1787 = vmatpush1.bf16.msra.mxu0 0
  %1788 = vmatprep.subr.bf16.mxu0 0
  %1789 = vmatpush1.bf16.msra.mxu0 0
  %1790 = vmatprep.subr.bf16.mxu0 0
  %1791 = vmatpush1.bf16.msra.mxu0 0
  %1792 = vmatprep.subr.bf16.mxu0 0
  %1793 = vmatpush1.bf16.msra.mxu0 0
  %1794 = vmatprep.subr.bf16.mxu0 0
  %1795 = vmatpush1.bf16.msra.mxu0 0
  %1796 = vmatprep.subr.bf16.mxu0 %v446
  %1797 = vmatpush1.bf16.msra.mxu0 %v445
  %1798 = vmatprep.subr.bf16.mxu0 %v415
  %1799 = vmatpush1.bf16.msra.mxu0 %v414
  %1800 = vmatprep.subr.bf16.mxu0 0
  %1801 = vmatpush2.bf16.msra.mxu0 0
  %1802 = vmatprep.subr.bf16.mxu0 0
  %1803 = vmatpush2.bf16.msra.mxu0 0
  %1804 = vmatprep.subr.bf16.mxu0 0
  %1805 = vmatpush2.bf16.msra.mxu0 0
  %1806 = vmatprep.subr.bf16.mxu0 0
  %1807 = vmatpush2.bf16.msra.mxu0 0
  %1808 = vmatprep.subr.bf16.mxu0 0
  %1809 = vmatpush2.bf16.msra.mxu0 0
  %1810 = vmatprep.subr.bf16.mxu0 0
  %1811 = vmatpush2.bf16.msra.mxu0 0
  %1812 = vmatprep.subr.bf16.mxu0 0
  %1813 = vmatpush2.bf16.msra.mxu0 0
  %1814 = vmatprep.subr.bf16.mxu0 0
  %1815 = vmatpush2.bf16.msra.mxu0 0
  %1816 = vmatprep.mubr.bf16.mxu0 0
  %1817 = vmatmul.mubr.bf16.gmra.mxu0 %v518
  %v1818 = vpop.f32.mrf.mxu0
  %v1819 = vadd.f32 0.0, %v1818
  %v1820 = vpop.f32.mrf.mxu0
  %v1821 = vadd.f32 0.0, %v1820
  %v1822 = vpop.f32.mrf.mxu0
  %v1823 = vadd.f32 0.0, %v1822
  %v1824 = vpop.f32.mrf.mxu0
  %v1825 = vadd.f32 0.0, %v1824
  %1826 = vmatprep.mubr.bf16.mxu0 0
  %1827 = vmatmul.mubr.bf16.gmra.mxu0 %v521
  %v1828 = vpop.f32.mrf.mxu0
  %v1829 = vadd.f32 0.0, %v1828
  %v1830 = vpop.f32.mrf.mxu0
  %v1831 = vadd.f32 0.0, %v1830
  %v1832 = vpop.f32.mrf.mxu0
  %v1833 = vadd.f32 0.0, %v1832
  %v1834 = vpop.f32.mrf.mxu0
  %v1835 = vadd.f32 0.0, %v1834
  %1836 = vmatprep.mubr.bf16.mxu0 0
  %1837 = vmatmul.mubr.bf16.gmra.mxu0 %v524
  %v1838 = vpop.f32.mrf.mxu0
  %v1839 = vadd.f32 0.0, %v1838
  %v1840 = vpop.f32.mrf.mxu0
  %v1841 = vadd.f32 0.0, %v1840
  %v1842 = vpop.f32.mrf.mxu0
  %v1843 = vadd.f32 0.0, %v1842
  %v1844 = vpop.f32.mrf.mxu0
  %v1845 = vadd.f32 0.0, %v1844
  %1846 = vmatprep.mubr.bf16.mxu0 0
  %1847 = vmatmul.mubr.bf16.gmra.mxu0 %v527
  %v1848 = vpop.f32.mrf.mxu0
  %v1849 = vadd.f32 0.0, %v1848
  %v1850 = vpop.f32.mrf.mxu0
  %v1851 = vadd.f32 0.0, %v1850
  %v1852 = vpop.f32.mrf.mxu0
  %v1853 = vadd.f32 0.0, %v1852
  %v1854 = vpop.f32.mrf.mxu0
  %v1855 = vadd.f32 0.0, %v1854
  %1856 = vmatprep.mubr.bf16.mxu0 0
  %1857 = vmatmul.mubr.bf16.gmra.mxu0 %v530
  %v1858 = vpop.f32.mrf.mxu0
  %v1859 = vadd.f32 0.0, %v1858
  %v1860 = vpop.f32.mrf.mxu0
  %v1861 = vadd.f32 0.0, %v1860
  %v1862 = vpop.f32.mrf.mxu0
  %v1863 = vadd.f32 0.0, %v1862
  %v1864 = vpop.f32.mrf.mxu0
  %v1865 = vadd.f32 0.0, %v1864
  %1866 = vmatprep.mubr.bf16.mxu0 0
  %1867 = vmatmul.mubr.bf16.gmra.mxu0 %v533
  %v1868 = vpop.f32.mrf.mxu0
  %v1869 = vadd.f32 0.0, %v1868
  %v1870 = vpop.f32.mrf.mxu0
  %v1871 = vadd.f32 0.0, %v1870
  %v1872 = vpop.f32.mrf.mxu0
  %v1873 = vadd.f32 0.0, %v1872
  %v1874 = vpop.f32.mrf.mxu0
  %v1875 = vadd.f32 0.0, %v1874
  %1876 = vmatprep.mubr.bf16.mxu0 0
  %1877 = vmatmul.mubr.bf16.gmra.mxu0 %v536
  %v1878 = vpop.f32.mrf.mxu0
  %v1879 = vadd.f32 0.0, %v1878
  %v1880 = vpop.f32.mrf.mxu0
  %v1881 = vadd.f32 0.0, %v1880
  %v1882 = vpop.f32.mrf.mxu0
  %v1883 = vadd.f32 0.0, %v1882
  %v1884 = vpop.f32.mrf.mxu0
  %v1885 = vadd.f32 0.0, %v1884
  %1886 = vmatprep.mubr.bf16.mxu0 0
  %1887 = vmatmul.mubr.bf16.gmra.mxu0 %v539
  %v1888 = vpop.f32.mrf.mxu0
  %v1889 = vadd.f32 0.0, %v1888
  %v1890 = vpop.f32.mrf.mxu0
  %v1891 = vadd.f32 0.0, %v1890
  %v1892 = vpop.f32.mrf.mxu0
  %v1893 = vadd.f32 0.0, %v1892
  %v1894 = vpop.f32.mrf.mxu0
  %v1895 = vadd.f32 0.0, %v1894
  %1896 = vdwg.mxu0
  %1897 = vmatprep.subr.bf16.mxu0 0
  %1898 = vmatpush1.bf16.msra.mxu0 0
  %1899 = vmatprep.subr.bf16.mxu0 0
  %1900 = vmatpush1.bf16.msra.mxu0 0
  %1901 = vmatprep.subr.bf16.mxu0 0
  %1902 = vmatpush1.bf16.msra.mxu0 0
  %1903 = vmatprep.subr.bf16.mxu0 0
  %1904 = vmatpush1.bf16.msra.mxu0 0
  %1905 = vmatprep.subr.bf16.mxu0 0
  %1906 = vmatpush1.bf16.msra.mxu0 0
  %1907 = vmatprep.subr.bf16.mxu0 0
  %1908 = vmatpush1.bf16.msra.mxu0 0
  %1909 = vmatprep.subr.bf16.mxu0 %v448
  %1910 = vmatpush1.bf16.msra.mxu0 %v447
  %1911 = vmatprep.subr.bf16.mxu0 %v417
  %1912 = vmatpush1.bf16.msra.mxu0 %v416
  %1913 = vmatprep.subr.bf16.mxu0 0
  %1914 = vmatpush2.bf16.msra.mxu0 0
  %1915 = vmatprep.subr.bf16.mxu0 0
  %1916 = vmatpush2.bf16.msra.mxu0 0
  %1917 = vmatprep.subr.bf16.mxu0 0
  %1918 = vmatpush2.bf16.msra.mxu0 0
  %1919 = vmatprep.subr.bf16.mxu0 0
  %1920 = vmatpush2.bf16.msra.mxu0 0
  %1921 = vmatprep.subr.bf16.mxu0 0
  %1922 = vmatpush2.bf16.msra.mxu0 0
  %1923 = vmatprep.subr.bf16.mxu0 0
  %1924 = vmatpush2.bf16.msra.mxu0 0
  %1925 = vmatprep.subr.bf16.mxu0 0
  %1926 = vmatpush2.bf16.msra.mxu0 0
  %1927 = vmatprep.subr.bf16.mxu0 0
  %1928 = vmatpush2.bf16.msra.mxu0 0
  %1929 = vmatprep.mubr.bf16.mxu0 0
  %1930 = vmatmul.mubr.bf16.gmra.mxu0 %v518
  %v1931 = vpop.f32.mrf.mxu0
  %v1932 = vadd.f32 0.0, %v1931
  %v1933 = vpop.f32.mrf.mxu0
  %v1934 = vadd.f32 0.0, %v1933
  %v1935 = vpop.f32.mrf.mxu0
  %v1936 = vadd.f32 0.0, %v1935
  %v1937 = vpop.f32.mrf.mxu0
  %v1938 = vadd.f32 0.0, %v1937
  %1939 = vmatprep.mubr.bf16.mxu0 0
  %1940 = vmatmul.mubr.bf16.gmra.mxu0 %v521
  %v1941 = vpop.f32.mrf.mxu0
  %v1942 = vadd.f32 0.0, %v1941
  %v1943 = vpop.f32.mrf.mxu0
  %v1944 = vadd.f32 0.0, %v1943
  %v1945 = vpop.f32.mrf.mxu0
  %v1946 = vadd.f32 0.0, %v1945
  %v1947 = vpop.f32.mrf.mxu0
  %v1948 = vadd.f32 0.0, %v1947
  %1949 = vmatprep.mubr.bf16.mxu0 0
  %1950 = vmatmul.mubr.bf16.gmra.mxu0 %v524
  %v1951 = vpop.f32.mrf.mxu0
  %v1952 = vadd.f32 0.0, %v1951
  %v1953 = vpop.f32.mrf.mxu0
  %v1954 = vadd.f32 0.0, %v1953
  %v1955 = vpop.f32.mrf.mxu0
  %v1956 = vadd.f32 0.0, %v1955
  %v1957 = vpop.f32.mrf.mxu0
  %v1958 = vadd.f32 0.0, %v1957
  %1959 = vmatprep.mubr.bf16.mxu0 0
  %1960 = vmatmul.mubr.bf16.gmra.mxu0 %v527
  %v1961 = vpop.f32.mrf.mxu0
  %v1962 = vadd.f32 0.0, %v1961
  %v1963 = vpop.f32.mrf.mxu0
  %v1964 = vadd.f32 0.0, %v1963
  %v1965 = vpop.f32.mrf.mxu0
  %v1966 = vadd.f32 0.0, %v1965
  %v1967 = vpop.f32.mrf.mxu0
  %v1968 = vadd.f32 0.0, %v1967
  %1969 = vmatprep.mubr.bf16.mxu0 0
  %1970 = vmatmul.mubr.bf16.gmra.mxu0 %v530
  %v1971 = vpop.f32.mrf.mxu0
  %v1972 = vadd.f32 0.0, %v1971
  %v1973 = vpop.f32.mrf.mxu0
  %v1974 = vadd.f32 0.0, %v1973
  %v1975 = vpop.f32.mrf.mxu0
  %v1976 = vadd.f32 0.0, %v1975
  %v1977 = vpop.f32.mrf.mxu0
  %v1978 = vadd.f32 0.0, %v1977
  %1979 = vmatprep.mubr.bf16.mxu0 0
  %1980 = vmatmul.mubr.bf16.gmra.mxu0 %v533
  %v1981 = vpop.f32.mrf.mxu0
  %v1982 = vadd.f32 0.0, %v1981
  %v1983 = vpop.f32.mrf.mxu0
  %v1984 = vadd.f32 0.0, %v1983
  %v1985 = vpop.f32.mrf.mxu0
  %v1986 = vadd.f32 0.0, %v1985
  %v1987 = vpop.f32.mrf.mxu0
  %v1988 = vadd.f32 0.0, %v1987
  %1989 = vmatprep.mubr.bf16.mxu0 0
  %1990 = vmatmul.mubr.bf16.gmra.mxu0 %v536
  %v1991 = vpop.f32.mrf.mxu0
  %v1992 = vadd.f32 0.0, %v1991
  %v1993 = vpop.f32.mrf.mxu0
  %v1994 = vadd.f32 0.0, %v1993
  %v1995 = vpop.f32.mrf.mxu0
  %v1996 = vadd.f32 0.0, %v1995
  %v1997 = vpop.f32.mrf.mxu0
  %v1998 = vadd.f32 0.0, %v1997
  %1999 = vmatprep.mubr.bf16.mxu0 0
  %2000 = vmatmul.mubr.bf16.gmra.mxu0 %v539
  %v2001 = vpop.f32.mrf.mxu0
  %v2002 = vadd.f32 0.0, %v2001
  %v2003 = vpop.f32.mrf.mxu0
  %v2004 = vadd.f32 0.0, %v2003
  %v2005 = vpop.f32.mrf.mxu0
  %v2006 = vadd.f32 0.0, %v2005
  %v2007 = vpop.f32.mrf.mxu0
  %v2008 = vadd.f32 0.0, %v2007
  %2009 = vdwg.mxu0
  %2010 = vmatprep.subr.bf16.mxu0 0
  %2011 = vmatpush1.bf16.msra.mxu0 0
  %2012 = vmatprep.subr.bf16.mxu0 0
  %2013 = vmatpush1.bf16.msra.mxu0 0
  %2014 = vmatprep.subr.bf16.mxu0 0
  %2015 = vmatpush1.bf16.msra.mxu0 0
  %2016 = vmatprep.subr.bf16.mxu0 0
  %2017 = vmatpush1.bf16.msra.mxu0 0
  %2018 = vmatprep.subr.bf16.mxu0 0
  %2019 = vmatpush1.bf16.msra.mxu0 0
  %2020 = vmatprep.subr.bf16.mxu0 0
  %2021 = vmatpush1.bf16.msra.mxu0 0
  %2022 = vmatprep.subr.bf16.mxu0 %v450
  %2023 = vmatpush1.bf16.msra.mxu0 %v449
  %2024 = vmatprep.subr.bf16.mxu0 %v419
  %2025 = vmatpush1.bf16.msra.mxu0 %v418
  %2026 = vmatprep.subr.bf16.mxu0 0
  %2027 = vmatpush2.bf16.msra.mxu0 0
  %2028 = vmatprep.subr.bf16.mxu0 0
  %2029 = vmatpush2.bf16.msra.mxu0 0
  %2030 = vmatprep.subr.bf16.mxu0 0
  %2031 = vmatpush2.bf16.msra.mxu0 0
  %2032 = vmatprep.subr.bf16.mxu0 0
  %2033 = vmatpush2.bf16.msra.mxu0 0
  %2034 = vmatprep.subr.bf16.mxu0 0
  %2035 = vmatpush2.bf16.msra.mxu0 0
  %2036 = vmatprep.subr.bf16.mxu0 0
  %2037 = vmatpush2.bf16.msra.mxu0 0
  %2038 = vmatprep.subr.bf16.mxu0 0
  %2039 = vmatpush2.bf16.msra.mxu0 0
  %2040 = vmatprep.subr.bf16.mxu0 0
  %2041 = vmatpush2.bf16.msra.mxu0 0
  %2042 = vmatprep.mubr.bf16.mxu0 0
  %2043 = vmatmul.mubr.bf16.gmra.mxu0 %v518
  %v2044 = vpop.f32.mrf.mxu0
  %v2045 = vadd.f32 0.0, %v2044
  %v2046 = vpop.f32.mrf.mxu0
  %v2047 = vadd.f32 0.0, %v2046
  %v2048 = vpop.f32.mrf.mxu0
  %v2049 = vadd.f32 0.0, %v2048
  %v2050 = vpop.f32.mrf.mxu0
  %v2051 = vadd.f32 0.0, %v2050
  %2052 = vmatprep.mubr.bf16.mxu0 0
  %2053 = vmatmul.mubr.bf16.gmra.mxu0 %v521
  %v2054 = vpop.f32.mrf.mxu0
  %v2055 = vadd.f32 0.0, %v2054
  %v2056 = vpop.f32.mrf.mxu0
  %v2057 = vadd.f32 0.0, %v2056
  %v2058 = vpop.f32.mrf.mxu0
  %v2059 = vadd.f32 0.0, %v2058
  %v2060 = vpop.f32.mrf.mxu0
  %v2061 = vadd.f32 0.0, %v2060
  %2062 = vmatprep.mubr.bf16.mxu0 0
  %2063 = vmatmul.mubr.bf16.gmra.mxu0 %v524
  %v2064 = vpop.f32.mrf.mxu0
  %v2065 = vadd.f32 0.0, %v2064
  %v2066 = vpop.f32.mrf.mxu0
  %v2067 = vadd.f32 0.0, %v2066
  %v2068 = vpop.f32.mrf.mxu0
  %v2069 = vadd.f32 0.0, %v2068
  %v2070 = vpop.f32.mrf.mxu0
  %v2071 = vadd.f32 0.0, %v2070
  %2072 = vmatprep.mubr.bf16.mxu0 0
  %2073 = vmatmul.mubr.bf16.gmra.mxu0 %v527
  %v2074 = vpop.f32.mrf.mxu0
  %v2075 = vadd.f32 0.0, %v2074
  %v2076 = vpop.f32.mrf.mxu0
  %v2077 = vadd.f32 0.0, %v2076
  %v2078 = vpop.f32.mrf.mxu0
  %v2079 = vadd.f32 0.0, %v2078
  %v2080 = vpop.f32.mrf.mxu0
  %v2081 = vadd.f32 0.0, %v2080
  %2082 = vmatprep.mubr.bf16.mxu0 0
  %2083 = vmatmul.mubr.bf16.gmra.mxu0 %v530
  %v2084 = vpop.f32.mrf.mxu0
  %v2085 = vadd.f32 0.0, %v2084
  %v2086 = vpop.f32.mrf.mxu0
  %v2087 = vadd.f32 0.0, %v2086
  %v2088 = vpop.f32.mrf.mxu0
  %v2089 = vadd.f32 0.0, %v2088
  %v2090 = vpop.f32.mrf.mxu0
  %v2091 = vadd.f32 0.0, %v2090
  %2092 = vmatprep.mubr.bf16.mxu0 0
  %2093 = vmatmul.mubr.bf16.gmra.mxu0 %v533
  %v2094 = vpop.f32.mrf.mxu0
  %v2095 = vadd.f32 0.0, %v2094
  %v2096 = vpop.f32.mrf.mxu0
  %v2097 = vadd.f32 0.0, %v2096
  %v2098 = vpop.f32.mrf.mxu0
  %v2099 = vadd.f32 0.0, %v2098
  %v2100 = vpop.f32.mrf.mxu0
  %v2101 = vadd.f32 0.0, %v2100
  %2102 = vmatprep.mubr.bf16.mxu0 0
  %2103 = vmatmul.mubr.bf16.gmra.mxu0 %v536
  %v2104 = vpop.f32.mrf.mxu0
  %v2105 = vadd.f32 0.0, %v2104
  %v2106 = vpop.f32.mrf.mxu0
  %v2107 = vadd.f32 0.0, %v2106
  %v2108 = vpop.f32.mrf.mxu0
  %v2109 = vadd.f32 0.0, %v2108
  %v2110 = vpop.f32.mrf.mxu0
  %v2111 = vadd.f32 0.0, %v2110
  %2112 = vmatprep.mubr.bf16.mxu0 0
  %2113 = vmatmul.mubr.bf16.gmra.mxu0 %v539
  %v2114 = vpop.f32.mrf.mxu0
  %v2115 = vadd.f32 0.0, %v2114
  %v2116 = vpop.f32.mrf.mxu0
  %v2117 = vadd.f32 0.0, %v2116
  %v2118 = vpop.f32.mrf.mxu0
  %v2119 = vadd.f32 0.0, %v2118
  %v2120 = vpop.f32.mrf.mxu0
  %v2121 = vadd.f32 0.0, %v2120
  %2122 = vdwg.mxu0
  %2123 = vmatprep.subr.bf16.mxu0 0
  %2124 = vmatpush1.bf16.msra.mxu0 0
  %2125 = vmatprep.subr.bf16.mxu0 0
  %2126 = vmatpush1.bf16.msra.mxu0 0
  %2127 = vmatprep.subr.bf16.mxu0 0
  %2128 = vmatpush1.bf16.msra.mxu0 0
  %2129 = vmatprep.subr.bf16.mxu0 0
  %2130 = vmatpush1.bf16.msra.mxu0 0
  %2131 = vmatprep.subr.bf16.mxu0 0
  %2132 = vmatpush1.bf16.msra.mxu0 0
  %2133 = vmatprep.subr.bf16.mxu0 0
  %2134 = vmatpush1.bf16.msra.mxu0 0
  %2135 = vmatprep.subr.bf16.mxu0 %v452
  %2136 = vmatpush1.bf16.msra.mxu0 %v451
  %2137 = vmatprep.subr.bf16.mxu0 %v421
  %2138 = vmatpush1.bf16.msra.mxu0 %v420
  %2139 = vmatprep.subr.bf16.mxu0 0
  %2140 = vmatpush2.bf16.msra.mxu0 0
  %2141 = vmatprep.subr.bf16.mxu0 0
  %2142 = vmatpush2.bf16.msra.mxu0 0
  %2143 = vmatprep.subr.bf16.mxu0 0
  %2144 = vmatpush2.bf16.msra.mxu0 0
  %2145 = vmatprep.subr.bf16.mxu0 0
  %2146 = vmatpush2.bf16.msra.mxu0 0
  %2147 = vmatprep.subr.bf16.mxu0 0
  %2148 = vmatpush2.bf16.msra.mxu0 0
  %2149 = vmatprep.subr.bf16.mxu0 0
  %2150 = vmatpush2.bf16.msra.mxu0 0
  %2151 = vmatprep.subr.bf16.mxu0 0
  %2152 = vmatpush2.bf16.msra.mxu0 0
  %2153 = vmatprep.subr.bf16.mxu0 0
  %2154 = vmatpush2.bf16.msra.mxu0 0
  %2155 = vmatprep.mubr.bf16.mxu0 0
  %2156 = vmatmul.mubr.bf16.gmra.mxu0 %v518
  %v2157 = vpop.f32.mrf.mxu0
  %v2158 = vadd.f32 0.0, %v2157
  %v2159 = vpop.f32.mrf.mxu0
  %v2160 = vadd.f32 0.0, %v2159
  %v2161 = vpop.f32.mrf.mxu0
  %v2162 = vadd.f32 0.0, %v2161
  %v2163 = vpop.f32.mrf.mxu0
  %v2164 = vadd.f32 0.0, %v2163
  %2165 = vmatprep.mubr.bf16.mxu0 0
  %2166 = vmatmul.mubr.bf16.gmra.mxu0 %v521
  %v2167 = vpop.f32.mrf.mxu0
  %v2168 = vadd.f32 0.0, %v2167
  %v2169 = vpop.f32.mrf.mxu0
  %v2170 = vadd.f32 0.0, %v2169
  %v2171 = vpop.f32.mrf.mxu0
  %v2172 = vadd.f32 0.0, %v2171
  %v2173 = vpop.f32.mrf.mxu0
  %v2174 = vadd.f32 0.0, %v2173
  %2175 = vmatprep.mubr.bf16.mxu0 0
  %2176 = vmatmul.mubr.bf16.gmra.mxu0 %v524
  %v2177 = vpop.f32.mrf.mxu0
  %v2178 = vadd.f32 0.0, %v2177
  %v2179 = vpop.f32.mrf.mxu0
  %v2180 = vadd.f32 0.0, %v2179
  %v2181 = vpop.f32.mrf.mxu0
  %v2182 = vadd.f32 0.0, %v2181
  %v2183 = vpop.f32.mrf.mxu0
  %v2184 = vadd.f32 0.0, %v2183
  %2185 = vmatprep.mubr.bf16.mxu0 0
  %2186 = vmatmul.mubr.bf16.gmra.mxu0 %v527
  %v2187 = vpop.f32.mrf.mxu0
  %v2188 = vadd.f32 0.0, %v2187
  %v2189 = vpop.f32.mrf.mxu0
  %v2190 = vadd.f32 0.0, %v2189
  %v2191 = vpop.f32.mrf.mxu0
  %v2192 = vadd.f32 0.0, %v2191
  %v2193 = vpop.f32.mrf.mxu0
  %v2194 = vadd.f32 0.0, %v2193
  %2195 = vmatprep.mubr.bf16.mxu0 0
  %2196 = vmatmul.mubr.bf16.gmra.mxu0 %v530
  %v2197 = vpop.f32.mrf.mxu0
  %v2198 = vadd.f32 0.0, %v2197
  %v2199 = vpop.f32.mrf.mxu0
  %v2200 = vadd.f32 0.0, %v2199
  %v2201 = vpop.f32.mrf.mxu0
  %v2202 = vadd.f32 0.0, %v2201
  %v2203 = vpop.f32.mrf.mxu0
  %v2204 = vadd.f32 0.0, %v2203
  %2205 = vmatprep.mubr.bf16.mxu0 0
  %2206 = vmatmul.mubr.bf16.gmra.mxu0 %v533
  %v2207 = vpop.f32.mrf.mxu0
  %v2208 = vadd.f32 0.0, %v2207
  %v2209 = vpop.f32.mrf.mxu0
  %v2210 = vadd.f32 0.0, %v2209
  %v2211 = vpop.f32.mrf.mxu0
  %v2212 = vadd.f32 0.0, %v2211
  %v2213 = vpop.f32.mrf.mxu0
  %v2214 = vadd.f32 0.0, %v2213
  %2215 = vmatprep.mubr.bf16.mxu0 0
  %2216 = vmatmul.mubr.bf16.gmra.mxu0 %v536
  %v2217 = vpop.f32.mrf.mxu0
  %v2218 = vadd.f32 0.0, %v2217
  %v2219 = vpop.f32.mrf.mxu0
  %v2220 = vadd.f32 0.0, %v2219
  %v2221 = vpop.f32.mrf.mxu0
  %v2222 = vadd.f32 0.0, %v2221
  %v2223 = vpop.f32.mrf.mxu0
  %v2224 = vadd.f32 0.0, %v2223
  %2225 = vmatprep.mubr.bf16.mxu0 0
  %2226 = vmatmul.mubr.bf16.gmra.mxu0 %v539
  %v2227 = vpop.f32.mrf.mxu0
  %v2228 = vadd.f32 0.0, %v2227
  %v2229 = vpop.f32.mrf.mxu0
  %v2230 = vadd.f32 0.0, %v2229
  %v2231 = vpop.f32.mrf.mxu0
  %v2232 = vadd.f32 0.0, %v2231
  %v2233 = vpop.f32.mrf.mxu0
  %v2234 = vadd.f32 0.0, %v2233
  %2235 = vdwg.mxu0
  %2236 = vmatprep.subr.bf16.mxu0 0
  %2237 = vmatpush1.bf16.msra.mxu0 0
  %2238 = vmatprep.subr.bf16.mxu0 0
  %2239 = vmatpush1.bf16.msra.mxu0 0
  %2240 = vmatprep.subr.bf16.mxu0 0
  %2241 = vmatpush1.bf16.msra.mxu0 0
  %2242 = vmatprep.subr.bf16.mxu0 0
  %2243 = vmatpush1.bf16.msra.mxu0 0
  %2244 = vmatprep.subr.bf16.mxu0 0
  %2245 = vmatpush1.bf16.msra.mxu0 0
  %2246 = vmatprep.subr.bf16.mxu0 0
  %2247 = vmatpush1.bf16.msra.mxu0 0
  %2248 = vmatprep.subr.bf16.mxu0 0
  %2249 = vmatpush1.bf16.msra.mxu0 %v453
  %2250 = vmatprep.subr.bf16.mxu0 0
  %2251 = vmatpush1.bf16.msra.mxu0 %v422
  %2252 = vmatprep.subr.bf16.mxu0 0
  %2253 = vmatpush2.bf16.msra.mxu0 0
  %2254 = vmatprep.subr.bf16.mxu0 0
  %2255 = vmatpush2.bf16.msra.mxu0 0
  %2256 = vmatprep.subr.bf16.mxu0 0
  %2257 = vmatpush2.bf16.msra.mxu0 0
  %2258 = vmatprep.subr.bf16.mxu0 0
  %2259 = vmatpush2.bf16.msra.mxu0 0
  %2260 = vmatprep.subr.bf16.mxu0 0
  %2261 = vmatpush2.bf16.msra.mxu0 0
  %2262 = vmatprep.subr.bf16.mxu0 0
  %2263 = vmatpush2.bf16.msra.mxu0 0
  %2264 = vmatprep.subr.bf16.mxu0 0
  %2265 = vmatpush2.bf16.msra.mxu0 0
  %2266 = vmatprep.subr.bf16.mxu0 0
  %2267 = vmatpush2.bf16.msra.mxu0 0
  %2268 = vmatprep.mubr.bf16.mxu0 0
  %2269 = vmatmul.mubr.bf16.gmra.mxu0 %v518
  %v2270 = vpop.f32.mrf.mxu0
  %v2271 = vadd.f32 0.0, %v2270
  %v2272 = vpop.f32.mrf.mxu0
  %v2273 = vpop.f32.mrf.mxu0
  %v2274 = vadd.f32 0.0, %v2273
  %v2275 = vpop.f32.mrf.mxu0
  %2276 = vmatprep.mubr.bf16.mxu0 0
  %2277 = vmatmul.mubr.bf16.gmra.mxu0 %v521
  %v2278 = vpop.f32.mrf.mxu0
  %v2279 = vadd.f32 0.0, %v2278
  %v2280 = vpop.f32.mrf.mxu0
  %v2281 = vpop.f32.mrf.mxu0
  %v2282 = vadd.f32 0.0, %v2281
  %v2283 = vpop.f32.mrf.mxu0
  %2284 = vmatprep.mubr.bf16.mxu0 0
  %2285 = vmatmul.mubr.bf16.gmra.mxu0 %v524
  %v2286 = vpop.f32.mrf.mxu0
  %v2287 = vadd.f32 0.0, %v2286
  %v2288 = vpop.f32.mrf.mxu0
  %v2289 = vpop.f32.mrf.mxu0
  %v2290 = vadd.f32 0.0, %v2289
  %v2291 = vpop.f32.mrf.mxu0
  %2292 = vmatprep.mubr.bf16.mxu0 0
  %2293 = vmatmul.mubr.bf16.gmra.mxu0 %v527
  %v2294 = vpop.f32.mrf.mxu0
  %v2295 = vadd.f32 0.0, %v2294
  %v2296 = vpop.f32.mrf.mxu0
  %v2297 = vpop.f32.mrf.mxu0
  %v2298 = vadd.f32 0.0, %v2297
  %v2299 = vpop.f32.mrf.mxu0
  %2300 = vmatprep.mubr.bf16.mxu0 0
  %2301 = vmatmul.mubr.bf16.gmra.mxu0 %v530
  %v2302 = vpop.f32.mrf.mxu0
  %v2303 = vadd.f32 0.0, %v2302
  %v2304 = vpop.f32.mrf.mxu0
  %v2305 = vpop.f32.mrf.mxu0
  %v2306 = vadd.f32 0.0, %v2305
  %v2307 = vpop.f32.mrf.mxu0
  %2308 = vmatprep.mubr.bf16.mxu0 0
  %2309 = vmatmul.mubr.bf16.gmra.mxu0 %v533
  %v2310 = vpop.f32.mrf.mxu0
  %v2311 = vadd.f32 0.0, %v2310
  %v2312 = vpop.f32.mrf.mxu0
  %v2313 = vpop.f32.mrf.mxu0
  %v2314 = vadd.f32 0.0, %v2313
  %v2315 = vpop.f32.mrf.mxu0
  %2316 = vmatprep.mubr.bf16.mxu0 0
  %2317 = vmatmul.mubr.bf16.gmra.mxu0 %v536
  %v2318 = vpop.f32.mrf.mxu0
  %v2319 = vadd.f32 0.0, %v2318
  %v2320 = vpop.f32.mrf.mxu0
  %v2321 = vpop.f32.mrf.mxu0
  %v2322 = vadd.f32 0.0, %v2321
  %v2323 = vpop.f32.mrf.mxu0
  %2324 = vmatprep.mubr.bf16.mxu0 0
  %2325 = vmatmul.mubr.bf16.gmra.mxu0 %v539
  %v2326 = vpop.f32.mrf.mxu0
  %v2327 = vadd.f32 0.0, %v2326
  %v2328 = vpop.f32.mrf.mxu0
  %v2329 = vpop.f32.mrf.mxu0
  %v2330 = vadd.f32 0.0, %v2329
  %v2331 = vpop.f32.mrf.mxu0
  %2332 = vdwg.mxu0
  %v2333 = vlaneseq
  %v2334 = vshrl.u32 %v2333, 7
  %v2335 = vadd.s32 %v2334, 8
  %v2336 = vmax.f32 %v576, 0.0
  %v2337 = vmax.f32 %v580, 0.0
  %v2338 = vmax.f32 %v586, 0.0
  %v2339 = vmax.f32 %v590, 0.0
  %v2340 = vmax.f32 %v596, 0.0
  %v2341 = vmax.f32 %v600, 0.0
  %v2342 = vmax.f32 %v606, 0.0
  %v2343 = vmax.f32 %v610, 0.0
  %v2344 = vmax.f32 %v616, 0.0
  %v2345 = vmax.f32 %v620, 0.0
  %v2346 = vmax.f32 %v626, 0.0
  %v2347 = vmax.f32 %v630, 0.0
  %v2348 = vmax.f32 %v636, 0.0
  %v2349 = vmax.f32 %v640, 0.0
  %v2350 = vmax.f32 %v646, 0.0
  %v2351 = vmax.f32 %v650, 0.0
  %vm2352 = vcmp.lt.s32.totalorder %v2334, 16
  %vm2353 = vcmp.lt.s32.totalorder %v2335, 16
  %v2354 = vsel %vm2352, %v2336, 0.0
  %v2355 = vsel %vm2353, %v2337, 0.0
  %v2356 = vsel %vm2352, %v2338, 0.0
  %v2357 = vsel %vm2353, %v2339, 0.0
  %v2358 = vsel %vm2352, %v2340, 0.0
  %v2359 = vsel %vm2353, %v2341, 0.0
  %v2360 = vsel %vm2352, %v2342, 0.0
  %v2361 = vsel %vm2353, %v2343, 0.0
  %v2362 = vsel %vm2352, %v2344, 0.0
  %v2363 = vsel %vm2353, %v2345, 0.0
  %v2364 = vsel %vm2352, %v2346, 0.0
  %v2365 = vsel %vm2353, %v2347, 0.0
  %v2366 = vsel %vm2352, %v2348, 0.0
  %v2367 = vsel %vm2353, %v2349, 0.0
  %v2368 = vsel %vm2352, %v2350, 0.0
  %v2369 = vsel %vm2353, %v2351, 0.0
  %v2370 = vmax.f32 %v2354, %v2355
  %v2371 = vrot.slane %v2370, 4
  %v2372 = vmax.f32 %v2370, %v2371
  %v2373 = vrot.slane %v2372, 2
  %v2374 = vmax.f32 %v2372, %v2373
  %v2375 = vrot.slane %v2374, 1
  %v2376 = vmax.f32 %v2374, %v2375
  %v2377 = vmax.f32 %v2356, %v2357
  %v2378 = vrot.slane %v2377, 4
  %v2379 = vmax.f32 %v2377, %v2378
  %v2380 = vrot.slane %v2379, 2
  %v2381 = vmax.f32 %v2379, %v2380
  %v2382 = vrot.slane %v2381, 1
  %v2383 = vmax.f32 %v2381, %v2382
  %v2384 = vmax.f32 %v2358, %v2359
  %v2385 = vrot.slane %v2384, 4
  %v2386 = vmax.f32 %v2384, %v2385
  %v2387 = vrot.slane %v2386, 2
  %v2388 = vmax.f32 %v2386, %v2387
  %v2389 = vrot.slane %v2388, 1
  %v2390 = vmax.f32 %v2388, %v2389
  %v2391 = vmax.f32 %v2360, %v2361
  %v2392 = vrot.slane %v2391, 4
  %v2393 = vmax.f32 %v2391, %v2392
  %v2394 = vrot.slane %v2393, 2
  %v2395 = vmax.f32 %v2393, %v2394
  %v2396 = vrot.slane %v2395, 1
  %v2397 = vmax.f32 %v2395, %v2396
  %v2398 = vmax.f32 %v2362, %v2363
  %v2399 = vrot.slane %v2398, 4
  %v2400 = vmax.f32 %v2398, %v2399
  %v2401 = vrot.slane %v2400, 2
  %v2402 = vmax.f32 %v2400, %v2401
  %v2403 = vrot.slane %v2402, 1
  %v2404 = vmax.f32 %v2402, %v2403
  %v2405 = vmax.f32 %v2364, %v2365
  %v2406 = vrot.slane %v2405, 4
  %v2407 = vmax.f32 %v2405, %v2406
  %v2408 = vrot.slane %v2407, 2
  %v2409 = vmax.f32 %v2407, %v2408
  %v2410 = vrot.slane %v2409, 1
  %v2411 = vmax.f32 %v2409, %v2410
  %v2412 = vmax.f32 %v2366, %v2367
  %v2413 = vrot.slane %v2412, 4
  %v2414 = vmax.f32 %v2412, %v2413
  %v2415 = vrot.slane %v2414, 2
  %v2416 = vmax.f32 %v2414, %v2415
  %v2417 = vrot.slane %v2416, 1
  %v2418 = vmax.f32 %v2416, %v2417
  %v2419 = vmax.f32 %v2368, %v2369
  %v2420 = vrot.slane %v2419, 4
  %v2421 = vmax.f32 %v2419, %v2420
  %v2422 = vrot.slane %v2421, 2
  %v2423 = vmax.f32 %v2421, %v2422
  %v2424 = vrot.slane %v2423, 1
  %v2425 = vmax.f32 %v2423, %v2424
  %v2426 = vrot.slane %v689, 1
  %v2427 = vrot.slane %v693, 1
  %v2428 = vrot.slane %v699, 1
  %v2429 = vrot.slane %v703, 1
  %v2430 = vrot.slane %v709, 1
  %v2431 = vrot.slane %v713, 1
  %v2432 = vrot.slane %v719, 1
  %v2433 = vrot.slane %v723, 1
  %v2434 = vrot.slane %v729, 1
  %v2435 = vrot.slane %v733, 1
  %v2436 = vrot.slane %v739, 1
  %v2437 = vrot.slane %v743, 1
  %v2438 = vrot.slane %v749, 1
  %v2439 = vrot.slane %v753, 1
  %v2440 = vrot.slane %v759, 1
  %v2441 = vrot.slane %v763, 1
  %vm2442 = vcmp.lt.s32.totalorder %v2334, 7
  %v2443 = vsel %vm2442, %v2440, %v2441
  %v2444 = vsel %vm2442, %v2439, %v2440
  %v2445 = vsel %vm2442, %v2438, %v2439
  %v2446 = vsel %vm2442, %v2437, %v2438
  %v2447 = vsel %vm2442, %v2436, %v2437
  %v2448 = vsel %vm2442, %v2435, %v2436
  %v2449 = vsel %vm2442, %v2434, %v2435
  %v2450 = vsel %vm2442, %v2433, %v2434
  %v2451 = vsel %vm2442, %v2432, %v2433
  %v2452 = vsel %vm2442, %v2431, %v2432
  %v2453 = vsel %vm2442, %v2430, %v2431
  %v2454 = vsel %vm2442, %v2429, %v2430
  %v2455 = vsel %vm2442, %v2428, %v2429
  %v2456 = vsel %vm2442, %v2427, %v2428
  %v2457 = vsel %vm2442, %v2426, %v2427
  %v2458 = vsel %vm2442, %v2441, %v2426
  %v2459 = vadd.f32 %v578, %v2457
  %v2460 = vadd.f32 %v582, %v2456
  %v2461 = vadd.f32 %v588, %v2455
  %v2462 = vadd.f32 %v592, %v2454
  %v2463 = vadd.f32 %v598, %v2453
  %v2464 = vadd.f32 %v602, %v2452
  %v2465 = vadd.f32 %v608, %v2451
  %v2466 = vadd.f32 %v612, %v2450
  %v2467 = vadd.f32 %v618, %v2449
  %v2468 = vadd.f32 %v622, %v2448
  %v2469 = vadd.f32 %v628, %v2447
  %v2470 = vadd.f32 %v632, %v2446
  %v2471 = vadd.f32 %v638, %v2445
  %v2472 = vadd.f32 %v642, %v2444
  %v2473 = vadd.f32 %v648, %v2443
  %v2474 = vadd.f32 %v652, %v2458
  %v2475 = vmax.f32 %v2459, 0.0
  %v2476 = vmax.f32 %v2460, 0.0
  %v2477 = vmax.f32 %v2461, 0.0
  %v2478 = vmax.f32 %v2462, 0.0
  %v2479 = vmax.f32 %v2463, 0.0
  %v2480 = vmax.f32 %v2464, 0.0
  %v2481 = vmax.f32 %v2465, 0.0
  %v2482 = vmax.f32 %v2466, 0.0
  %v2483 = vmax.f32 %v2467, 0.0
  %v2484 = vmax.f32 %v2468, 0.0
  %v2485 = vmax.f32 %v2469, 0.0
  %v2486 = vmax.f32 %v2470, 0.0
  %v2487 = vmax.f32 %v2471, 0.0
  %v2488 = vmax.f32 %v2472, 0.0
  %v2489 = vmax.f32 %v2473, 0.0
  %v2490 = vmax.f32 %v2474, 0.0
  %vm2491 = vcmp.lt.s32.totalorder %v2334, 15
  %vm2492 = vcmp.lt.s32.totalorder %v2335, 15
  %v2493 = vsel %vm2491, %v2475, 0.0
  %v2494 = vsel %vm2492, %v2476, 0.0
  %v2495 = vsel %vm2491, %v2477, 0.0
  %v2496 = vsel %vm2492, %v2478, 0.0
  %v2497 = vsel %vm2491, %v2479, 0.0
  %v2498 = vsel %vm2492, %v2480, 0.0
  %v2499 = vsel %vm2491, %v2481, 0.0
  %v2500 = vsel %vm2492, %v2482, 0.0
  %v2501 = vsel %vm2491, %v2483, 0.0
  %v2502 = vsel %vm2492, %v2484, 0.0
  %v2503 = vsel %vm2491, %v2485, 0.0
  %v2504 = vsel %vm2492, %v2486, 0.0
  %v2505 = vsel %vm2491, %v2487, 0.0
  %v2506 = vsel %vm2492, %v2488, 0.0
  %v2507 = vsel %vm2491, %v2489, 0.0
  %v2508 = vsel %vm2492, %v2490, 0.0
  %v2509 = vmax.f32 %v2493, %v2494
  %v2510 = vrot.slane %v2509, 4
  %v2511 = vmax.f32 %v2509, %v2510
  %v2512 = vrot.slane %v2511, 2
  %v2513 = vmax.f32 %v2511, %v2512
  %v2514 = vrot.slane %v2513, 1
  %v2515 = vmax.f32 %v2513, %v2514
  %v2516 = vmax.f32 %v2495, %v2496
  %v2517 = vrot.slane %v2516, 4
  %v2518 = vmax.f32 %v2516, %v2517
  %v2519 = vrot.slane %v2518, 2
  %v2520 = vmax.f32 %v2518, %v2519
  %v2521 = vrot.slane %v2520, 1
  %v2522 = vmax.f32 %v2520, %v2521
  %v2523 = vmax.f32 %v2497, %v2498
  %v2524 = vrot.slane %v2523, 4
  %v2525 = vmax.f32 %v2523, %v2524
  %v2526 = vrot.slane %v2525, 2
  %v2527 = vmax.f32 %v2525, %v2526
  %v2528 = vrot.slane %v2527, 1
  %v2529 = vmax.f32 %v2527, %v2528
  %v2530 = vmax.f32 %v2499, %v2500
  %v2531 = vrot.slane %v2530, 4
  %v2532 = vmax.f32 %v2530, %v2531
  %v2533 = vrot.slane %v2532, 2
  %v2534 = vmax.f32 %v2532, %v2533
  %v2535 = vrot.slane %v2534, 1
  %v2536 = vmax.f32 %v2534, %v2535
  %v2537 = vmax.f32 %v2501, %v2502
  %v2538 = vrot.slane %v2537, 4
  %v2539 = vmax.f32 %v2537, %v2538
  %v2540 = vrot.slane %v2539, 2
  %v2541 = vmax.f32 %v2539, %v2540
  %v2542 = vrot.slane %v2541, 1
  %v2543 = vmax.f32 %v2541, %v2542
  %v2544 = vmax.f32 %v2503, %v2504
  %v2545 = vrot.slane %v2544, 4
  %v2546 = vmax.f32 %v2544, %v2545
  %v2547 = vrot.slane %v2546, 2
  %v2548 = vmax.f32 %v2546, %v2547
  %v2549 = vrot.slane %v2548, 1
  %v2550 = vmax.f32 %v2548, %v2549
  %v2551 = vmax.f32 %v2505, %v2506
  %v2552 = vrot.slane %v2551, 4
  %v2553 = vmax.f32 %v2551, %v2552
  %v2554 = vrot.slane %v2553, 2
  %v2555 = vmax.f32 %v2553, %v2554
  %v2556 = vrot.slane %v2555, 1
  %v2557 = vmax.f32 %v2555, %v2556
  %v2558 = vmax.f32 %v2507, %v2508
  %v2559 = vrot.slane %v2558, 4
  %v2560 = vmax.f32 %v2558, %v2559
  %v2561 = vrot.slane %v2560, 2
  %v2562 = vmax.f32 %v2560, %v2561
  %v2563 = vrot.slane %v2562, 1
  %v2564 = vmax.f32 %v2562, %v2563
  %v2565 = vrot.slane %v802, 1
  %v2566 = vrot.slane %v806, 1
  %v2567 = vrot.slane %v812, 1
  %v2568 = vrot.slane %v816, 1
  %v2569 = vrot.slane %v822, 1
  %v2570 = vrot.slane %v826, 1
  %v2571 = vrot.slane %v832, 1
  %v2572 = vrot.slane %v836, 1
  %v2573 = vrot.slane %v842, 1
  %v2574 = vrot.slane %v846, 1
  %v2575 = vrot.slane %v852, 1
  %v2576 = vrot.slane %v856, 1
  %v2577 = vrot.slane %v862, 1
  %v2578 = vrot.slane %v866, 1
  %v2579 = vrot.slane %v872, 1
  %v2580 = vrot.slane %v876, 1
  %v2581 = vsel %vm2442, %v2579, %v2580
  %v2582 = vsel %vm2442, %v2578, %v2579
  %v2583 = vsel %vm2442, %v2577, %v2578
  %v2584 = vsel %vm2442, %v2576, %v2577
  %v2585 = vsel %vm2442, %v2575, %v2576
  %v2586 = vsel %vm2442, %v2574, %v2575
  %v2587 = vsel %vm2442, %v2573, %v2574
  %v2588 = vsel %vm2442, %v2572, %v2573
  %v2589 = vsel %vm2442, %v2571, %v2572
  %v2590 = vsel %vm2442, %v2570, %v2571
  %v2591 = vsel %vm2442, %v2569, %v2570
  %v2592 = vsel %vm2442, %v2568, %v2569
  %v2593 = vsel %vm2442, %v2567, %v2568
  %v2594 = vsel %vm2442, %v2566, %v2567
  %v2595 = vsel %vm2442, %v2565, %v2566
  %v2596 = vsel %vm2442, %v2580, %v2565
  %v2597 = vadd.f32 %v691, %v2595
  %v2598 = vadd.f32 %v695, %v2594
  %v2599 = vadd.f32 %v701, %v2593
  %v2600 = vadd.f32 %v705, %v2592
  %v2601 = vadd.f32 %v711, %v2591
  %v2602 = vadd.f32 %v715, %v2590
  %v2603 = vadd.f32 %v721, %v2589
  %v2604 = vadd.f32 %v725, %v2588
  %v2605 = vadd.f32 %v731, %v2587
  %v2606 = vadd.f32 %v735, %v2586
  %v2607 = vadd.f32 %v741, %v2585
  %v2608 = vadd.f32 %v745, %v2584
  %v2609 = vadd.f32 %v751, %v2583
  %v2610 = vadd.f32 %v755, %v2582
  %v2611 = vadd.f32 %v761, %v2581
  %v2612 = vadd.f32 %v765, %v2596
  %v2613 = vrot.slane %v804, 2
  %v2614 = vrot.slane %v808, 2
  %v2615 = vrot.slane %v814, 2
  %v2616 = vrot.slane %v818, 2
  %v2617 = vrot.slane %v824, 2
  %v2618 = vrot.slane %v828, 2
  %v2619 = vrot.slane %v834, 2
  %v2620 = vrot.slane %v838, 2
  %v2621 = vrot.slane %v844, 2
  %v2622 = vrot.slane %v848, 2
  %v2623 = vrot.slane %v854, 2
  %v2624 = vrot.slane %v858, 2
  %v2625 = vrot.slane %v864, 2
  %v2626 = vrot.slane %v868, 2
  %v2627 = vrot.slane %v874, 2
  %v2628 = vrot.slane %v878, 2
  %vm2629 = vcmp.lt.s32.totalorder %v2334, 6
  %v2630 = vsel %vm2629, %v2627, %v2628
  %v2631 = vsel %vm2629, %v2626, %v2627
  %v2632 = vsel %vm2629, %v2625, %v2626
  %v2633 = vsel %vm2629, %v2624, %v2625
  %v2634 = vsel %vm2629, %v2623, %v2624
  %v2635 = vsel %vm2629, %v2622, %v2623
  %v2636 = vsel %vm2629, %v2621, %v2622
  %v2637 = vsel %vm2629, %v2620, %v2621
  %v2638 = vsel %vm2629, %v2619, %v2620
  %v2639 = vsel %vm2629, %v2618, %v2619
  %v2640 = vsel %vm2629, %v2617, %v2618
  %v2641 = vsel %vm2629, %v2616, %v2617
  %v2642 = vsel %vm2629, %v2615, %v2616
  %v2643 = vsel %vm2629, %v2614, %v2615
  %v2644 = vsel %vm2629, %v2613, %v2614
  %v2645 = vsel %vm2629, %v2628, %v2613
  %v2646 = vadd.f32 %v2597, %v2644
  %v2647 = vadd.f32 %v2598, %v2643
  %v2648 = vadd.f32 %v2599, %v2642
  %v2649 = vadd.f32 %v2600, %v2641
  %v2650 = vadd.f32 %v2601, %v2640
  %v2651 = vadd.f32 %v2602, %v2639
  %v2652 = vadd.f32 %v2603, %v2638
  %v2653 = vadd.f32 %v2604, %v2637
  %v2654 = vadd.f32 %v2605, %v2636
  %v2655 = vadd.f32 %v2606, %v2635
  %v2656 = vadd.f32 %v2607, %v2634
  %v2657 = vadd.f32 %v2608, %v2633
  %v2658 = vadd.f32 %v2609, %v2632
  %v2659 = vadd.f32 %v2610, %v2631
  %v2660 = vadd.f32 %v2611, %v2630
  %v2661 = vadd.f32 %v2612, %v2645
  %v2662 = vrot.slane %v915, 3
  %v2663 = vrot.slane %v919, 3
  %v2664 = vrot.slane %v925, 3
  %v2665 = vrot.slane %v929, 3
  %v2666 = vrot.slane %v935, 3
  %v2667 = vrot.slane %v939, 3
  %v2668 = vrot.slane %v945, 3
  %v2669 = vrot.slane %v949, 3
  %v2670 = vrot.slane %v955, 3
  %v2671 = vrot.slane %v959, 3
  %v2672 = vrot.slane %v965, 3
  %v2673 = vrot.slane %v969, 3
  %v2674 = vrot.slane %v975, 3
  %v2675 = vrot.slane %v979, 3
  %v2676 = vrot.slane %v985, 3
  %v2677 = vrot.slane %v989, 3
  %vm2678 = vcmp.lt.s32.totalorder %v2334, 5
  %v2679 = vsel %vm2678, %v2676, %v2677
  %v2680 = vsel %vm2678, %v2675, %v2676
  %v2681 = vsel %vm2678, %v2674, %v2675
  %v2682 = vsel %vm2678, %v2673, %v2674
  %v2683 = vsel %vm2678, %v2672, %v2673
  %v2684 = vsel %vm2678, %v2671, %v2672
  %v2685 = vsel %vm2678, %v2670, %v2671
  %v2686 = vsel %vm2678, %v2669, %v2670
  %v2687 = vsel %vm2678, %v2668, %v2669
  %v2688 = vsel %vm2678, %v2667, %v2668
  %v2689 = vsel %vm2678, %v2666, %v2667
  %v2690 = vsel %vm2678, %v2665, %v2666
  %v2691 = vsel %vm2678, %v2664, %v2665
  %v2692 = vsel %vm2678, %v2663, %v2664
  %v2693 = vsel %vm2678, %v2662, %v2663
  %v2694 = vsel %vm2678, %v2677, %v2662
  %v2695 = vadd.f32 %v2646, %v2693
  %v2696 = vadd.f32 %v2647, %v2692
  %v2697 = vadd.f32 %v2648, %v2691
  %v2698 = vadd.f32 %v2649, %v2690
  %v2699 = vadd.f32 %v2650, %v2689
  %v2700 = vadd.f32 %v2651, %v2688
  %v2701 = vadd.f32 %v2652, %v2687
  %v2702 = vadd.f32 %v2653, %v2686
  %v2703 = vadd.f32 %v2654, %v2685
  %v2704 = vadd.f32 %v2655, %v2684
  %v2705 = vadd.f32 %v2656, %v2683
  %v2706 = vadd.f32 %v2657, %v2682
  %v2707 = vadd.f32 %v2658, %v2681
  %v2708 = vadd.f32 %v2659, %v2680
  %v2709 = vadd.f32 %v2660, %v2679
  %v2710 = vadd.f32 %v2661, %v2694
  %v2711 = vmax.f32 %v2695, 0.0
  %v2712 = vmax.f32 %v2696, 0.0
  %v2713 = vmax.f32 %v2697, 0.0
  %v2714 = vmax.f32 %v2698, 0.0
  %v2715 = vmax.f32 %v2699, 0.0
  %v2716 = vmax.f32 %v2700, 0.0
  %v2717 = vmax.f32 %v2701, 0.0
  %v2718 = vmax.f32 %v2702, 0.0
  %v2719 = vmax.f32 %v2703, 0.0
  %v2720 = vmax.f32 %v2704, 0.0
  %v2721 = vmax.f32 %v2705, 0.0
  %v2722 = vmax.f32 %v2706, 0.0
  %v2723 = vmax.f32 %v2707, 0.0
  %v2724 = vmax.f32 %v2708, 0.0
  %v2725 = vmax.f32 %v2709, 0.0
  %v2726 = vmax.f32 %v2710, 0.0
  %vm2727 = vcmp.lt.s32.totalorder %v2334, 13
  %vm2728 = vcmp.lt.s32.totalorder %v2335, 13
  %v2729 = vsel %vm2727, %v2711, 0.0
  %v2730 = vsel %vm2728, %v2712, 0.0
  %v2731 = vsel %vm2727, %v2713, 0.0
  %v2732 = vsel %vm2728, %v2714, 0.0
  %v2733 = vsel %vm2727, %v2715, 0.0
  %v2734 = vsel %vm2728, %v2716, 0.0
  %v2735 = vsel %vm2727, %v2717, 0.0
  %v2736 = vsel %vm2728, %v2718, 0.0
  %v2737 = vsel %vm2727, %v2719, 0.0
  %v2738 = vsel %vm2728, %v2720, 0.0
  %v2739 = vsel %vm2727, %v2721, 0.0
  %v2740 = vsel %vm2728, %v2722, 0.0
  %v2741 = vsel %vm2727, %v2723, 0.0
  %v2742 = vsel %vm2728, %v2724, 0.0
  %v2743 = vsel %vm2727, %v2725, 0.0
  %v2744 = vsel %vm2728, %v2726, 0.0
  %v2745 = vmax.f32 %v2729, %v2730
  %v2746 = vrot.slane %v2745, 4
  %v2747 = vmax.f32 %v2745, %v2746
  %v2748 = vrot.slane %v2747, 2
  %v2749 = vmax.f32 %v2747, %v2748
  %v2750 = vrot.slane %v2749, 1
  %v2751 = vmax.f32 %v2749, %v2750
  %v2752 = vmax.f32 %v2731, %v2732
  %v2753 = vrot.slane %v2752, 4
  %v2754 = vmax.f32 %v2752, %v2753
  %v2755 = vrot.slane %v2754, 2
  %v2756 = vmax.f32 %v2754, %v2755
  %v2757 = vrot.slane %v2756, 1
  %v2758 = vmax.f32 %v2756, %v2757
  %v2759 = vmax.f32 %v2733, %v2734
  %v2760 = vrot.slane %v2759, 4
  %v2761 = vmax.f32 %v2759, %v2760
  %v2762 = vrot.slane %v2761, 2
  %v2763 = vmax.f32 %v2761, %v2762
  %v2764 = vrot.slane %v2763, 1
  %v2765 = vmax.f32 %v2763, %v2764
  %v2766 = vmax.f32 %v2735, %v2736
  %v2767 = vrot.slane %v2766, 4
  %v2768 = vmax.f32 %v2766, %v2767
  %v2769 = vrot.slane %v2768, 2
  %v2770 = vmax.f32 %v2768, %v2769
  %v2771 = vrot.slane %v2770, 1
  %v2772 = vmax.f32 %v2770, %v2771
  %v2773 = vmax.f32 %v2737, %v2738
  %v2774 = vrot.slane %v2773, 4
  %v2775 = vmax.f32 %v2773, %v2774
  %v2776 = vrot.slane %v2775, 2
  %v2777 = vmax.f32 %v2775, %v2776
  %v2778 = vrot.slane %v2777, 1
  %v2779 = vmax.f32 %v2777, %v2778
  %v2780 = vmax.f32 %v2739, %v2740
  %v2781 = vrot.slane %v2780, 4
  %v2782 = vmax.f32 %v2780, %v2781
  %v2783 = vrot.slane %v2782, 2
  %v2784 = vmax.f32 %v2782, %v2783
  %v2785 = vrot.slane %v2784, 1
  %v2786 = vmax.f32 %v2784, %v2785
  %v2787 = vmax.f32 %v2741, %v2742
  %v2788 = vrot.slane %v2787, 4
  %v2789 = vmax.f32 %v2787, %v2788
  %v2790 = vrot.slane %v2789, 2
  %v2791 = vmax.f32 %v2789, %v2790
  %v2792 = vrot.slane %v2791, 1
  %v2793 = vmax.f32 %v2791, %v2792
  %v2794 = vmax.f32 %v2743, %v2744
  %v2795 = vrot.slane %v2794, 4
  %v2796 = vmax.f32 %v2794, %v2795
  %v2797 = vrot.slane %v2796, 2
  %v2798 = vmax.f32 %v2796, %v2797
  %v2799 = vrot.slane %v2798, 1
  %v2800 = vmax.f32 %v2798, %v2799
  %v2801 = vrot.slane %v1028, 1
  %v2802 = vrot.slane %v1032, 1
  %v2803 = vrot.slane %v1038, 1
  %v2804 = vrot.slane %v1042, 1
  %v2805 = vrot.slane %v1048, 1
  %v2806 = vrot.slane %v1052, 1
  %v2807 = vrot.slane %v1058, 1
  %v2808 = vrot.slane %v1062, 1
  %v2809 = vrot.slane %v1068, 1
  %v2810 = vrot.slane %v1072, 1
  %v2811 = vrot.slane %v1078, 1
  %v2812 = vrot.slane %v1082, 1
  %v2813 = vrot.slane %v1088, 1
  %v2814 = vrot.slane %v1092, 1
  %v2815 = vrot.slane %v1098, 1
  %v2816 = vrot.slane %v1102, 1
  %v2817 = vsel %vm2442, %v2815, %v2816
  %v2818 = vsel %vm2442, %v2814, %v2815
  %v2819 = vsel %vm2442, %v2813, %v2814
  %v2820 = vsel %vm2442, %v2812, %v2813
  %v2821 = vsel %vm2442, %v2811, %v2812
  %v2822 = vsel %vm2442, %v2810, %v2811
  %v2823 = vsel %vm2442, %v2809, %v2810
  %v2824 = vsel %vm2442, %v2808, %v2809
  %v2825 = vsel %vm2442, %v2807, %v2808
  %v2826 = vsel %vm2442, %v2806, %v2807
  %v2827 = vsel %vm2442, %v2805, %v2806
  %v2828 = vsel %vm2442, %v2804, %v2805
  %v2829 = vsel %vm2442, %v2803, %v2804
  %v2830 = vsel %vm2442, %v2802, %v2803
  %v2831 = vsel %vm2442, %v2801, %v2802
  %v2832 = vsel %vm2442, %v2816, %v2801
  %v2833 = vadd.f32 %v917, %v2831
  %v2834 = vadd.f32 %v921, %v2830
  %v2835 = vadd.f32 %v927, %v2829
  %v2836 = vadd.f32 %v931, %v2828
  %v2837 = vadd.f32 %v937, %v2827
  %v2838 = vadd.f32 %v941, %v2826
  %v2839 = vadd.f32 %v947, %v2825
  %v2840 = vadd.f32 %v951, %v2824
  %v2841 = vadd.f32 %v957, %v2823
  %v2842 = vadd.f32 %v961, %v2822
  %v2843 = vadd.f32 %v967, %v2821
  %v2844 = vadd.f32 %v971, %v2820
  %v2845 = vadd.f32 %v977, %v2819
  %v2846 = vadd.f32 %v981, %v2818
  %v2847 = vadd.f32 %v987, %v2817
  %v2848 = vadd.f32 %v991, %v2832
  %v2849 = vrot.slane %v1030, 2
  %v2850 = vrot.slane %v1034, 2
  %v2851 = vrot.slane %v1040, 2
  %v2852 = vrot.slane %v1044, 2
  %v2853 = vrot.slane %v1050, 2
  %v2854 = vrot.slane %v1054, 2
  %v2855 = vrot.slane %v1060, 2
  %v2856 = vrot.slane %v1064, 2
  %v2857 = vrot.slane %v1070, 2
  %v2858 = vrot.slane %v1074, 2
  %v2859 = vrot.slane %v1080, 2
  %v2860 = vrot.slane %v1084, 2
  %v2861 = vrot.slane %v1090, 2
  %v2862 = vrot.slane %v1094, 2
  %v2863 = vrot.slane %v1100, 2
  %v2864 = vrot.slane %v1104, 2
  %v2865 = vsel %vm2629, %v2863, %v2864
  %v2866 = vsel %vm2629, %v2862, %v2863
  %v2867 = vsel %vm2629, %v2861, %v2862
  %v2868 = vsel %vm2629, %v2860, %v2861
  %v2869 = vsel %vm2629, %v2859, %v2860
  %v2870 = vsel %vm2629, %v2858, %v2859
  %v2871 = vsel %vm2629, %v2857, %v2858
  %v2872 = vsel %vm2629, %v2856, %v2857
  %v2873 = vsel %vm2629, %v2855, %v2856
  %v2874 = vsel %vm2629, %v2854, %v2855
  %v2875 = vsel %vm2629, %v2853, %v2854
  %v2876 = vsel %vm2629, %v2852, %v2853
  %v2877 = vsel %vm2629, %v2851, %v2852
  %v2878 = vsel %vm2629, %v2850, %v2851
  %v2879 = vsel %vm2629, %v2849, %v2850
  %v2880 = vsel %vm2629, %v2864, %v2849
  %v2881 = vadd.f32 %v2833, %v2879
  %v2882 = vadd.f32 %v2834, %v2878
  %v2883 = vadd.f32 %v2835, %v2877
  %v2884 = vadd.f32 %v2836, %v2876
  %v2885 = vadd.f32 %v2837, %v2875
  %v2886 = vadd.f32 %v2838, %v2874
  %v2887 = vadd.f32 %v2839, %v2873
  %v2888 = vadd.f32 %v2840, %v2872
  %v2889 = vadd.f32 %v2841, %v2871
  %v2890 = vadd.f32 %v2842, %v2870
  %v2891 = vadd.f32 %v2843, %v2869
  %v2892 = vadd.f32 %v2844, %v2868
  %v2893 = vadd.f32 %v2845, %v2867
  %v2894 = vadd.f32 %v2846, %v2866
  %v2895 = vadd.f32 %v2847, %v2865
  %v2896 = vadd.f32 %v2848, %v2880
  %v2897 = vrot.slane %v1141, 3
  %v2898 = vrot.slane %v1145, 3
  %v2899 = vrot.slane %v1151, 3
  %v2900 = vrot.slane %v1155, 3
  %v2901 = vrot.slane %v1161, 3
  %v2902 = vrot.slane %v1165, 3
  %v2903 = vrot.slane %v1171, 3
  %v2904 = vrot.slane %v1175, 3
  %v2905 = vrot.slane %v1181, 3
  %v2906 = vrot.slane %v1185, 3
  %v2907 = vrot.slane %v1191, 3
  %v2908 = vrot.slane %v1195, 3
  %v2909 = vrot.slane %v1201, 3
  %v2910 = vrot.slane %v1205, 3
  %v2911 = vrot.slane %v1211, 3
  %v2912 = vrot.slane %v1215, 3
  %v2913 = vsel %vm2678, %v2911, %v2912
  %v2914 = vsel %vm2678, %v2910, %v2911
  %v2915 = vsel %vm2678, %v2909, %v2910
  %v2916 = vsel %vm2678, %v2908, %v2909
  %v2917 = vsel %vm2678, %v2907, %v2908
  %v2918 = vsel %vm2678, %v2906, %v2907
  %v2919 = vsel %vm2678, %v2905, %v2906
  %v2920 = vsel %vm2678, %v2904, %v2905
  %v2921 = vsel %vm2678, %v2903, %v2904
  %v2922 = vsel %vm2678, %v2902, %v2903
  %v2923 = vsel %vm2678, %v2901, %v2902
  %v2924 = vsel %vm2678, %v2900, %v2901
  %v2925 = vsel %vm2678, %v2899, %v2900
  %v2926 = vsel %vm2678, %v2898, %v2899
  %v2927 = vsel %vm2678, %v2897, %v2898
  %v2928 = vsel %vm2678, %v2912, %v2897
  %v2929 = vadd.f32 %v2881, %v2927
  %v2930 = vadd.f32 %v2882, %v2926
  %v2931 = vadd.f32 %v2883, %v2925
  %v2932 = vadd.f32 %v2884, %v2924
  %v2933 = vadd.f32 %v2885, %v2923
  %v2934 = vadd.f32 %v2886, %v2922
  %v2935 = vadd.f32 %v2887, %v2921
  %v2936 = vadd.f32 %v2888, %v2920
  %v2937 = vadd.f32 %v2889, %v2919
  %v2938 = vadd.f32 %v2890, %v2918
  %v2939 = vadd.f32 %v2891, %v2917
  %v2940 = vadd.f32 %v2892, %v2916
  %v2941 = vadd.f32 %v2893, %v2915
  %v2942 = vadd.f32 %v2894, %v2914
  %v2943 = vadd.f32 %v2895, %v2913
  %v2944 = vadd.f32 %v2896, %v2928
  %v2945 = vrot.slane %v1143, 4
  %v2946 = vrot.slane %v1147, 4
  %v2947 = vrot.slane %v1153, 4
  %v2948 = vrot.slane %v1157, 4
  %v2949 = vrot.slane %v1163, 4
  %v2950 = vrot.slane %v1167, 4
  %v2951 = vrot.slane %v1173, 4
  %v2952 = vrot.slane %v1177, 4
  %v2953 = vrot.slane %v1183, 4
  %v2954 = vrot.slane %v1187, 4
  %v2955 = vrot.slane %v1193, 4
  %v2956 = vrot.slane %v1197, 4
  %v2957 = vrot.slane %v1203, 4
  %v2958 = vrot.slane %v1207, 4
  %v2959 = vrot.slane %v1213, 4
  %v2960 = vrot.slane %v1217, 4
  %vm2961 = vcmp.lt.s32.totalorder %v2334, 4
  %v2962 = vsel %vm2961, %v2959, %v2960
  %v2963 = vsel %vm2961, %v2958, %v2959
  %v2964 = vsel %vm2961, %v2957, %v2958
  %v2965 = vsel %vm2961, %v2956, %v2957
  %v2966 = vsel %vm2961, %v2955, %v2956
  %v2967 = vsel %vm2961, %v2954, %v2955
  %v2968 = vsel %vm2961, %v2953, %v2954
  %v2969 = vsel %vm2961, %v2952, %v2953
  %v2970 = vsel %vm2961, %v2951, %v2952
  %v2971 = vsel %vm2961, %v2950, %v2951
  %v2972 = vsel %vm2961, %v2949, %v2950
  %v2973 = vsel %vm2961, %v2948, %v2949
  %v2974 = vsel %vm2961, %v2947, %v2948
  %v2975 = vsel %vm2961, %v2946, %v2947
  %v2976 = vsel %vm2961, %v2945, %v2946
  %v2977 = vsel %vm2961, %v2960, %v2945
  %v2978 = vadd.f32 %v2929, %v2976
  %v2979 = vadd.f32 %v2930, %v2975
  %v2980 = vadd.f32 %v2931, %v2974
  %v2981 = vadd.f32 %v2932, %v2973
  %v2982 = vadd.f32 %v2933, %v2972
  %v2983 = vadd.f32 %v2934, %v2971
  %v2984 = vadd.f32 %v2935, %v2970
  %v2985 = vadd.f32 %v2936, %v2969
  %v2986 = vadd.f32 %v2937, %v2968
  %v2987 = vadd.f32 %v2938, %v2967
  %v2988 = vadd.f32 %v2939, %v2966
  %v2989 = vadd.f32 %v2940, %v2965
  %v2990 = vadd.f32 %v2941, %v2964
  %v2991 = vadd.f32 %v2942, %v2963
  %v2992 = vadd.f32 %v2943, %v2962
  %v2993 = vadd.f32 %v2944, %v2977
  %v2994 = vrot.slane %v1254, 5
  %v2995 = vrot.slane %v1258, 5
  %v2996 = vrot.slane %v1264, 5
  %v2997 = vrot.slane %v1268, 5
  %v2998 = vrot.slane %v1274, 5
  %v2999 = vrot.slane %v1278, 5
  %v3000 = vrot.slane %v1284, 5
  %v3001 = vrot.slane %v1288, 5
  %v3002 = vrot.slane %v1294, 5
  %v3003 = vrot.slane %v1298, 5
  %v3004 = vrot.slane %v1304, 5
  %v3005 = vrot.slane %v1308, 5
  %v3006 = vrot.slane %v1314, 5
  %v3007 = vrot.slane %v1318, 5
  %v3008 = vrot.slane %v1324, 5
  %v3009 = vrot.slane %v1328, 5
  %vm3010 = vcmp.lt.s32.totalorder %v2334, 3
  %v3011 = vsel %vm3010, %v3008, %v3009
  %v3012 = vsel %vm3010, %v3007, %v3008
  %v3013 = vsel %vm3010, %v3006, %v3007
  %v3014 = vsel %vm3010, %v3005, %v3006
  %v3015 = vsel %vm3010, %v3004, %v3005
  %v3016 = vsel %vm3010, %v3003, %v3004
  %v3017 = vsel %vm3010, %v3002, %v3003
  %v3018 = vsel %vm3010, %v3001, %v3002
  %v3019 = vsel %vm3010, %v3000, %v3001
  %v3020 = vsel %vm3010, %v2999, %v3000
  %v3021 = vsel %vm3010, %v2998, %v2999
  %v3022 = vsel %vm3010, %v2997, %v2998
  %v3023 = vsel %vm3010, %v2996, %v2997
  %v3024 = vsel %vm3010, %v2995, %v2996
  %v3025 = vsel %vm3010, %v2994, %v2995
  %v3026 = vsel %vm3010, %v3009, %v2994
  %v3027 = vadd.f32 %v2978, %v3025
  %v3028 = vadd.f32 %v2979, %v3024
  %v3029 = vadd.f32 %v2980, %v3023
  %v3030 = vadd.f32 %v2981, %v3022
  %v3031 = vadd.f32 %v2982, %v3021
  %v3032 = vadd.f32 %v2983, %v3020
  %v3033 = vadd.f32 %v2984, %v3019
  %v3034 = vadd.f32 %v2985, %v3018
  %v3035 = vadd.f32 %v2986, %v3017
  %v3036 = vadd.f32 %v2987, %v3016
  %v3037 = vadd.f32 %v2988, %v3015
  %v3038 = vadd.f32 %v2989, %v3014
  %v3039 = vadd.f32 %v2990, %v3013
  %v3040 = vadd.f32 %v2991, %v3012
  %v3041 = vadd.f32 %v2992, %v3011
  %v3042 = vadd.f32 %v2993, %v3026
  %v3043 = vrot.slane %v1256, 6
  %v3044 = vrot.slane %v1260, 6
  %v3045 = vrot.slane %v1266, 6
  %v3046 = vrot.slane %v1270, 6
  %v3047 = vrot.slane %v1276, 6
  %v3048 = vrot.slane %v1280, 6
  %v3049 = vrot.slane %v1286, 6
  %v3050 = vrot.slane %v1290, 6
  %v3051 = vrot.slane %v1296, 6
  %v3052 = vrot.slane %v1300, 6
  %v3053 = vrot.slane %v1306, 6
  %v3054 = vrot.slane %v1310, 6
  %v3055 = vrot.slane %v1316, 6
  %v3056 = vrot.slane %v1320, 6
  %v3057 = vrot.slane %v1326, 6
  %v3058 = vrot.slane %v1330, 6
  %vm3059 = vcmp.lt.s32.totalorder %v2334, 2
  %v3060 = vsel %vm3059, %v3057, %v3058
  %v3061 = vsel %vm3059, %v3056, %v3057
  %v3062 = vsel %vm3059, %v3055, %v3056
  %v3063 = vsel %vm3059, %v3054, %v3055
  %v3064 = vsel %vm3059, %v3053, %v3054
  %v3065 = vsel %vm3059, %v3052, %v3053
  %v3066 = vsel %vm3059, %v3051, %v3052
  %v3067 = vsel %vm3059, %v3050, %v3051
  %v3068 = vsel %vm3059, %v3049, %v3050
  %v3069 = vsel %vm3059, %v3048, %v3049
  %v3070 = vsel %vm3059, %v3047, %v3048
  %v3071 = vsel %vm3059, %v3046, %v3047
  %v3072 = vsel %vm3059, %v3045, %v3046
  %v3073 = vsel %vm3059, %v3044, %v3045
  %v3074 = vsel %vm3059, %v3043, %v3044
  %v3075 = vsel %vm3059, %v3058, %v3043
  %v3076 = vadd.f32 %v3027, %v3074
  %v3077 = vadd.f32 %v3028, %v3073
  %v3078 = vadd.f32 %v3029, %v3072
  %v3079 = vadd.f32 %v3030, %v3071
  %v3080 = vadd.f32 %v3031, %v3070
  %v3081 = vadd.f32 %v3032, %v3069
  %v3082 = vadd.f32 %v3033, %v3068
  %v3083 = vadd.f32 %v3034, %v3067
  %v3084 = vadd.f32 %v3035, %v3066
  %v3085 = vadd.f32 %v3036, %v3065
  %v3086 = vadd.f32 %v3037, %v3064
  %v3087 = vadd.f32 %v3038, %v3063
  %v3088 = vadd.f32 %v3039, %v3062
  %v3089 = vadd.f32 %v3040, %v3061
  %v3090 = vadd.f32 %v3041, %v3060
  %v3091 = vadd.f32 %v3042, %v3075
  %v3092 = vrot.slane %v1367, 7
  %v3093 = vrot.slane %v1371, 7
  %v3094 = vrot.slane %v1377, 7
  %v3095 = vrot.slane %v1381, 7
  %v3096 = vrot.slane %v1387, 7
  %v3097 = vrot.slane %v1391, 7
  %v3098 = vrot.slane %v1397, 7
  %v3099 = vrot.slane %v1401, 7
  %v3100 = vrot.slane %v1407, 7
  %v3101 = vrot.slane %v1411, 7
  %v3102 = vrot.slane %v1417, 7
  %v3103 = vrot.slane %v1421, 7
  %v3104 = vrot.slane %v1427, 7
  %v3105 = vrot.slane %v1431, 7
  %v3106 = vrot.slane %v1437, 7
  %v3107 = vrot.slane %v1441, 7
  %vm3108 = vcmp.lt.s32.totalorder %v2334, 1
  %v3109 = vsel %vm3108, %v3106, %v3107
  %v3110 = vsel %vm3108, %v3105, %v3106
  %v3111 = vsel %vm3108, %v3104, %v3105
  %v3112 = vsel %vm3108, %v3103, %v3104
  %v3113 = vsel %vm3108, %v3102, %v3103
  %v3114 = vsel %vm3108, %v3101, %v3102
  %v3115 = vsel %vm3108, %v3100, %v3101
  %v3116 = vsel %vm3108, %v3099, %v3100
  %v3117 = vsel %vm3108, %v3098, %v3099
  %v3118 = vsel %vm3108, %v3097, %v3098
  %v3119 = vsel %vm3108, %v3096, %v3097
  %v3120 = vsel %vm3108, %v3095, %v3096
  %v3121 = vsel %vm3108, %v3094, %v3095
  %v3122 = vsel %vm3108, %v3093, %v3094
  %v3123 = vsel %vm3108, %v3092, %v3093
  %v3124 = vsel %vm3108, %v3107, %v3092
  %v3125 = vadd.f32 %v3076, %v3123
  %v3126 = vadd.f32 %v3077, %v3122
  %v3127 = vadd.f32 %v3078, %v3121
  %v3128 = vadd.f32 %v3079, %v3120
  %v3129 = vadd.f32 %v3080, %v3119
  %v3130 = vadd.f32 %v3081, %v3118
  %v3131 = vadd.f32 %v3082, %v3117
  %v3132 = vadd.f32 %v3083, %v3116
  %v3133 = vadd.f32 %v3084, %v3115
  %v3134 = vadd.f32 %v3085, %v3114
  %v3135 = vadd.f32 %v3086, %v3113
  %v3136 = vadd.f32 %v3087, %v3112
  %v3137 = vadd.f32 %v3088, %v3111
  %v3138 = vadd.f32 %v3089, %v3110
  %v3139 = vadd.f32 %v3090, %v3109
  %v3140 = vadd.f32 %v3091, %v3124
  %v3141 = vmax.f32 %v3125, 0.0
  %v3142 = vmax.f32 %v3126, 0.0
  %v3143 = vmax.f32 %v3127, 0.0
  %v3144 = vmax.f32 %v3128, 0.0
  %v3145 = vmax.f32 %v3129, 0.0
  %v3146 = vmax.f32 %v3130, 0.0
  %v3147 = vmax.f32 %v3131, 0.0
  %v3148 = vmax.f32 %v3132, 0.0
  %v3149 = vmax.f32 %v3133, 0.0
  %v3150 = vmax.f32 %v3134, 0.0
  %v3151 = vmax.f32 %v3135, 0.0
  %v3152 = vmax.f32 %v3136, 0.0
  %v3153 = vmax.f32 %v3137, 0.0
  %v3154 = vmax.f32 %v3138, 0.0
  %v3155 = vmax.f32 %v3139, 0.0
  %v3156 = vmax.f32 %v3140, 0.0
  %vm3157 = vcmp.lt.s32.totalorder %v2334, 9
  %vm3158 = vcmp.lt.s32.totalorder %v2335, 9
  %v3159 = vsel %vm3157, %v3141, 0.0
  %v3160 = vsel %vm3158, %v3142, 0.0
  %v3161 = vsel %vm3157, %v3143, 0.0
  %v3162 = vsel %vm3158, %v3144, 0.0
  %v3163 = vsel %vm3157, %v3145, 0.0
  %v3164 = vsel %vm3158, %v3146, 0.0
  %v3165 = vsel %vm3157, %v3147, 0.0
  %v3166 = vsel %vm3158, %v3148, 0.0
  %v3167 = vsel %vm3157, %v3149, 0.0
  %v3168 = vsel %vm3158, %v3150, 0.0
  %v3169 = vsel %vm3157, %v3151, 0.0
  %v3170 = vsel %vm3158, %v3152, 0.0
  %v3171 = vsel %vm3157, %v3153, 0.0
  %v3172 = vsel %vm3158, %v3154, 0.0
  %v3173 = vsel %vm3157, %v3155, 0.0
  %v3174 = vsel %vm3158, %v3156, 0.0
  %v3175 = vmax.f32 %v3159, %v3160
  %v3176 = vrot.slane %v3175, 4
  %v3177 = vmax.f32 %v3175, %v3176
  %v3178 = vrot.slane %v3177, 2
  %v3179 = vmax.f32 %v3177, %v3178
  %v3180 = vrot.slane %v3179, 1
  %v3181 = vmax.f32 %v3179, %v3180
  %v3182 = vmax.f32 %v3161, %v3162
  %v3183 = vrot.slane %v3182, 4
  %v3184 = vmax.f32 %v3182, %v3183
  %v3185 = vrot.slane %v3184, 2
  %v3186 = vmax.f32 %v3184, %v3185
  %v3187 = vrot.slane %v3186, 1
  %v3188 = vmax.f32 %v3186, %v3187
  %v3189 = vmax.f32 %v3163, %v3164
  %v3190 = vrot.slane %v3189, 4
  %v3191 = vmax.f32 %v3189, %v3190
  %v3192 = vrot.slane %v3191, 2
  %v3193 = vmax.f32 %v3191, %v3192
  %v3194 = vrot.slane %v3193, 1
  %v3195 = vmax.f32 %v3193, %v3194
  %v3196 = vmax.f32 %v3165, %v3166
  %v3197 = vrot.slane %v3196, 4
  %v3198 = vmax.f32 %v3196, %v3197
  %v3199 = vrot.slane %v3198, 2
  %v3200 = vmax.f32 %v3198, %v3199
  %v3201 = vrot.slane %v3200, 1
  %v3202 = vmax.f32 %v3200, %v3201
  %v3203 = vmax.f32 %v3167, %v3168
  %v3204 = vrot.slane %v3203, 4
  %v3205 = vmax.f32 %v3203, %v3204
  %v3206 = vrot.slane %v3205, 2
  %v3207 = vmax.f32 %v3205, %v3206
  %v3208 = vrot.slane %v3207, 1
  %v3209 = vmax.f32 %v3207, %v3208
  %v3210 = vmax.f32 %v3169, %v3170
  %v3211 = vrot.slane %v3210, 4
  %v3212 = vmax.f32 %v3210, %v3211
  %v3213 = vrot.slane %v3212, 2
  %v3214 = vmax.f32 %v3212, %v3213
  %v3215 = vrot.slane %v3214, 1
  %v3216 = vmax.f32 %v3214, %v3215
  %v3217 = vmax.f32 %v3171, %v3172
  %v3218 = vrot.slane %v3217, 4
  %v3219 = vmax.f32 %v3217, %v3218
  %v3220 = vrot.slane %v3219, 2
  %v3221 = vmax.f32 %v3219, %v3220
  %v3222 = vrot.slane %v3221, 1
  %v3223 = vmax.f32 %v3221, %v3222
  %v3224 = vmax.f32 %v3173, %v3174
  %v3225 = vrot.slane %v3224, 4
  %v3226 = vmax.f32 %v3224, %v3225
  %v3227 = vrot.slane %v3226, 2
  %v3228 = vmax.f32 %v3226, %v3227
  %v3229 = vrot.slane %v3228, 1
  %v3230 = vmax.f32 %v3228, %v3229
  %v3231 = vrot.slane %v1480, 1
  %v3232 = vrot.slane %v1484, 1
  %v3233 = vrot.slane %v1490, 1
  %v3234 = vrot.slane %v1494, 1
  %v3235 = vrot.slane %v1500, 1
  %v3236 = vrot.slane %v1504, 1
  %v3237 = vrot.slane %v1510, 1
  %v3238 = vrot.slane %v1514, 1
  %v3239 = vrot.slane %v1520, 1
  %v3240 = vrot.slane %v1524, 1
  %v3241 = vrot.slane %v1530, 1
  %v3242 = vrot.slane %v1534, 1
  %v3243 = vrot.slane %v1540, 1
  %v3244 = vrot.slane %v1544, 1
  %v3245 = vrot.slane %v1550, 1
  %v3246 = vrot.slane %v1554, 1
  %v3247 = vsel %vm2442, %v3245, %v3246
  %v3248 = vsel %vm2442, %v3244, %v3245
  %v3249 = vsel %vm2442, %v3243, %v3244
  %v3250 = vsel %vm2442, %v3242, %v3243
  %v3251 = vsel %vm2442, %v3241, %v3242
  %v3252 = vsel %vm2442, %v3240, %v3241
  %v3253 = vsel %vm2442, %v3239, %v3240
  %v3254 = vsel %vm2442, %v3238, %v3239
  %v3255 = vsel %vm2442, %v3237, %v3238
  %v3256 = vsel %vm2442, %v3236, %v3237
  %v3257 = vsel %vm2442, %v3235, %v3236
  %v3258 = vsel %vm2442, %v3234, %v3235
  %v3259 = vsel %vm2442, %v3233, %v3234
  %v3260 = vsel %vm2442, %v3232, %v3233
  %v3261 = vsel %vm2442, %v3231, %v3232
  %v3262 = vsel %vm2442, %v3246, %v3231
  %v3263 = vadd.f32 %v1369, %v3261
  %v3264 = vadd.f32 %v1373, %v3260
  %v3265 = vadd.f32 %v1379, %v3259
  %v3266 = vadd.f32 %v1383, %v3258
  %v3267 = vadd.f32 %v1389, %v3257
  %v3268 = vadd.f32 %v1393, %v3256
  %v3269 = vadd.f32 %v1399, %v3255
  %v3270 = vadd.f32 %v1403, %v3254
  %v3271 = vadd.f32 %v1409, %v3253
  %v3272 = vadd.f32 %v1413, %v3252
  %v3273 = vadd.f32 %v1419, %v3251
  %v3274 = vadd.f32 %v1423, %v3250
  %v3275 = vadd.f32 %v1429, %v3249
  %v3276 = vadd.f32 %v1433, %v3248
  %v3277 = vadd.f32 %v1439, %v3247
  %v3278 = vadd.f32 %v1443, %v3262
  %v3279 = vrot.slane %v1482, 2
  %v3280 = vrot.slane %v1486, 2
  %v3281 = vrot.slane %v1492, 2
  %v3282 = vrot.slane %v1496, 2
  %v3283 = vrot.slane %v1502, 2
  %v3284 = vrot.slane %v1506, 2
  %v3285 = vrot.slane %v1512, 2
  %v3286 = vrot.slane %v1516, 2
  %v3287 = vrot.slane %v1522, 2
  %v3288 = vrot.slane %v1526, 2
  %v3289 = vrot.slane %v1532, 2
  %v3290 = vrot.slane %v1536, 2
  %v3291 = vrot.slane %v1542, 2
  %v3292 = vrot.slane %v1546, 2
  %v3293 = vrot.slane %v1552, 2
  %v3294 = vrot.slane %v1556, 2
  %v3295 = vsel %vm2629, %v3293, %v3294
  %v3296 = vsel %vm2629, %v3292, %v3293
  %v3297 = vsel %vm2629, %v3291, %v3292
  %v3298 = vsel %vm2629, %v3290, %v3291
  %v3299 = vsel %vm2629, %v3289, %v3290
  %v3300 = vsel %vm2629, %v3288, %v3289
  %v3301 = vsel %vm2629, %v3287, %v3288
  %v3302 = vsel %vm2629, %v3286, %v3287
  %v3303 = vsel %vm2629, %v3285, %v3286
  %v3304 = vsel %vm2629, %v3284, %v3285
  %v3305 = vsel %vm2629, %v3283, %v3284
  %v3306 = vsel %vm2629, %v3282, %v3283
  %v3307 = vsel %vm2629, %v3281, %v3282
  %v3308 = vsel %vm2629, %v3280, %v3281
  %v3309 = vsel %vm2629, %v3279, %v3280
  %v3310 = vsel %vm2629, %v3294, %v3279
  %v3311 = vadd.f32 %v3263, %v3309
  %v3312 = vadd.f32 %v3264, %v3308
  %v3313 = vadd.f32 %v3265, %v3307
  %v3314 = vadd.f32 %v3266, %v3306
  %v3315 = vadd.f32 %v3267, %v3305
  %v3316 = vadd.f32 %v3268, %v3304
  %v3317 = vadd.f32 %v3269, %v3303
  %v3318 = vadd.f32 %v3270, %v3302
  %v3319 = vadd.f32 %v3271, %v3301
  %v3320 = vadd.f32 %v3272, %v3300
  %v3321 = vadd.f32 %v3273, %v3299
  %v3322 = vadd.f32 %v3274, %v3298
  %v3323 = vadd.f32 %v3275, %v3297
  %v3324 = vadd.f32 %v3276, %v3296
  %v3325 = vadd.f32 %v3277, %v3295
  %v3326 = vadd.f32 %v3278, %v3310
  %v3327 = vrot.slane %v1593, 3
  %v3328 = vrot.slane %v1597, 3
  %v3329 = vrot.slane %v1603, 3
  %v3330 = vrot.slane %v1607, 3
  %v3331 = vrot.slane %v1613, 3
  %v3332 = vrot.slane %v1617, 3
  %v3333 = vrot.slane %v1623, 3
  %v3334 = vrot.slane %v1627, 3
  %v3335 = vrot.slane %v1633, 3
  %v3336 = vrot.slane %v1637, 3
  %v3337 = vrot.slane %v1643, 3
  %v3338 = vrot.slane %v1647, 3
  %v3339 = vrot.slane %v1653, 3
  %v3340 = vrot.slane %v1657, 3
  %v3341 = vrot.slane %v1663, 3
  %v3342 = vrot.slane %v1667, 3
  %v3343 = vsel %vm2678, %v3341, %v3342
  %v3344 = vsel %vm2678, %v3340, %v3341
  %v3345 = vsel %vm2678, %v3339, %v3340
  %v3346 = vsel %vm2678, %v3338, %v3339
  %v3347 = vsel %vm2678, %v3337, %v3338
  %v3348 = vsel %vm2678, %v3336, %v3337
  %v3349 = vsel %vm2678, %v3335, %v3336
  %v3350 = vsel %vm2678, %v3334, %v3335
  %v3351 = vsel %vm2678, %v3333, %v3334
  %v3352 = vsel %vm2678, %v3332, %v3333
  %v3353 = vsel %vm2678, %v3331, %v3332
  %v3354 = vsel %vm2678, %v3330, %v3331
  %v3355 = vsel %vm2678, %v3329, %v3330
  %v3356 = vsel %vm2678, %v3328, %v3329
  %v3357 = vsel %vm2678, %v3327, %v3328
  %v3358 = vsel %vm2678, %v3342, %v3327
  %v3359 = vadd.f32 %v3311, %v3357
  %v3360 = vadd.f32 %v3312, %v3356
  %v3361 = vadd.f32 %v3313, %v3355
  %v3362 = vadd.f32 %v3314, %v3354
  %v3363 = vadd.f32 %v3315, %v3353
  %v3364 = vadd.f32 %v3316, %v3352
  %v3365 = vadd.f32 %v3317, %v3351
  %v3366 = vadd.f32 %v3318, %v3350
  %v3367 = vadd.f32 %v3319, %v3349
  %v3368 = vadd.f32 %v3320, %v3348
  %v3369 = vadd.f32 %v3321, %v3347
  %v3370 = vadd.f32 %v3322, %v3346
  %v3371 = vadd.f32 %v3323, %v3345
  %v3372 = vadd.f32 %v3324, %v3344
  %v3373 = vadd.f32 %v3325, %v3343
  %v3374 = vadd.f32 %v3326, %v3358
  %v3375 = vrot.slane %v1595, 4
  %v3376 = vrot.slane %v1599, 4
  %v3377 = vrot.slane %v1605, 4
  %v3378 = vrot.slane %v1609, 4
  %v3379 = vrot.slane %v1615, 4
  %v3380 = vrot.slane %v1619, 4
  %v3381 = vrot.slane %v1625, 4
  %v3382 = vrot.slane %v1629, 4
  %v3383 = vrot.slane %v1635, 4
  %v3384 = vrot.slane %v1639, 4
  %v3385 = vrot.slane %v1645, 4
  %v3386 = vrot.slane %v1649, 4
  %v3387 = vrot.slane %v1655, 4
  %v3388 = vrot.slane %v1659, 4
  %v3389 = vrot.slane %v1665, 4
  %v3390 = vrot.slane %v1669, 4
  %v3391 = vsel %vm2961, %v3389, %v3390
  %v3392 = vsel %vm2961, %v3388, %v3389
  %v3393 = vsel %vm2961, %v3387, %v3388
  %v3394 = vsel %vm2961, %v3386, %v3387
  %v3395 = vsel %vm2961, %v3385, %v3386
  %v3396 = vsel %vm2961, %v3384, %v3385
  %v3397 = vsel %vm2961, %v3383, %v3384
  %v3398 = vsel %vm2961, %v3382, %v3383
  %v3399 = vsel %vm2961, %v3381, %v3382
  %v3400 = vsel %vm2961, %v3380, %v3381
  %v3401 = vsel %vm2961, %v3379, %v3380
  %v3402 = vsel %vm2961, %v3378, %v3379
  %v3403 = vsel %vm2961, %v3377, %v3378
  %v3404 = vsel %vm2961, %v3376, %v3377
  %v3405 = vsel %vm2961, %v3375, %v3376
  %v3406 = vsel %vm2961, %v3390, %v3375
  %v3407 = vadd.f32 %v3359, %v3405
  %v3408 = vadd.f32 %v3360, %v3404
  %v3409 = vadd.f32 %v3361, %v3403
  %v3410 = vadd.f32 %v3362, %v3402
  %v3411 = vadd.f32 %v3363, %v3401
  %v3412 = vadd.f32 %v3364, %v3400
  %v3413 = vadd.f32 %v3365, %v3399
  %v3414 = vadd.f32 %v3366, %v3398
  %v3415 = vadd.f32 %v3367, %v3397
  %v3416 = vadd.f32 %v3368, %v3396
  %v3417 = vadd.f32 %v3369, %v3395
  %v3418 = vadd.f32 %v3370, %v3394
  %v3419 = vadd.f32 %v3371, %v3393
  %v3420 = vadd.f32 %v3372, %v3392
  %v3421 = vadd.f32 %v3373, %v3391
  %v3422 = vadd.f32 %v3374, %v3406
  %v3423 = vrot.slane %v1706, 5
  %v3424 = vrot.slane %v1710, 5
  %v3425 = vrot.slane %v1716, 5
  %v3426 = vrot.slane %v1720, 5
  %v3427 = vrot.slane %v1726, 5
  %v3428 = vrot.slane %v1730, 5
  %v3429 = vrot.slane %v1736, 5
  %v3430 = vrot.slane %v1740, 5
  %v3431 = vrot.slane %v1746, 5
  %v3432 = vrot.slane %v1750, 5
  %v3433 = vrot.slane %v1756, 5
  %v3434 = vrot.slane %v1760, 5
  %v3435 = vrot.slane %v1766, 5
  %v3436 = vrot.slane %v1770, 5
  %v3437 = vrot.slane %v1776, 5
  %v3438 = vrot.slane %v1780, 5
  %v3439 = vsel %vm3010, %v3437, %v3438
  %v3440 = vsel %vm3010, %v3436, %v3437
  %v3441 = vsel %vm3010, %v3435, %v3436
  %v3442 = vsel %vm3010, %v3434, %v3435
  %v3443 = vsel %vm3010, %v3433, %v3434
  %v3444 = vsel %vm3010, %v3432, %v3433
  %v3445 = vsel %vm3010, %v3431, %v3432
  %v3446 = vsel %vm3010, %v3430, %v3431
  %v3447 = vsel %vm3010, %v3429, %v3430
  %v3448 = vsel %vm3010, %v3428, %v3429
  %v3449 = vsel %vm3010, %v3427, %v3428
  %v3450 = vsel %vm3010, %v3426, %v3427
  %v3451 = vsel %vm3010, %v3425, %v3426
  %v3452 = vsel %vm3010, %v3424, %v3425
  %v3453 = vsel %vm3010, %v3423, %v3424
  %v3454 = vsel %vm3010, %v3438, %v3423
  %v3455 = vadd.f32 %v3407, %v3453
  %v3456 = vadd.f32 %v3408, %v3452
  %v3457 = vadd.f32 %v3409, %v3451
  %v3458 = vadd.f32 %v3410, %v3450
  %v3459 = vadd.f32 %v3411, %v3449
  %v3460 = vadd.f32 %v3412, %v3448
  %v3461 = vadd.f32 %v3413, %v3447
  %v3462 = vadd.f32 %v3414, %v3446
  %v3463 = vadd.f32 %v3415, %v3445
  %v3464 = vadd.f32 %v3416, %v3444
  %v3465 = vadd.f32 %v3417, %v3443
  %v3466 = vadd.f32 %v3418, %v3442
  %v3467 = vadd.f32 %v3419, %v3441
  %v3468 = vadd.f32 %v3420, %v3440
  %v3469 = vadd.f32 %v3421, %v3439
  %v3470 = vadd.f32 %v3422, %v3454
  %v3471 = vrot.slane %v1708, 6
  %v3472 = vrot.slane %v1712, 6
  %v3473 = vrot.slane %v1718, 6
  %v3474 = vrot.slane %v1722, 6
  %v3475 = vrot.slane %v1728, 6
  %v3476 = vrot.slane %v1732, 6
  %v3477 = vrot.slane %v1738, 6
  %v3478 = vrot.slane %v1742, 6
  %v3479 = vrot.slane %v1748, 6
  %v3480 = vrot.slane %v1752, 6
  %v3481 = vrot.slane %v1758, 6
  %v3482 = vrot.slane %v1762, 6
  %v3483 = vrot.slane %v1768, 6
  %v3484 = vrot.slane %v1772, 6
  %v3485 = vrot.slane %v1778, 6
  %v3486 = vrot.slane %v1782, 6
  %v3487 = vsel %vm3059, %v3485, %v3486
  %v3488 = vsel %vm3059, %v3484, %v3485
  %v3489 = vsel %vm3059, %v3483, %v3484
  %v3490 = vsel %vm3059, %v3482, %v3483
  %v3491 = vsel %vm3059, %v3481, %v3482
  %v3492 = vsel %vm3059, %v3480, %v3481
  %v3493 = vsel %vm3059, %v3479, %v3480
  %v3494 = vsel %vm3059, %v3478, %v3479
  %v3495 = vsel %vm3059, %v3477, %v3478
  %v3496 = vsel %vm3059, %v3476, %v3477
  %v3497 = vsel %vm3059, %v3475, %v3476
  %v3498 = vsel %vm3059, %v3474, %v3475
  %v3499 = vsel %vm3059, %v3473, %v3474
  %v3500 = vsel %vm3059, %v3472, %v3473
  %v3501 = vsel %vm3059, %v3471, %v3472
  %v3502 = vsel %vm3059, %v3486, %v3471
  %v3503 = vadd.f32 %v3455, %v3501
  %v3504 = vadd.f32 %v3456, %v3500
  %v3505 = vadd.f32 %v3457, %v3499
  %v3506 = vadd.f32 %v3458, %v3498
  %v3507 = vadd.f32 %v3459, %v3497
  %v3508 = vadd.f32 %v3460, %v3496
  %v3509 = vadd.f32 %v3461, %v3495
  %v3510 = vadd.f32 %v3462, %v3494
  %v3511 = vadd.f32 %v3463, %v3493
  %v3512 = vadd.f32 %v3464, %v3492
  %v3513 = vadd.f32 %v3465, %v3491
  %v3514 = vadd.f32 %v3466, %v3490
  %v3515 = vadd.f32 %v3467, %v3489
  %v3516 = vadd.f32 %v3468, %v3488
  %v3517 = vadd.f32 %v3469, %v3487
  %v3518 = vadd.f32 %v3470, %v3502
  %v3519 = vrot.slane %v1819, 7
  %v3520 = vrot.slane %v1823, 7
  %v3521 = vrot.slane %v1829, 7
  %v3522 = vrot.slane %v1833, 7
  %v3523 = vrot.slane %v1839, 7
  %v3524 = vrot.slane %v1843, 7
  %v3525 = vrot.slane %v1849, 7
  %v3526 = vrot.slane %v1853, 7
  %v3527 = vrot.slane %v1859, 7
  %v3528 = vrot.slane %v1863, 7
  %v3529 = vrot.slane %v1869, 7
  %v3530 = vrot.slane %v1873, 7
  %v3531 = vrot.slane %v1879, 7
  %v3532 = vrot.slane %v1883, 7
  %v3533 = vrot.slane %v1889, 7
  %v3534 = vrot.slane %v1893, 7
  %v3535 = vsel %vm3108, %v3533, %v3534
  %v3536 = vsel %vm3108, %v3532, %v3533
  %v3537 = vsel %vm3108, %v3531, %v3532
  %v3538 = vsel %vm3108, %v3530, %v3531
  %v3539 = vsel %vm3108, %v3529, %v3530
  %v3540 = vsel %vm3108, %v3528, %v3529
  %v3541 = vsel %vm3108, %v3527, %v3528
  %v3542 = vsel %vm3108, %v3526, %v3527
  %v3543 = vsel %vm3108, %v3525, %v3526
  %v3544 = vsel %vm3108, %v3524, %v3525
  %v3545 = vsel %vm3108, %v3523, %v3524
  %v3546 = vsel %vm3108, %v3522, %v3523
  %v3547 = vsel %vm3108, %v3521, %v3522
  %v3548 = vsel %vm3108, %v3520, %v3521
  %v3549 = vsel %vm3108, %v3519, %v3520
  %v3550 = vsel %vm3108, %v3534, %v3519
  %v3551 = vadd.f32 %v3503, %v3549
  %v3552 = vadd.f32 %v3504, %v3548
  %v3553 = vadd.f32 %v3505, %v3547
  %v3554 = vadd.f32 %v3506, %v3546
  %v3555 = vadd.f32 %v3507, %v3545
  %v3556 = vadd.f32 %v3508, %v3544
  %v3557 = vadd.f32 %v3509, %v3543
  %v3558 = vadd.f32 %v3510, %v3542
  %v3559 = vadd.f32 %v3511, %v3541
  %v3560 = vadd.f32 %v3512, %v3540
  %v3561 = vadd.f32 %v3513, %v3539
  %v3562 = vadd.f32 %v3514, %v3538
  %v3563 = vadd.f32 %v3515, %v3537
  %v3564 = vadd.f32 %v3516, %v3536
  %v3565 = vadd.f32 %v3517, %v3535
  %v3566 = vadd.f32 %v3518, %v3550
  %v3567 = vadd.f32 %v3551, %v1825
  %v3568 = vadd.f32 %v3552, %v1831
  %v3569 = vadd.f32 %v3553, %v1835
  %v3570 = vadd.f32 %v3554, %v1841
  %v3571 = vadd.f32 %v3555, %v1845
  %v3572 = vadd.f32 %v3556, %v1851
  %v3573 = vadd.f32 %v3557, %v1855
  %v3574 = vadd.f32 %v3558, %v1861
  %v3575 = vadd.f32 %v3559, %v1865
  %v3576 = vadd.f32 %v3560, %v1871
  %v3577 = vadd.f32 %v3561, %v1875
  %v3578 = vadd.f32 %v3562, %v1881
  %v3579 = vadd.f32 %v3563, %v1885
  %v3580 = vadd.f32 %v3564, %v1891
  %v3581 = vadd.f32 %v3565, %v1895
  %v3582 = vadd.f32 %v3566, %v1821
  %v3583 = vrot.slane %v1932, 1
  %v3584 = vrot.slane %v1936, 1
  %v3585 = vrot.slane %v1942, 1
  %v3586 = vrot.slane %v1946, 1
  %v3587 = vrot.slane %v1952, 1
  %v3588 = vrot.slane %v1956, 1
  %v3589 = vrot.slane %v1962, 1
  %v3590 = vrot.slane %v1966, 1
  %v3591 = vrot.slane %v1972, 1
  %v3592 = vrot.slane %v1976, 1
  %v3593 = vrot.slane %v1982, 1
  %v3594 = vrot.slane %v1986, 1
  %v3595 = vrot.slane %v1992, 1
  %v3596 = vrot.slane %v1996, 1
  %v3597 = vrot.slane %v2002, 1
  %v3598 = vrot.slane %v2006, 1
  %v3599 = vsel %vm2442, %v3597, %v3598
  %v3600 = vsel %vm2442, %v3596, %v3597
  %v3601 = vsel %vm2442, %v3595, %v3596
  %v3602 = vsel %vm2442, %v3594, %v3595
  %v3603 = vsel %vm2442, %v3593, %v3594
  %v3604 = vsel %vm2442, %v3592, %v3593
  %v3605 = vsel %vm2442, %v3591, %v3592
  %v3606 = vsel %vm2442, %v3590, %v3591
  %v3607 = vsel %vm2442, %v3589, %v3590
  %v3608 = vsel %vm2442, %v3588, %v3589
  %v3609 = vsel %vm2442, %v3587, %v3588
  %v3610 = vsel %vm2442, %v3586, %v3587
  %v3611 = vsel %vm2442, %v3585, %v3586
  %v3612 = vsel %vm2442, %v3584, %v3585
  %v3613 = vsel %vm2442, %v3583, %v3584
  %v3614 = vsel %vm2442, %v3598, %v3583
  %v3615 = vadd.f32 %v3567, %v3612
  %v3616 = vadd.f32 %v3568, %v3611
  %v3617 = vadd.f32 %v3569, %v3610
  %v3618 = vadd.f32 %v3570, %v3609
  %v3619 = vadd.f32 %v3571, %v3608
  %v3620 = vadd.f32 %v3572, %v3607
  %v3621 = vadd.f32 %v3573, %v3606
  %v3622 = vadd.f32 %v3574, %v3605
  %v3623 = vadd.f32 %v3575, %v3604
  %v3624 = vadd.f32 %v3576, %v3603
  %v3625 = vadd.f32 %v3577, %v3602
  %v3626 = vadd.f32 %v3578, %v3601
  %v3627 = vadd.f32 %v3579, %v3600
  %v3628 = vadd.f32 %v3580, %v3599
  %v3629 = vadd.f32 %v3581, %v3614
  %v3630 = vadd.f32 %v3582, %v3613
  %v3631 = vrot.slane %v1934, 2
  %v3632 = vrot.slane %v1938, 2
  %v3633 = vrot.slane %v1944, 2
  %v3634 = vrot.slane %v1948, 2
  %v3635 = vrot.slane %v1954, 2
  %v3636 = vrot.slane %v1958, 2
  %v3637 = vrot.slane %v1964, 2
  %v3638 = vrot.slane %v1968, 2
  %v3639 = vrot.slane %v1974, 2
  %v3640 = vrot.slane %v1978, 2
  %v3641 = vrot.slane %v1984, 2
  %v3642 = vrot.slane %v1988, 2
  %v3643 = vrot.slane %v1994, 2
  %v3644 = vrot.slane %v1998, 2
  %v3645 = vrot.slane %v2004, 2
  %v3646 = vrot.slane %v2008, 2
  %v3647 = vsel %vm2629, %v3645, %v3646
  %v3648 = vsel %vm2629, %v3644, %v3645
  %v3649 = vsel %vm2629, %v3643, %v3644
  %v3650 = vsel %vm2629, %v3642, %v3643
  %v3651 = vsel %vm2629, %v3641, %v3642
  %v3652 = vsel %vm2629, %v3640, %v3641
  %v3653 = vsel %vm2629, %v3639, %v3640
  %v3654 = vsel %vm2629, %v3638, %v3639
  %v3655 = vsel %vm2629, %v3637, %v3638
  %v3656 = vsel %vm2629, %v3636, %v3637
  %v3657 = vsel %vm2629, %v3635, %v3636
  %v3658 = vsel %vm2629, %v3634, %v3635
  %v3659 = vsel %vm2629, %v3633, %v3634
  %v3660 = vsel %vm2629, %v3632, %v3633
  %v3661 = vsel %vm2629, %v3631, %v3632
  %v3662 = vsel %vm2629, %v3646, %v3631
  %v3663 = vadd.f32 %v3615, %v3660
  %v3664 = vadd.f32 %v3616, %v3659
  %v3665 = vadd.f32 %v3617, %v3658
  %v3666 = vadd.f32 %v3618, %v3657
  %v3667 = vadd.f32 %v3619, %v3656
  %v3668 = vadd.f32 %v3620, %v3655
  %v3669 = vadd.f32 %v3621, %v3654
  %v3670 = vadd.f32 %v3622, %v3653
  %v3671 = vadd.f32 %v3623, %v3652
  %v3672 = vadd.f32 %v3624, %v3651
  %v3673 = vadd.f32 %v3625, %v3650
  %v3674 = vadd.f32 %v3626, %v3649
  %v3675 = vadd.f32 %v3627, %v3648
  %v3676 = vadd.f32 %v3628, %v3647
  %v3677 = vadd.f32 %v3629, %v3662
  %v3678 = vadd.f32 %v3630, %v3661
  %v3679 = vrot.slane %v2045, 3
  %v3680 = vrot.slane %v2049, 3
  %v3681 = vrot.slane %v2055, 3
  %v3682 = vrot.slane %v2059, 3
  %v3683 = vrot.slane %v2065, 3
  %v3684 = vrot.slane %v2069, 3
  %v3685 = vrot.slane %v2075, 3
  %v3686 = vrot.slane %v2079, 3
  %v3687 = vrot.slane %v2085, 3
  %v3688 = vrot.slane %v2089, 3
  %v3689 = vrot.slane %v2095, 3
  %v3690 = vrot.slane %v2099, 3
  %v3691 = vrot.slane %v2105, 3
  %v3692 = vrot.slane %v2109, 3
  %v3693 = vrot.slane %v2115, 3
  %v3694 = vrot.slane %v2119, 3
  %v3695 = vsel %vm2678, %v3693, %v3694
  %v3696 = vsel %vm2678, %v3692, %v3693
  %v3697 = vsel %vm2678, %v3691, %v3692
  %v3698 = vsel %vm2678, %v3690, %v3691
  %v3699 = vsel %vm2678, %v3689, %v3690
  %v3700 = vsel %vm2678, %v3688, %v3689
  %v3701 = vsel %vm2678, %v3687, %v3688
  %v3702 = vsel %vm2678, %v3686, %v3687
  %v3703 = vsel %vm2678, %v3685, %v3686
  %v3704 = vsel %vm2678, %v3684, %v3685
  %v3705 = vsel %vm2678, %v3683, %v3684
  %v3706 = vsel %vm2678, %v3682, %v3683
  %v3707 = vsel %vm2678, %v3681, %v3682
  %v3708 = vsel %vm2678, %v3680, %v3681
  %v3709 = vsel %vm2678, %v3679, %v3680
  %v3710 = vsel %vm2678, %v3694, %v3679
  %v3711 = vadd.f32 %v3663, %v3708
  %v3712 = vadd.f32 %v3664, %v3707
  %v3713 = vadd.f32 %v3665, %v3706
  %v3714 = vadd.f32 %v3666, %v3705
  %v3715 = vadd.f32 %v3667, %v3704
  %v3716 = vadd.f32 %v3668, %v3703
  %v3717 = vadd.f32 %v3669, %v3702
  %v3718 = vadd.f32 %v3670, %v3701
  %v3719 = vadd.f32 %v3671, %v3700
  %v3720 = vadd.f32 %v3672, %v3699
  %v3721 = vadd.f32 %v3673, %v3698
  %v3722 = vadd.f32 %v3674, %v3697
  %v3723 = vadd.f32 %v3675, %v3696
  %v3724 = vadd.f32 %v3676, %v3695
  %v3725 = vadd.f32 %v3677, %v3710
  %v3726 = vadd.f32 %v3678, %v3709
  %v3727 = vrot.slane %v2047, 4
  %v3728 = vrot.slane %v2051, 4
  %v3729 = vrot.slane %v2057, 4
  %v3730 = vrot.slane %v2061, 4
  %v3731 = vrot.slane %v2067, 4
  %v3732 = vrot.slane %v2071, 4
  %v3733 = vrot.slane %v2077, 4
  %v3734 = vrot.slane %v2081, 4
  %v3735 = vrot.slane %v2087, 4
  %v3736 = vrot.slane %v2091, 4
  %v3737 = vrot.slane %v2097, 4
  %v3738 = vrot.slane %v2101, 4
  %v3739 = vrot.slane %v2107, 4
  %v3740 = vrot.slane %v2111, 4
  %v3741 = vrot.slane %v2117, 4
  %v3742 = vrot.slane %v2121, 4
  %v3743 = vsel %vm2961, %v3741, %v3742
  %v3744 = vsel %vm2961, %v3740, %v3741
  %v3745 = vsel %vm2961, %v3739, %v3740
  %v3746 = vsel %vm2961, %v3738, %v3739
  %v3747 = vsel %vm2961, %v3737, %v3738
  %v3748 = vsel %vm2961, %v3736, %v3737
  %v3749 = vsel %vm2961, %v3735, %v3736
  %v3750 = vsel %vm2961, %v3734, %v3735
  %v3751 = vsel %vm2961, %v3733, %v3734
  %v3752 = vsel %vm2961, %v3732, %v3733
  %v3753 = vsel %vm2961, %v3731, %v3732
  %v3754 = vsel %vm2961, %v3730, %v3731
  %v3755 = vsel %vm2961, %v3729, %v3730
  %v3756 = vsel %vm2961, %v3728, %v3729
  %v3757 = vsel %vm2961, %v3727, %v3728
  %v3758 = vsel %vm2961, %v3742, %v3727
  %v3759 = vadd.f32 %v3711, %v3756
  %v3760 = vadd.f32 %v3712, %v3755
  %v3761 = vadd.f32 %v3713, %v3754
  %v3762 = vadd.f32 %v3714, %v3753
  %v3763 = vadd.f32 %v3715, %v3752
  %v3764 = vadd.f32 %v3716, %v3751
  %v3765 = vadd.f32 %v3717, %v3750
  %v3766 = vadd.f32 %v3718, %v3749
  %v3767 = vadd.f32 %v3719, %v3748
  %v3768 = vadd.f32 %v3720, %v3747
  %v3769 = vadd.f32 %v3721, %v3746
  %v3770 = vadd.f32 %v3722, %v3745
  %v3771 = vadd.f32 %v3723, %v3744
  %v3772 = vadd.f32 %v3724, %v3743
  %v3773 = vadd.f32 %v3725, %v3758
  %v3774 = vadd.f32 %v3726, %v3757
  %v3775 = vrot.slane %v2158, 5
  %v3776 = vrot.slane %v2162, 5
  %v3777 = vrot.slane %v2168, 5
  %v3778 = vrot.slane %v2172, 5
  %v3779 = vrot.slane %v2178, 5
  %v3780 = vrot.slane %v2182, 5
  %v3781 = vrot.slane %v2188, 5
  %v3782 = vrot.slane %v2192, 5
  %v3783 = vrot.slane %v2198, 5
  %v3784 = vrot.slane %v2202, 5
  %v3785 = vrot.slane %v2208, 5
  %v3786 = vrot.slane %v2212, 5
  %v3787 = vrot.slane %v2218, 5
  %v3788 = vrot.slane %v2222, 5
  %v3789 = vrot.slane %v2228, 5
  %v3790 = vrot.slane %v2232, 5
  %v3791 = vsel %vm3010, %v3789, %v3790
  %v3792 = vsel %vm3010, %v3788, %v3789
  %v3793 = vsel %vm3010, %v3787, %v3788
  %v3794 = vsel %vm3010, %v3786, %v3787
  %v3795 = vsel %vm3010, %v3785, %v3786
  %v3796 = vsel %vm3010, %v3784, %v3785
  %v3797 = vsel %vm3010, %v3783, %v3784
  %v3798 = vsel %vm3010, %v3782, %v3783
  %v3799 = vsel %vm3010, %v3781, %v3782
  %v3800 = vsel %vm3010, %v3780, %v3781
  %v3801 = vsel %vm3010, %v3779, %v3780
  %v3802 = vsel %vm3010, %v3778, %v3779
  %v3803 = vsel %vm3010, %v3777, %v3778
  %v3804 = vsel %vm3010, %v3776, %v3777
  %v3805 = vsel %vm3010, %v3775, %v3776
  %v3806 = vsel %vm3010, %v3790, %v3775
  %v3807 = vadd.f32 %v3759, %v3804
  %v3808 = vadd.f32 %v3760, %v3803
  %v3809 = vadd.f32 %v3761, %v3802
  %v3810 = vadd.f32 %v3762, %v3801
  %v3811 = vadd.f32 %v3763, %v3800
  %v3812 = vadd.f32 %v3764, %v3799
  %v3813 = vadd.f32 %v3765, %v3798
  %v3814 = vadd.f32 %v3766, %v3797
  %v3815 = vadd.f32 %v3767, %v3796
  %v3816 = vadd.f32 %v3768, %v3795
  %v3817 = vadd.f32 %v3769, %v3794
  %v3818 = vadd.f32 %v3770, %v3793
  %v3819 = vadd.f32 %v3771, %v3792
  %v3820 = vadd.f32 %v3772, %v3791
  %v3821 = vadd.f32 %v3773, %v3806
  %v3822 = vadd.f32 %v3774, %v3805
  %v3823 = vrot.slane %v2160, 6
  %v3824 = vrot.slane %v2164, 6
  %v3825 = vrot.slane %v2170, 6
  %v3826 = vrot.slane %v2174, 6
  %v3827 = vrot.slane %v2180, 6
  %v3828 = vrot.slane %v2184, 6
  %v3829 = vrot.slane %v2190, 6
  %v3830 = vrot.slane %v2194, 6
  %v3831 = vrot.slane %v2200, 6
  %v3832 = vrot.slane %v2204, 6
  %v3833 = vrot.slane %v2210, 6
  %v3834 = vrot.slane %v2214, 6
  %v3835 = vrot.slane %v2220, 6
  %v3836 = vrot.slane %v2224, 6
  %v3837 = vrot.slane %v2230, 6
  %v3838 = vrot.slane %v2234, 6
  %v3839 = vsel %vm3059, %v3837, %v3838
  %v3840 = vsel %vm3059, %v3836, %v3837
  %v3841 = vsel %vm3059, %v3835, %v3836
  %v3842 = vsel %vm3059, %v3834, %v3835
  %v3843 = vsel %vm3059, %v3833, %v3834
  %v3844 = vsel %vm3059, %v3832, %v3833
  %v3845 = vsel %vm3059, %v3831, %v3832
  %v3846 = vsel %vm3059, %v3830, %v3831
  %v3847 = vsel %vm3059, %v3829, %v3830
  %v3848 = vsel %vm3059, %v3828, %v3829
  %v3849 = vsel %vm3059, %v3827, %v3828
  %v3850 = vsel %vm3059, %v3826, %v3827
  %v3851 = vsel %vm3059, %v3825, %v3826
  %v3852 = vsel %vm3059, %v3824, %v3825
  %v3853 = vsel %vm3059, %v3823, %v3824
  %v3854 = vsel %vm3059, %v3838, %v3823
  %v3855 = vadd.f32 %v3807, %v3852
  %v3856 = vadd.f32 %v3808, %v3851
  %v3857 = vadd.f32 %v3809, %v3850
  %v3858 = vadd.f32 %v3810, %v3849
  %v3859 = vadd.f32 %v3811, %v3848
  %v3860 = vadd.f32 %v3812, %v3847
  %v3861 = vadd.f32 %v3813, %v3846
  %v3862 = vadd.f32 %v3814, %v3845
  %v3863 = vadd.f32 %v3815, %v3844
  %v3864 = vadd.f32 %v3816, %v3843
  %v3865 = vadd.f32 %v3817, %v3842
  %v3866 = vadd.f32 %v3818, %v3841
  %v3867 = vadd.f32 %v3819, %v3840
  %v3868 = vadd.f32 %v3820, %v3839
  %v3869 = vadd.f32 %v3821, %v3854
  %v3870 = vadd.f32 %v3822, %v3853
  %v3871 = vrot.slane %v2271, 7
  %v3872 = vrot.slane %v2274, 7
  %v3873 = vrot.slane %v2279, 7
  %v3874 = vrot.slane %v2282, 7
  %v3875 = vrot.slane %v2287, 7
  %v3876 = vrot.slane %v2290, 7
  %v3877 = vrot.slane %v2295, 7
  %v3878 = vrot.slane %v2298, 7
  %v3879 = vrot.slane %v2303, 7
  %v3880 = vrot.slane %v2306, 7
  %v3881 = vrot.slane %v2311, 7
  %v3882 = vrot.slane %v2314, 7
  %v3883 = vrot.slane %v2319, 7
  %v3884 = vrot.slane %v2322, 7
  %v3885 = vrot.slane %v2327, 7
  %v3886 = vrot.slane %v2330, 7
  %v3887 = vsel %vm3108, %v3885, %v3886
  %v3888 = vsel %vm3108, %v3884, %v3885
  %v3889 = vsel %vm3108, %v3883, %v3884
  %v3890 = vsel %vm3108, %v3882, %v3883
  %v3891 = vsel %vm3108, %v3881, %v3882
  %v3892 = vsel %vm3108, %v3880, %v3881
  %v3893 = vsel %vm3108, %v3879, %v3880
  %v3894 = vsel %vm3108, %v3878, %v3879
  %v3895 = vsel %vm3108, %v3877, %v3878
  %v3896 = vsel %vm3108, %v3876, %v3877
  %v3897 = vsel %vm3108, %v3875, %v3876
  %v3898 = vsel %vm3108, %v3874, %v3875
  %v3899 = vsel %vm3108, %v3873, %v3874
  %v3900 = vsel %vm3108, %v3872, %v3873
  %v3901 = vsel %vm3108, %v3871, %v3872
  %v3902 = vsel %vm3108, %v3886, %v3871
  %v3903 = vadd.f32 %v3855, %v3900
  %v3904 = vadd.f32 %v3856, %v3899
  %v3905 = vadd.f32 %v3857, %v3898
  %v3906 = vadd.f32 %v3858, %v3897
  %v3907 = vadd.f32 %v3859, %v3896
  %v3908 = vadd.f32 %v3860, %v3895
  %v3909 = vadd.f32 %v3861, %v3894
  %v3910 = vadd.f32 %v3862, %v3893
  %v3911 = vadd.f32 %v3863, %v3892
  %v3912 = vadd.f32 %v3864, %v3891
  %v3913 = vadd.f32 %v3865, %v3890
  %v3914 = vadd.f32 %v3866, %v3889
  %v3915 = vadd.f32 %v3867, %v3888
  %v3916 = vadd.f32 %v3868, %v3887
  %v3917 = vadd.f32 %v3869, %v3902
  %v3918 = vadd.f32 %v3870, %v3901
  %v3919 = vmax.f32 %v3903, 0.0
  %v3920 = vmax.f32 %v3904, 0.0
  %v3921 = vmax.f32 %v3905, 0.0
  %v3922 = vmax.f32 %v3906, 0.0
  %v3923 = vmax.f32 %v3907, 0.0
  %v3924 = vmax.f32 %v3908, 0.0
  %v3925 = vmax.f32 %v3909, 0.0
  %v3926 = vmax.f32 %v3910, 0.0
  %v3927 = vmax.f32 %v3911, 0.0
  %v3928 = vmax.f32 %v3912, 0.0
  %v3929 = vmax.f32 %v3913, 0.0
  %v3930 = vmax.f32 %v3914, 0.0
  %v3931 = vmax.f32 %v3915, 0.0
  %v3932 = vmax.f32 %v3916, 0.0
  %v3933 = vmax.f32 %v3917, 0.0
  %v3934 = vmax.f32 %v3918, 0.0
  %vm3935 = vcmp.lt.s32.totalorder %v2335, 1
  %v3936 = vsel %vm3108, %v3919, 0.0
  %v3937 = vsel %vm3935, %v3920, 0.0
  %v3938 = vsel %vm3108, %v3921, 0.0
  %v3939 = vsel %vm3935, %v3922, 0.0
  %v3940 = vsel %vm3108, %v3923, 0.0
  %v3941 = vsel %vm3935, %v3924, 0.0
  %v3942 = vsel %vm3108, %v3925, 0.0
  %v3943 = vsel %vm3935, %v3926, 0.0
  %v3944 = vsel %vm3108, %v3927, 0.0
  %v3945 = vsel %vm3935, %v3928, 0.0
  %v3946 = vsel %vm3108, %v3929, 0.0
  %v3947 = vsel %vm3935, %v3930, 0.0
  %v3948 = vsel %vm3108, %v3931, 0.0
  %v3949 = vsel %vm3935, %v3932, 0.0
  %v3950 = vsel %vm3108, %v3933, 0.0
  %v3951 = vsel %vm3935, %v3934, 0.0
  %v3952 = vmax.f32 %v3936, %v3937
  %v3953 = vrot.slane %v3952, 4
  %v3954 = vmax.f32 %v3952, %v3953
  %v3955 = vrot.slane %v3954, 2
  %v3956 = vmax.f32 %v3954, %v3955
  %v3957 = vrot.slane %v3956, 1
  %v3958 = vmax.f32 %v3956, %v3957
  %v3959 = vmax.f32 %v3938, %v3939
  %v3960 = vrot.slane %v3959, 4
  %v3961 = vmax.f32 %v3959, %v3960
  %v3962 = vrot.slane %v3961, 2
  %v3963 = vmax.f32 %v3961, %v3962
  %v3964 = vrot.slane %v3963, 1
  %v3965 = vmax.f32 %v3963, %v3964
  %v3966 = vmax.f32 %v3940, %v3941
  %v3967 = vrot.slane %v3966, 4
  %v3968 = vmax.f32 %v3966, %v3967
  %v3969 = vrot.slane %v3968, 2
  %v3970 = vmax.f32 %v3968, %v3969
  %v3971 = vrot.slane %v3970, 1
  %v3972 = vmax.f32 %v3970, %v3971
  %v3973 = vmax.f32 %v3942, %v3943
  %v3974 = vrot.slane %v3973, 4
  %v3975 = vmax.f32 %v3973, %v3974
  %v3976 = vrot.slane %v3975, 2
  %v3977 = vmax.f32 %v3975, %v3976
  %v3978 = vrot.slane %v3977, 1
  %v3979 = vmax.f32 %v3977, %v3978
  %v3980 = vmax.f32 %v3944, %v3945
  %v3981 = vrot.slane %v3980, 4
  %v3982 = vmax.f32 %v3980, %v3981
  %v3983 = vrot.slane %v3982, 2
  %v3984 = vmax.f32 %v3982, %v3983
  %v3985 = vrot.slane %v3984, 1
  %v3986 = vmax.f32 %v3984, %v3985
  %v3987 = vmax.f32 %v3946, %v3947
  %v3988 = vrot.slane %v3987, 4
  %v3989 = vmax.f32 %v3987, %v3988
  %v3990 = vrot.slane %v3989, 2
  %v3991 = vmax.f32 %v3989, %v3990
  %v3992 = vrot.slane %v3991, 1
  %v3993 = vmax.f32 %v3991, %v3992
  %v3994 = vmax.f32 %v3948, %v3949
  %v3995 = vrot.slane %v3994, 4
  %v3996 = vmax.f32 %v3994, %v3995
  %v3997 = vrot.slane %v3996, 2
  %v3998 = vmax.f32 %v3996, %v3997
  %v3999 = vrot.slane %v3998, 1
  %v4000 = vmax.f32 %v3998, %v3999
  %v4001 = vmax.f32 %v3950, %v3951
  %v4002 = vrot.slane %v4001, 4
  %v4003 = vmax.f32 %v4001, %v4002
  %v4004 = vrot.slane %v4003, 2
  %v4005 = vmax.f32 %v4003, %v4004
  %v4006 = vrot.slane %v4005, 1
  %v4007 = vmax.f32 %v4005, %v4006
  %vm4016 = vcmask 1041409
  %v4017 = vsel %vm4016, %v2383, %v2376
  %vm4018 = vcmask 1042434
  %v4019 = vsel %vm4018, %v2390, %v4017
  %vm4020 = vcmask 1043459
  %v4021 = vsel %vm4020, %v2397, %v4019
  %vm4022 = vcmask 1044484
  %v4023 = vsel %vm4022, %v2404, %v4021
  %vm4024 = vcmask 1045509
  %v4025 = vsel %vm4024, %v2411, %v4023
  %vm4026 = vcmask 1046534
  %v4027 = vsel %vm4026, %v2418, %v4025
  %vm4028 = vcmask 1047559
  %v4029 = vsel %vm4028, %v2425, %v4027
  %v4039 = vsel %vm4016, %v2522, %v2515
  %v4040 = vsel %vm4018, %v2529, %v4039
  %v4041 = vsel %vm4020, %v2536, %v4040
  %v4042 = vsel %vm4022, %v2543, %v4041
  %v4043 = vsel %vm4024, %v2550, %v4042
  %v4044 = vsel %vm4026, %v2557, %v4043
  %v4045 = vsel %vm4028, %v2564, %v4044
  %v4055 = vsel %vm4016, %v2758, %v2751
  %v4056 = vsel %vm4018, %v2765, %v4055
  %v4057 = vsel %vm4020, %v2772, %v4056
  %v4058 = vsel %vm4022, %v2779, %v4057
  %v4059 = vsel %vm4024, %v2786, %v4058
  %v4060 = vsel %vm4026, %v2793, %v4059
  %v4061 = vsel %vm4028, %v2800, %v4060
  %v4071 = vsel %vm4016, %v3188, %v3181
  %v4072 = vsel %vm4018, %v3195, %v4071
  %v4073 = vsel %vm4020, %v3202, %v4072
  %v4074 = vsel %vm4022, %v3209, %v4073
  %v4075 = vsel %vm4024, %v3216, %v4074
  %v4076 = vsel %vm4026, %v3223, %v4075
  %v4077 = vsel %vm4028, %v3230, %v4076
  %v4087 = vsel %vm4016, %v3965, %v3958
  %v4088 = vsel %vm4018, %v3972, %v4087
  %v4089 = vsel %vm4020, %v3979, %v4088
  %v4090 = vsel %vm4022, %v3986, %v4089
  %v4091 = vsel %vm4024, %v3993, %v4090
  %v4092 = vsel %vm4026, %v4000, %v4091
  %v4093 = vsel %vm4028, %v4007, %v4092
  %v4095 = vpack.c.bf16 %v4029, %v4029
  %v4096 = vpack.c.bf16 %v4045, %v4045
  %v4097 = vpack.c.bf16 %v4061, %v4061
  %v4098 = vpack.c.bf16 %v4077, %v4077
  %v4099 = vpack.c.bf16 %v4093, %v4093
  %v4100 = vld [vmem:[%s2] sm:$0xf]
  %v4101 = vld [vmem:[%s2 + $0x4] sm:$0xf]
  %v4102 = vld [vmem:[%s2 + $0x8] sm:$0xf]
  %v4103 = vld [vmem:[%s2 + $0xc] sm:$0xf]
  %v4104 = vld [vmem:[%s2 + $0x10] sm:$0xf]
  %v4105 = vld [vmem:[%s2 + $0x14] sm:$0xf]
  %v4106 = vld [vmem:[%s2 + $0x18] sm:$0xf]
  %v4107 = vld [vmem:[%s2 + $0x1c] sm:$0xf]
  %v4108 = vld [vmem:[%s2 + $0x20] sm:$0xf]
  %v4109 = vld [vmem:[%s2 + $0x24] sm:$0xf]
  %v4110 = vld [vmem:[%s2 + $0x28] sm:$0xf]
  %v4111 = vld [vmem:[%s2 + $0x2c] sm:$0xf]
  %v4112 = vld [vmem:[%s2 + $0x30] sm:$0xf]
  %v4113 = vld [vmem:[%s2 + $0x34] sm:$0xf]
  %v4114 = vld [vmem:[%s2 + $0x38] sm:$0xf]
  %v4115 = vld [vmem:[%s2 + $0x3c] sm:$0xf]
  %v4116 = vld [vmem:[%s2 + $0x40] sm:$0xf]
  %v4117 = vld [vmem:[%s2 + $0x44] sm:$0xf]
  %v4118 = vld [vmem:[%s2 + $0x48] sm:$0xf]
  %v4119 = vld [vmem:[%s2 + $0x4c] sm:$0xf]
  %v4120 = vld [vmem:[%s2 + $0x50] sm:$0xf]
  %v4121 = vld [vmem:[%s2 + $0x54] sm:$0xf]
  %v4122 = vld [vmem:[%s2 + $0x58] sm:$0xf]
  %v4123 = vld [vmem:[%s2 + $0x5c] sm:$0xf]
  %v4124 = vld [vmem:[%s2 + $0x60] sm:$0xf]
  %v4125 = vld [vmem:[%s2 + $0x64] sm:$0xf]
  %v4126 = vld [vmem:[%s2 + $0x68] sm:$0xf]
  %v4127 = vld [vmem:[%s2 + $0x6c] sm:$0xf]
  %v4128 = vld [vmem:[%s2 + $0x70] sm:$0xf]
  %v4129 = vld [vmem:[%s2 + $0x74] sm:$0xf]
  %v4130 = vld [vmem:[%s2 + $0x78] sm:$0xf]
  %v4131 = vld [vmem:[%s2 + $0x7c] sm:$0xf]
  %v4132 = vld [vmem:[%s2 + $0x80] sm:$0xf]
  %v4133 = vld [vmem:[%s2 + $0x84] sm:$0xf]
  %v4134 = vld [vmem:[%s2 + $0x88] sm:$0xf]
  %v4135 = vld [vmem:[%s2 + $0x8c] sm:$0xf]
  %v4136 = vld [vmem:[%s2 + $0x90] sm:$0xf]
  %v4137 = vld [vmem:[%s2 + $0x94] sm:$0xf]
  %v4138 = vld [vmem:[%s2 + $0x98] sm:$0xf]
  %v4139 = vld [vmem:[%s2 + $0x9c] sm:$0xf]
  %v4140 = vld [vmem:[%s2 + $0xa0] sm:$0xf]
  %v4141 = vld [vmem:[%s2 + $0xa4] sm:$0xf]
  %v4142 = vld [vmem:[%s2 + $0xa8] sm:$0xf]
  %v4143 = vld [vmem:[%s2 + $0xac] sm:$0xf]
  %v4144 = vld [vmem:[%s2 + $0xb0] sm:$0xf]
  %v4145 = vld [vmem:[%s2 + $0xb4] sm:$0xf]
  %v4146 = vld [vmem:[%s2 + $0xb8] sm:$0xf]
  %v4147 = vld [vmem:[%s2 + $0xbc] sm:$0xf]
  %v4148 = vld [vmem:[%s2 + $0xc0] sm:$0xf]
  %v4149 = vld [vmem:[%s2 + $0xc4] sm:$0xf]
  %v4150 = vld [vmem:[%s2 + $0xc8] sm:$0xf]
  %v4151 = vld [vmem:[%s2 + $0xcc] sm:$0xf]
  %v4152 = vld [vmem:[%s2 + $0xd0] sm:$0xf]
  %v4153 = vld [vmem:[%s2 + $0xd4] sm:$0xf]
  %v4154 = vld [vmem:[%s2 + $0xd8] sm:$0xf]
  %v4155 = vld [vmem:[%s2 + $0xdc] sm:$0xf]
  %v4156 = vld [vmem:[%s2 + $0xe0] sm:$0xf]
  %v4157 = vld [vmem:[%s2 + $0xe4] sm:$0xf]
  %v4158 = vld [vmem:[%s2 + $0xe8] sm:$0xf]
  %v4159 = vld [vmem:[%s2 + $0xec] sm:$0xf]
  %v4160 = vld [vmem:[%s2 + $0xf0] sm:$0xf]
  %v4161 = vld [vmem:[%s2 + $0xf4] sm:$0xf]
  %v4162 = vld [vmem:[%s2 + $0xf8] sm:$0xf]
  %v4163 = vld [vmem:[%s2 + $0xfc] sm:$0xf]
  %v4164 = vld [vmem:[%s2 + $0x100] sm:$0xf]
  %v4165 = vld [vmem:[%s2 + $0x104] sm:$0xf]
  %v4166 = vld [vmem:[%s2 + $0x108] sm:$0xf]
  %v4167 = vld [vmem:[%s2 + $0x10c] sm:$0xf]
  %v4168 = vld [vmem:[%s2 + $0x110] sm:$0xf]
  %v4169 = vld [vmem:[%s2 + $0x114] sm:$0xf]
  %v4170 = vld [vmem:[%s2 + $0x118] sm:$0xf]
  %v4171 = vld [vmem:[%s2 + $0x11c] sm:$0xf]
  %v4172 = vld [vmem:[%s2 + $0x120] sm:$0xf]
  %v4173 = vld [vmem:[%s2 + $0x124] sm:$0xf]
  %v4174 = vld [vmem:[%s2 + $0x128] sm:$0xf]
  %v4175 = vld [vmem:[%s2 + $0x12c] sm:$0xf]
  %v4176 = vld [vmem:[%s2 + $0x130] sm:$0xf]
  %v4177 = vld [vmem:[%s2 + $0x134] sm:$0xf]
  %v4178 = vld [vmem:[%s2 + $0x138] sm:$0xf]
  %v4179 = vld [vmem:[%s2 + $0x13c] sm:$0xf]
  %v4180 = vld [vmem:[%s3] sm:$0x1]
  %v4182 = vlaneseq
  %v4183 = vshrl.u32 %v4182, 7
  %v4184 = vsub.s32 0, %v4183
  %v4185 = vrot.slane %v4180, %v4184
  %v4267 = vunpack.c.l.b16 %v4100
  %v4268 = vunpack.c.l.b16 %v4101
  %v4269 = vunpack.c.l.b16 %v4102
  %v4270 = vunpack.c.l.b16 %v4103
  %v4271 = vunpack.c.l.b16 %v4104
  %v4272 = vunpack.c.l.b16 %v4105
  %v4273 = vunpack.c.l.b16 %v4106
  %v4274 = vunpack.c.l.b16 %v4107
  %v4275 = vunpack.c.l.b16 %v4108
  %v4276 = vunpack.c.l.b16 %v4109
  %v4277 = vunpack.c.l.b16 %v4110
  %v4278 = vunpack.c.l.b16 %v4111
  %v4279 = vunpack.c.l.b16 %v4112
  %v4280 = vunpack.c.l.b16 %v4113
  %v4281 = vunpack.c.l.b16 %v4114
  %v4282 = vunpack.c.l.b16 %v4115
  %v4283 = vunpack.c.l.b16 %v4116
  %v4284 = vunpack.c.l.b16 %v4117
  %v4285 = vunpack.c.l.b16 %v4118
  %v4286 = vunpack.c.l.b16 %v4119
  %v4287 = vunpack.c.l.b16 %v4120
  %v4288 = vunpack.c.l.b16 %v4121
  %v4289 = vunpack.c.l.b16 %v4122
  %v4290 = vunpack.c.l.b16 %v4123
  %v4291 = vunpack.c.l.b16 %v4124
  %v4292 = vunpack.c.l.b16 %v4125
  %v4293 = vunpack.c.l.b16 %v4126
  %v4294 = vunpack.c.l.b16 %v4127
  %v4295 = vunpack.c.l.b16 %v4128
  %v4296 = vunpack.c.l.b16 %v4129
  %v4297 = vunpack.c.l.b16 %v4130
  %v4298 = vunpack.c.l.b16 %v4131
  %v4299 = vunpack.c.l.b16 %v4132
  %v4300 = vunpack.c.l.b16 %v4133
  %v4301 = vunpack.c.l.b16 %v4134
  %v4302 = vunpack.c.l.b16 %v4135
  %v4303 = vunpack.c.l.b16 %v4136
  %v4304 = vunpack.c.l.b16 %v4137
  %v4305 = vunpack.c.l.b16 %v4138
  %v4306 = vunpack.c.l.b16 %v4139
  %v4307 = vunpack.c.l.b16 %v4140
  %v4308 = vunpack.c.l.b16 %v4141
  %v4309 = vunpack.c.l.b16 %v4142
  %v4310 = vunpack.c.l.b16 %v4143
  %v4311 = vunpack.c.l.b16 %v4144
  %v4312 = vunpack.c.l.b16 %v4145
  %v4313 = vunpack.c.l.b16 %v4146
  %v4314 = vunpack.c.l.b16 %v4147
  %v4315 = vunpack.c.l.b16 %v4148
  %v4316 = vunpack.c.l.b16 %v4149
  %v4317 = vunpack.c.l.b16 %v4150
  %v4318 = vunpack.c.l.b16 %v4151
  %v4319 = vunpack.c.l.b16 %v4152
  %v4320 = vunpack.c.l.b16 %v4153
  %v4321 = vunpack.c.l.b16 %v4154
  %v4322 = vunpack.c.l.b16 %v4155
  %v4323 = vunpack.c.l.b16 %v4156
  %v4324 = vunpack.c.l.b16 %v4157
  %v4325 = vunpack.c.l.b16 %v4158
  %v4326 = vunpack.c.l.b16 %v4159
  %v4327 = vunpack.c.l.b16 %v4160
  %v4328 = vunpack.c.l.b16 %v4161
  %v4329 = vunpack.c.l.b16 %v4162
  %v4330 = vunpack.c.l.b16 %v4163
  %v4331 = vunpack.c.l.b16 %v4164
  %v4332 = vunpack.c.l.b16 %v4165
  %v4333 = vunpack.c.l.b16 %v4166
  %v4334 = vunpack.c.l.b16 %v4167
  %v4335 = vunpack.c.l.b16 %v4168
  %v4336 = vunpack.c.l.b16 %v4169
  %v4337 = vunpack.c.l.b16 %v4170
  %v4338 = vunpack.c.l.b16 %v4171
  %v4339 = vunpack.c.l.b16 %v4172
  %v4340 = vunpack.c.l.b16 %v4173
  %v4341 = vunpack.c.l.b16 %v4174
  %v4342 = vunpack.c.l.b16 %v4175
  %v4343 = vunpack.c.l.b16 %v4176
  %v4344 = vunpack.c.l.b16 %v4177
  %v4345 = vunpack.c.l.b16 %v4178
  %v4346 = vunpack.c.l.b16 %v4179
  %v4347 = vpack.c.b16 %v4268, %v4267
  %v4348 = vpack.c.b16 %v4270, %v4269
  %v4349 = vpack.c.b16 %v4272, %v4271
  %v4350 = vpack.c.b16 %v4274, %v4273
  %v4351 = vpack.c.b16 %v4276, %v4275
  %v4352 = vpack.c.b16 %v4278, %v4277
  %v4353 = vpack.c.b16 %v4280, %v4279
  %v4354 = vpack.c.b16 %v4282, %v4281
  %v4355 = vpack.c.b16 %v4284, %v4283
  %v4356 = vpack.c.b16 %v4286, %v4285
  %v4357 = vpack.c.b16 %v4288, %v4287
  %v4358 = vpack.c.b16 %v4290, %v4289
  %v4359 = vpack.c.b16 %v4292, %v4291
  %v4360 = vpack.c.b16 %v4294, %v4293
  %v4361 = vpack.c.b16 %v4296, %v4295
  %v4362 = vpack.c.b16 %v4298, %v4297
  %v4363 = vpack.c.b16 %v4300, %v4299
  %v4364 = vpack.c.b16 %v4302, %v4301
  %v4365 = vpack.c.b16 %v4304, %v4303
  %v4366 = vpack.c.b16 %v4306, %v4305
  %v4367 = vpack.c.b16 %v4308, %v4307
  %v4368 = vpack.c.b16 %v4310, %v4309
  %v4369 = vpack.c.b16 %v4312, %v4311
  %v4370 = vpack.c.b16 %v4314, %v4313
  %v4371 = vpack.c.b16 %v4316, %v4315
  %v4372 = vpack.c.b16 %v4318, %v4317
  %v4373 = vpack.c.b16 %v4320, %v4319
  %v4374 = vpack.c.b16 %v4322, %v4321
  %v4375 = vpack.c.b16 %v4324, %v4323
  %v4376 = vpack.c.b16 %v4326, %v4325
  %v4377 = vpack.c.b16 %v4328, %v4327
  %v4378 = vpack.c.b16 %v4330, %v4329
  %v4379 = vpack.c.b16 %v4332, %v4331
  %v4380 = vpack.c.b16 %v4334, %v4333
  %v4381 = vpack.c.b16 %v4336, %v4335
  %v4382 = vpack.c.b16 %v4338, %v4337
  %v4383 = vpack.c.b16 %v4340, %v4339
  %v4384 = vpack.c.b16 %v4342, %v4341
  %v4385 = vpack.c.b16 %v4344, %v4343
  %v4386 = vpack.c.b16 %v4346, %v4345
  %4427 = vmatprep.subr.bf16.mxu0 0
  %4428 = vmatpush1.bf16.msra.mxu0 %v4354
  %4429 = vmatprep.subr.bf16.mxu0 0
  %4430 = vmatpush1.bf16.msra.mxu0 %v4353
  %4431 = vmatprep.subr.bf16.mxu0 0
  %4432 = vmatpush1.bf16.msra.mxu0 %v4352
  %4433 = vmatprep.subr.bf16.mxu0 0
  %4434 = vmatpush1.bf16.msra.mxu0 %v4351
  %4435 = vmatprep.subr.bf16.mxu0 0
  %4436 = vmatpush1.bf16.msra.mxu0 %v4350
  %4437 = vmatprep.subr.bf16.mxu0 0
  %4438 = vmatpush1.bf16.msra.mxu0 %v4349
  %4439 = vmatprep.subr.bf16.mxu0 0
  %4440 = vmatpush1.bf16.msra.mxu0 %v4348
  %4441 = vmatprep.subr.bf16.mxu0 0
  %4442 = vmatpush1.bf16.msra.mxu0 %v4347
  %4443 = vmatprep.subr.bf16.mxu0 0
  %4444 = vmatpush2.bf16.msra.mxu0 %v4362
  %4445 = vmatprep.subr.bf16.mxu0 0
  %4446 = vmatpush2.bf16.msra.mxu0 %v4361
  %4447 = vmatprep.subr.bf16.mxu0 0
  %4448 = vmatpush2.bf16.msra.mxu0 %v4360
  %4449 = vmatprep.subr.bf16.mxu0 0
  %4450 = vmatpush2.bf16.msra.mxu0 %v4359
  %4451 = vmatprep.subr.bf16.mxu0 0
  %4452 = vmatpush2.bf16.msra.mxu0 %v4358
  %4453 = vmatprep.subr.bf16.mxu0 0
  %4454 = vmatpush2.bf16.msra.mxu0 %v4357
  %4455 = vmatprep.subr.bf16.mxu0 0
  %4456 = vmatpush2.bf16.msra.mxu0 %v4356
  %4457 = vmatprep.subr.bf16.mxu0 0
  %4458 = vmatpush2.bf16.msra.mxu0 %v4355
  %4459 = vmatprep.mubr.bf16.mxu0 %v4096
  %4460 = vmatmul.mubr.bf16.gmra.mxu0 %v4095
  %v4461 = vpop.f32.mrf.mxu0
  %v4462 = vadd.f32 %v4185, %v4461
  %v4463 = vpop.f32.mrf.mxu0
  %v4464 = vpop.f32.mrf.mxu0
  %v4465 = vpop.f32.mrf.mxu0
  %4466 = vdwg.mxu0
  %4467 = vmatprep.subr.bf16.mxu0 0
  %4468 = vmatpush1.bf16.msra.mxu0 %v4370
  %4469 = vmatprep.subr.bf16.mxu0 0
  %4470 = vmatpush1.bf16.msra.mxu0 %v4369
  %4471 = vmatprep.subr.bf16.mxu0 0
  %4472 = vmatpush1.bf16.msra.mxu0 %v4368
  %4473 = vmatprep.subr.bf16.mxu0 0
  %4474 = vmatpush1.bf16.msra.mxu0 %v4367
  %4475 = vmatprep.subr.bf16.mxu0 0
  %4476 = vmatpush1.bf16.msra.mxu0 %v4366
  %4477 = vmatprep.subr.bf16.mxu0 0
  %4478 = vmatpush1.bf16.msra.mxu0 %v4365
  %4479 = vmatprep.subr.bf16.mxu0 0
  %4480 = vmatpush1.bf16.msra.mxu0 %v4364
  %4481 = vmatprep.subr.bf16.mxu0 0
  %4482 = vmatpush1.bf16.msra.mxu0 %v4363
  %4483 = vmatprep.subr.bf16.mxu0 0
  %4484 = vmatpush2.bf16.msra.mxu0 %v4378
  %4485 = vmatprep.subr.bf16.mxu0 0
  %4486 = vmatpush2.bf16.msra.mxu0 %v4377
  %4487 = vmatprep.subr.bf16.mxu0 0
  %4488 = vmatpush2.bf16.msra.mxu0 %v4376
  %4489 = vmatprep.subr.bf16.mxu0 0
  %4490 = vmatpush2.bf16.msra.mxu0 %v4375
  %4491 = vmatprep.subr.bf16.mxu0 0
  %4492 = vmatpush2.bf16.msra.mxu0 %v4374
  %4493 = vmatprep.subr.bf16.mxu0 0
  %4494 = vmatpush2.bf16.msra.mxu0 %v4373
  %4495 = vmatprep.subr.bf16.mxu0 0
  %4496 = vmatpush2.bf16.msra.mxu0 %v4372
  %4497 = vmatprep.subr.bf16.mxu0 0
  %4498 = vmatpush2.bf16.msra.mxu0 %v4371
  %4499 = vmatprep.mubr.bf16.mxu0 %v4098
  %4500 = vmatmul.mubr.bf16.gmra.mxu0 %v4097
  %v4501 = vpop.f32.mrf.mxu0
  %v4502 = vadd.f32 %v4462, %v4501
  %v4503 = vpop.f32.mrf.mxu0
  %v4504 = vpop.f32.mrf.mxu0
  %v4505 = vpop.f32.mrf.mxu0
  %4506 = vdwg.mxu0
  %4507 = vmatprep.subr.bf16.mxu0 0
  %4508 = vmatpush1.bf16.msra.mxu0 %v4386
  %4509 = vmatprep.subr.bf16.mxu0 0
  %4510 = vmatpush1.bf16.msra.mxu0 %v4385
  %4511 = vmatprep.subr.bf16.mxu0 0
  %4512 = vmatpush1.bf16.msra.mxu0 %v4384
  %4513 = vmatprep.subr.bf16.mxu0 0
  %4514 = vmatpush1.bf16.msra.mxu0 %v4383
  %4515 = vmatprep.subr.bf16.mxu0 0
  %4516 = vmatpush1.bf16.msra.mxu0 %v4382
  %4517 = vmatprep.subr.bf16.mxu0 0
  %4518 = vmatpush1.bf16.msra.mxu0 %v4381
  %4519 = vmatprep.subr.bf16.mxu0 0
  %4520 = vmatpush1.bf16.msra.mxu0 %v4380
  %4521 = vmatprep.subr.bf16.mxu0 0
  %4522 = vmatpush1.bf16.msra.mxu0 %v4379
  %4523 = vmatprep.subr.bf16.mxu0 0
  %4524 = vmatpush2.bf16.msra.mxu0 0
  %4525 = vmatprep.subr.bf16.mxu0 0
  %4526 = vmatpush2.bf16.msra.mxu0 0
  %4527 = vmatprep.subr.bf16.mxu0 0
  %4528 = vmatpush2.bf16.msra.mxu0 0
  %4529 = vmatprep.subr.bf16.mxu0 0
  %4530 = vmatpush2.bf16.msra.mxu0 0
  %4531 = vmatprep.subr.bf16.mxu0 0
  %4532 = vmatpush2.bf16.msra.mxu0 0
  %4533 = vmatprep.subr.bf16.mxu0 0
  %4534 = vmatpush2.bf16.msra.mxu0 0
  %4535 = vmatprep.subr.bf16.mxu0 0
  %4536 = vmatpush2.bf16.msra.mxu0 0
  %4537 = vmatprep.subr.bf16.mxu0 0
  %4538 = vmatpush2.bf16.msra.mxu0 0
  %4539 = vmatprep.mubr.bf16.mxu0 0
  %4540 = vmatmul.mubr.bf16.gmra.mxu0 %v4099
  %v4541 = vpop.f32.mrf.mxu0
  %v4542 = vadd.f32 %v4502, %v4541
  %v4543 = vpop.f32.mrf.mxu0
  %v4544 = vpop.f32.mrf.mxu0
  %v4545 = vpop.f32.mrf.mxu0
  %4546 = vdwg.mxu0
  %4547 = vst [vmem:[%s4] sm:$0xff] %v4542
  // Predicated region
  $region18: #{textcnn_forward.1} parent=0 // pred_check
    _
  $region19: #{textcnn_forward.1} parent=0 // pred_check_branch
    %4549 = sbr.rel (0) target = $region21
  $region20: #{textcnn_forward.1} parent=0 // pred_region
    _
  $region21: #{textcnn_forward.1} parent=0 // pred_fallthru
    _
  // Predicated region
  $region22: #{textcnn_forward.1} parent=0 // pred_check
    _
  $region23: #{textcnn_forward.1} parent=0 // pred_check_branch
    %4551 = sbr.rel (0) target = $region25
  $region24: #{textcnn_forward.1} parent=0 // pred_region
    _
  $region25: #{textcnn_forward.1} parent=0 // pred_fallthru
    _

</llo_original>
